<compile_context>
chip_gen: v7x
topology: tpu7x:2x2x1
jax: 0.10.0
libtpu: 0.0.40
codegen_flags: <defaults>
</compile_context>

<pallas_src>
import functools

import numpy as np
import jax
import jax.numpy as jnp
from jax import lax
from jax.experimental import pallas as pl
from jax.experimental.pallas import tpu as pltpu

BN_EPS = 1e-3          # facenet BasicConv2d / last_bn eps
EMBED_DIM = 24         # scaled down from 512
BM = 256               # row tile for the conv matmuls (only tiled axis)


def _round_up(n, m):
    return ((n + m - 1) // m) * m


# ----------------------------------------------------------------------------
# Pallas kernels
# ----------------------------------------------------------------------------
def _matmul_bn_relu_kernel(x_ref, w_ref, shift_ref, o_ref):
    """o = relu(x @ w + shift); BN scale is pre-folded into w."""
    y = jnp.dot(x_ref[...], w_ref[...], preferred_element_type=jnp.float32)
    o_ref[...] = jnp.maximum(y + shift_ref[...], 0.0).astype(o_ref.dtype)


def _matmul_residual_relu_kernel(x_ref, w_ref, shift_ref, res_ref, o_ref,
                                 *, res_scale):
    """Block35 tail: o = relu(res + res_scale * (x @ w + bias))."""
    y = jnp.dot(x_ref[...], w_ref[...], preferred_element_type=jnp.float32)
    up = y + shift_ref[...]
    o_ref[...] = jnp.maximum(res_ref[...] + res_scale * up, 0.0).astype(o_ref.dtype)


def _maxpool_kernel(p_ref, o_ref, *, kk):
    """Max over kk taps; lane-dense layout (kk, B*OH*OW*C)."""
    m = p_ref[0:1, :]
    for t in range(1, kk):
        m = jnp.maximum(m, p_ref[t:t + 1, :])
    o_ref[...] = m


def _gap_head_kernel(x_ref, w_ref, gamma_ref, beta_ref, mean_ref, var_ref,
                     o_ref, *, hw):
    """Global avg pool -> last_linear (no bias) -> BatchNorm1d -> L2 normalize."""
    feat = x_ref[:, 0, :]
    for t in range(1, hw):
        feat = feat + x_ref[:, t, :]
    feat = feat * (1.0 / hw)
    y = jnp.dot(feat, w_ref[...], preferred_element_type=jnp.float32)
    scale = gamma_ref[...] * lax.rsqrt(var_ref[...] + BN_EPS)
    y = (y - mean_ref[...]) * scale + beta_ref[...]
    norm = jnp.sqrt(jnp.sum(y * y, axis=1, keepdims=True))
    o_ref[...] = (y / jnp.maximum(norm, 1e-12)).astype(o_ref.dtype)


# ----------------------------------------------------------------------------
# Wrappers
# ----------------------------------------------------------------------------
def fused_matmul(x, w, shift, *, residual=None, res_scale=0.17):
    """relu(x @ w + shift), optionally fused with a scaled residual add.

    Only the M axis is tiled (grid axis, 'parallel'); K and N stay whole
    (K <= 288, N <= 32 here), so there is a single jnp.dot per tile and no
    accumulator scratch.  x / w are fed as bf16; accumulation & epilogue f32.
    """
    M, K = x.shape
    N = w.shape[1]
    if M > BM:
        Mp = _round_up(M, BM)
        bm = BM
    else:
        Mp = _round_up(M, 16)
        bm = Mp

    xp = jnp.pad(x, ((0, Mp - M), (0, 0))).astype(jnp.bfloat16)
    wb = w.astype(jnp.bfloat16)
    sh = shift.reshape(1, N).astype(jnp.float32)

    in_specs = [
        pl.BlockSpec((bm, K), lambda i: (i, 0)),
        pl.BlockSpec((K, N), lambda i: (0, 0)),
        pl.BlockSpec((1, N), lambda i: (0, 0)),
    ]
    args = [xp, wb, sh]
    if residual is None:
        kernel = _matmul_bn_relu_kernel
    else:
        rp = jnp.pad(residual.astype(jnp.float32), ((0, Mp - M), (0, 0)))
        in_specs.append(pl.BlockSpec((bm, N), lambda i: (i, 0)))
        args.append(rp)
        kernel = functools.partial(_matmul_residual_relu_kernel,
                                   res_scale=res_scale)

    out = pl.pallas_call(
        kernel,
        out_shape=jax.ShapeDtypeStruct((Mp, N), jnp.float32),
        grid=(Mp // bm,),
        in_specs=in_specs,
        out_specs=pl.BlockSpec((bm, N), lambda i: (i, 0)),
        compiler_params=pltpu.CompilerParams(
            dimension_semantics=("parallel",)),
    )(*args)
    return out[:M]


def _bn_fold(w2d, gamma, beta, mean, var):
    """Fold inference BatchNorm into (weight, shift)."""
    scale = gamma * lax.rsqrt(var + BN_EPS)
    return w2d * scale[None, :], beta - mean * scale


def _extract_patches(x, kh, kw, stride, padding):
    """NHWC -> (B, OH, OW, KH*KW, C) patch tensor (plain-JAX glue)."""
    if padding:
        x = jnp.pad(x, ((0, 0), (padding, padding), (padding, padding), (0, 0)))
    B, H, W, C = x.shape
    oh = (H - kh) // stride + 1
    ow = (W - kw) // stride + 1
    patches = []
    for i in range(kh):
        for j in range(kw):
            patches.append(
                x[:, i:i + stride * (oh - 1) + 1:stride,
                     j:j + stride * (ow - 1) + 1:stride, :])
    return jnp.stack(patches, axis=3), (B, oh, ow)


def conv_bn_relu(x, q, *, stride=1, padding=0):
    """BasicConv2d: conv (no bias) -> BN -> ReLU, as one fused matmul."""
    w = q["w"]
    kh, kw, cin, cout = w.shape
    wm, shift = _bn_fold(w.reshape(kh * kw * cin, cout),
                         q["gamma"], q["beta"], q["mean"], q["var"])
    if kh == 1 and kw == 1 and stride == 1 and padding == 0:
        B, H, W_, _ = x.shape
        oh, ow = H, W_
        cols = x.reshape(B * H * W_, cin)
    else:
        patches, (B, oh, ow) = _extract_patches(x, kh, kw, stride, padding)
        cols = patches.reshape(B * oh * ow, kh * kw * cin)
    out = fused_matmul(cols, wm, shift)
    return out.reshape(B, oh, ow, cout)


def conv1x1_bn_relu_multi(x, qs):
    """Fuse several 1x1 BasicConv2d's that read the same x into ONE matmul."""
    B, H, W_, C = x.shape
    cols = x.reshape(B * H * W_, C)
    wms, shifts, couts = [], [], []
    for q in qs:
        cout = q["w"].shape[-1]
        wm, sh = _bn_fold(q["w"].reshape(C, cout),
                          q["gamma"], q["beta"], q["mean"], q["var"])
        wms.append(wm)
        shifts.append(sh)
        couts.append(cout)
    out = fused_matmul(cols, jnp.concatenate(wms, axis=1),
                       jnp.concatenate(shifts))
    outs, off = [], 0
    for cout in couts:
        outs.append(out[:, off:off + cout].reshape(B, H, W_, cout))
        off += cout
    return outs


def conv1x1_bias_residual_relu(x_res, mixed, w, bias, *, res_scale):
    """Block35 tail: 1x1 conv (bias) + scaled residual add + ReLU, one kernel."""
    B, H, W_, Cm = mixed.shape
    cout = w.shape[-1]
    cols = mixed.reshape(B * H * W_, Cm)
    out = fused_matmul(cols, w.reshape(Cm, cout), bias,
                       residual=x_res.reshape(B * H * W_, cout),
                       res_scale=res_scale)
    return out.reshape(B, H, W_, cout)


def max_pool(x, *, kernel=3, stride=2):
    C = x.shape[-1]
    patches, (B, oh, ow) = _extract_patches(x, kernel, kernel, stride, 0)
    kk = kernel * kernel
    # lane-dense layout: taps along sublanes, flattened elements along lanes
    p = jnp.transpose(patches.reshape(B * oh * ow, kk, C), (1, 0, 2))
    p = p.reshape(kk, B * oh * ow * C)
    n = p.shape[1]
    npad = _round_up(n, 128)
    p = jnp.pad(p, ((0, 0), (0, npad - n)))
    out = pl.pallas_call(
        functools.partial(_maxpool_kernel, kk=kk),
        out_shape=jax.ShapeDtypeStruct((1, npad), jnp.float32),
    )(p)
    return out[0, :n].reshape(B, oh, ow, C)


def gap_embedding_head(x, w, gamma, beta, mean, var):
    """Fused adaptive-avg-pool + last_linear + last_bn + L2 normalize."""
    B, H, W_, C = x.shape
    E = w.shape[1]
    r = lambda v: v.reshape(1, E).astype(jnp.float32)
    return pl.pallas_call(
        functools.partial(_gap_head_kernel, hw=H * W_),
        out_shape=jax.ShapeDtypeStruct((B, E), jnp.float32),
    )(x.reshape(B, H * W_, C).astype(jnp.float32),
      w.astype(jnp.float32), r(gamma), r(beta), r(mean), r(var))


# ----------------------------------------------------------------------------
# Deterministic synthetic parameters (shapes follow InceptionResnetV1, scaled)
# ----------------------------------------------------------------------------
def _init_conv_bn(key, kh, kw, cin, cout):
    kw_, kg, kb, km, kv = jax.random.split(key, 5)
    std = 1.0 / np.sqrt(kh * kw * cin)
    return dict(
        w=jax.random.normal(kw_, (kh, kw, cin, cout), jnp.float32) * std,
        gamma=1.0 + 0.1 * jax.random.normal(kg, (cout,), jnp.float32),
        beta=0.1 * jax.random.normal(kb, (cout,), jnp.float32),
        mean=0.1 * jax.random.normal(km, (cout,), jnp.float32),
        var=jnp.abs(1.0 + 0.1 * jax.random.normal(kv, (cout,), jnp.float32)),
    )


def init_params(key):
    k = jax.random.split(key, 20)
    p = {}
    # stem (BasicConv2d = conv no-bias -> BN -> ReLU)
    p["conv2d_1a"] = _init_conv_bn(k[0], 3, 3, 3, 8)     # stride 2
    p["conv2d_2a"] = _init_conv_bn(k[1], 3, 3, 8, 8)
    p["conv2d_2b"] = _init_conv_bn(k[2], 3, 3, 8, 16)    # padding 1
    p["conv2d_3b"] = _init_conv_bn(k[3], 1, 1, 16, 20)
    p["conv2d_4a"] = _init_conv_bn(k[4], 3, 3, 20, 24)
    p["conv2d_4b"] = _init_conv_bn(k[5], 3, 3, 24, 32)   # stride 2
    # Block35-style scaled residual block (repeat_1)
    p["b35_branch0"] = _init_conv_bn(k[6], 1, 1, 32, 8)
    p["b35_branch1_0"] = _init_conv_bn(k[7], 1, 1, 32, 8)
    p["b35_branch1_1"] = _init_conv_bn(k[8], 3, 3, 8, 8)
    p["b35_branch2_0"] = _init_conv_bn(k[9], 1, 1, 32, 8)
    p["b35_branch2_1"] = _init_conv_bn(k[10], 3, 3, 8, 8)
    p["b35_branch2_2"] = _init_conv_bn(k[11], 3, 3, 8, 8)
    p["b35_up_w"] = jax.random.normal(k[12], (1, 1, 24, 32), jnp.float32) / np.sqrt(24)
    p["b35_up_b"] = 0.1 * jax.random.normal(k[13], (32,), jnp.float32)
    # head: last_linear (no bias) + last_bn + L2 normalize
    p["last_linear_w"] = jax.random.normal(k[14], (32, EMBED_DIM), jnp.float32) / np.sqrt(32)
    p["last_bn_gamma"] = 1.0 + 0.1 * jax.random.normal(k[15], (EMBED_DIM,), jnp.float32)
    p["last_bn_beta"] = 0.1 * jax.random.normal(k[16], (EMBED_DIM,), jnp.float32)
    p["last_bn_mean"] = 0.1 * jax.random.normal(k[17], (EMBED_DIM,), jnp.float32)
    p["last_bn_var"] = jnp.abs(1.0 + 0.1 * jax.random.normal(k[18], (EMBED_DIM,), jnp.float32))
    return p


# ----------------------------------------------------------------------------
# Forward pass (eval-mode InceptionResnetV1, classify=False)
# ----------------------------------------------------------------------------
def facenet_embedder_forward(params, face_img_nchw):
    # accepts NCHW like the PyTorch module, transposes to NHWC
    x = jnp.transpose(face_img_nchw, (0, 2, 3, 1)).astype(jnp.float32)

    x = conv_bn_relu(x, params["conv2d_1a"], stride=2)
    x = conv_bn_relu(x, params["conv2d_2a"])
    x = conv_bn_relu(x, params["conv2d_2b"], padding=1)
    x = max_pool(x, kernel=3, stride=2)
    x = conv_bn_relu(x, params["conv2d_3b"])
    x = conv_bn_relu(x, params["conv2d_4a"])
    x = conv_bn_relu(x, params["conv2d_4b"], stride=2)

    # Block35: three branch stems fused into one matmul (same input x)
    b0, b1, b2 = conv1x1_bn_relu_multi(
        x, [params["b35_branch0"], params["b35_branch1_0"],
            params["b35_branch2_0"]])
    b1 = conv_bn_relu(b1, params["b35_branch1_1"], padding=1)
    b2 = conv_bn_relu(b2, params["b35_branch2_1"], padding=1)
    b2 = conv_bn_relu(b2, params["b35_branch2_2"], padding=1)
    mixed = jnp.concatenate([b0, b1, b2], axis=-1)
    # 1x1 up-conv (bias, no BN/ReLU) fused with x + 0.17*up -> ReLU
    x = conv1x1_bias_residual_relu(x, mixed, params["b35_up_w"],
                                   params["b35_up_b"], res_scale=0.17)

    # TODO(synk): mixed_6a / repeat_2 / mixed_7a / repeat_3 / block8 stages of
    # InceptionResnetV1 are truncated in this scaled-down synthetic config;
    # they are compositions of exactly the conv/pool/residual kernels above.

    # adaptive avg pool + dropout(identity, eval) + last_linear + last_bn + L2
    emb = gap_embedding_head(x,
                             params["last_linear_w"], params["last_bn_gamma"],
                             params["last_bn_beta"], params["last_bn_mean"],
                             params["last_bn_var"])
    return emb                          # (B, EMBED_DIM), L2-normalized rows


if __name__ == "__main__":
    key = jax.random.PRNGKey(0)
    pkey, xkey = jax.random.split(key)
    params = init_params(pkey)
    face_img = jax.random.normal(xkey, (2, 3, 35, 35), jnp.float32)  # NCHW

    fwd = jax.jit(facenet_embedder_forward)
    emb = fwd(params, face_img)
    emb = jax.block_until_ready(emb)

    assert emb.shape == (2, EMBED_DIM)
    assert bool(jnp.all(jnp.isfinite(emb)))
    norms = jnp.linalg.norm(emb, axis=1)
    assert bool(jnp.all(jnp.abs(norms - 1.0) < 1e-4)), norms  # L2-normalized
    print("KERNEL_OK")
</pallas_src>

<mosaic_0001>
module attributes {stable_mosaic.version = 11 : i64} {
  func.func @_matmul_bn_relu_kernel(%arg0: i32, %arg1: memref<256x27xbf16, #tpu.memory_space<vmem>>, %arg2: memref<27x8xbf16, #tpu.memory_space<vmem>>, %arg3: memref<1x8xf32, #tpu.memory_space<vmem>>, %arg4: memref<256x8xf32, #tpu.memory_space<vmem>>) attributes {dimension_semantics = [#tpu.dimension_semantics<parallel>], iteration_bounds = array<i64: 3>, scalar_prefetch = 0 : i64, scratch_operands = 0 : i64, tpu.core_type = #tpu.core_type<tc>, window_params = [{transform_indices = @transform_0, window_bounds = array<i64: 256, 27>}, {pipeline_mode = #tpu.pipeline_mode<synchronous>, transform_indices = @transform_1, window_bounds = array<i64: 27, 8>}, {pipeline_mode = #tpu.pipeline_mode<synchronous>, transform_indices = @transform_2, window_bounds = array<i64: 1, 8>}, {transform_indices = @transform_3, window_bounds = array<i64: 256, 8>}]} {
    %c0 = arith.constant 0 : index
    %c0_0 = arith.constant 0 : index
    %0 = vector.load %arg1[%c0, %c0_0] : memref<256x27xbf16, #tpu.memory_space<vmem>>, vector<256x27xbf16>
    %c0_1 = arith.constant 0 : index
    %c0_2 = arith.constant 0 : index
    %1 = vector.load %arg2[%c0_1, %c0_2] : memref<27x8xbf16, #tpu.memory_space<vmem>>, vector<27x8xbf16>
    %cst = arith.constant dense<0.000000e+00> : vector<256x8xf32>
    %2 = tpu.matmul %0, %1, %cst {dimension_numbers = #tpu.dot_dimension_numbers<[1], [0], [0], [1], [0, 0, 1, 1], [], []>} : vector<256x27xbf16>, vector<27x8xbf16>, vector<256x8xf32> -> vector<256x8xf32>
    %c0_3 = arith.constant 0 : index
    %c0_4 = arith.constant 0 : index
    %3 = vector.load %arg3[%c0_3, %c0_4] : memref<1x8xf32, #tpu.memory_space<vmem>>, vector<1x8xf32>
    %4 = vector.broadcast %3 : vector<1x8xf32> to vector<256x8xf32>
    %5 = arith.addf %2, %4 : vector<256x8xf32>
    %cst_5 = arith.constant 0.000000e+00 : f32
    %6 = vector.broadcast %cst_5 : f32 to vector<256x8xf32>
    %7 = arith.maximumf %5, %6 : vector<256x8xf32>
    %c0_6 = arith.constant 0 : index
    %c0_7 = arith.constant 0 : index
    %8 = vector.load %arg4[%c0_6, %c0_7] : memref<256x8xf32, #tpu.memory_space<vmem>>, vector<256x8xf32>
    tpu.vector_store %arg4[%c0_6, %c0_7], %7 {strides = array<i32>} : memref<256x8xf32, #tpu.memory_space<vmem>>, vector<256x8xf32>,
    return
  }
  func.func @transform_0(%arg0: i32) -> (i32, i32) {
    %c0_i32 = arith.constant 0 : i32
    %c0_i32_0 = arith.constant 0 : i32
    return %arg0, %c0_i32 : i32, i32
  }
  func.func @transform_1(%arg0: i32) -> (i32, i32) {
    %c0_i32 = arith.constant 0 : i32
    %c0_i32_0 = arith.constant 0 : i32
    %c0_i32_1 = arith.constant 0 : i32
    return %c0_i32, %c0_i32_0 : i32, i32
  }
  func.func @transform_2(%arg0: i32) -> (i32, i32) {
    %c0_i32 = arith.constant 0 : i32
    %c0_i32_0 = arith.constant 0 : i32
    %c0_i32_1 = arith.constant 0 : i32
    return %c0_i32, %c0_i32_0 : i32, i32
  }
  func.func @transform_3(%arg0: i32) -> (i32, i32) {
    %c0_i32 = arith.constant 0 : i32
    %c0_i32_0 = arith.constant 0 : i32
    return %arg0, %c0_i32 : i32, i32
  }
}

module attributes {stable_mosaic.version = 11 : i64} {
  func.func @_matmul_bn_relu_kernel(%arg0: i32, %arg1: memref<256x72xbf16, #tpu.memory_space<vmem>>, %arg2: memref<72x8xbf16, #tpu.memory_space<vmem>>, %arg3: memref<1x8xf32, #tpu.memory_space<vmem>>, %arg4: memref<256x8xf32, #tpu.memory_space<vmem>>) attributes {dimension_semantics = [#tpu.dimension_semantics<parallel>], iteration_bounds = array<i64: 2>, scalar_prefetch = 0 : i64, scratch_operands = 0 : i64, tpu.core_type = #tpu.core_type<tc>, window_params = [{transform_indices = @transform_0, window_bounds = array<i64: 256, 72>}, {pipeline_mode = #tpu.pipeline_mode<synchronous>, transform_indices = @transform_1, window_bounds = array<i64: 72, 8>}, {pipeline_mode = #tpu.pipeline_mode<synchronous>, transform_indices = @transform_2, window_bounds = array<i64: 1, 8>}, {transform_indices = @transform_3, window_bounds = array<i64: 256, 8>}]} {
    %c0 = arith.constant 0 : index
    %c0_0 = arith.constant 0 : index
    %0 = vector.load %arg1[%c0, %c0_0] : memref<256x72xbf16, #tpu.memory_space<vmem>>, vector<256x72xbf16>
    %c0_1 = arith.constant 0 : index
    %c0_2 = arith.constant 0 : index
    %1 = vector.load %arg2[%c0_1, %c0_2] : memref<72x8xbf16, #tpu.memory_space<vmem>>, vector<72x8xbf16>
    %cst = arith.constant dense<0.000000e+00> : vector<256x8xf32>
    %2 = tpu.matmul %0, %1, %cst {dimension_numbers = #tpu.dot_dimension_numbers<[1], [0], [0], [1], [0, 0, 1, 1], [], []>} : vector<256x72xbf16>, vector<72x8xbf16>, vector<256x8xf32> -> vector<256x8xf32>
    %c0_3 = arith.constant 0 : index
    %c0_4 = arith.constant 0 : index
    %3 = vector.load %arg3[%c0_3, %c0_4] : memref<1x8xf32, #tpu.memory_space<vmem>>, vector<1x8xf32>
    %4 = vector.broadcast %3 : vector<1x8xf32> to vector<256x8xf32>
    %5 = arith.addf %2, %4 : vector<256x8xf32>
    %cst_5 = arith.constant 0.000000e+00 : f32
    %6 = vector.broadcast %cst_5 : f32 to vector<256x8xf32>
    %7 = arith.maximumf %5, %6 : vector<256x8xf32>
    %c0_6 = arith.constant 0 : index
    %c0_7 = arith.constant 0 : index
    %8 = vector.load %arg4[%c0_6, %c0_7] : memref<256x8xf32, #tpu.memory_space<vmem>>, vector<256x8xf32>
    tpu.vector_store %arg4[%c0_6, %c0_7], %7 {strides = array<i32>} : memref<256x8xf32, #tpu.memory_space<vmem>>, vector<256x8xf32>,
    return
  }
  func.func @transform_0(%arg0: i32) -> (i32, i32) {
    %c0_i32 = arith.constant 0 : i32
    %c0_i32_0 = arith.constant 0 : i32
    return %arg0, %c0_i32 : i32, i32
  }
  func.func @transform_1(%arg0: i32) -> (i32, i32) {
    %c0_i32 = arith.constant 0 : i32
    %c0_i32_0 = arith.constant 0 : i32
    %c0_i32_1 = arith.constant 0 : i32
    return %c0_i32, %c0_i32_0 : i32, i32
  }
  func.func @transform_2(%arg0: i32) -> (i32, i32) {
    %c0_i32 = arith.constant 0 : i32
    %c0_i32_0 = arith.constant 0 : i32
    %c0_i32_1 = arith.constant 0 : i32
    return %c0_i32, %c0_i32_0 : i32, i32
  }
  func.func @transform_3(%arg0: i32) -> (i32, i32) {
    %c0_i32 = arith.constant 0 : i32
    %c0_i32_0 = arith.constant 0 : i32
    return %arg0, %c0_i32 : i32, i32
  }
}

module attributes {stable_mosaic.version = 11 : i64} {
  func.func @_matmul_bn_relu_kernel(%arg0: i32, %arg1: memref<256x72xbf16, #tpu.memory_space<vmem>>, %arg2: memref<72x16xbf16, #tpu.memory_space<vmem>>, %arg3: memref<1x16xf32, #tpu.memory_space<vmem>>, %arg4: memref<256x16xf32, #tpu.memory_space<vmem>>) attributes {dimension_semantics = [#tpu.dimension_semantics<parallel>], iteration_bounds = array<i64: 2>, scalar_prefetch = 0 : i64, scratch_operands = 0 : i64, tpu.core_type = #tpu.core_type<tc>, window_params = [{transform_indices = @transform_0, window_bounds = array<i64: 256, 72>}, {pipeline_mode = #tpu.pipeline_mode<synchronous>, transform_indices = @transform_1, window_bounds = array<i64: 72, 16>}, {pipeline_mode = #tpu.pipeline_mode<synchronous>, transform_indices = @transform_2, window_bounds = array<i64: 1, 16>}, {transform_indices = @transform_3, window_bounds = array<i64: 256, 16>}]} {
    %c0 = arith.constant 0 : index
    %c0_0 = arith.constant 0 : index
    %0 = vector.load %arg1[%c0, %c0_0] : memref<256x72xbf16, #tpu.memory_space<vmem>>, vector<256x72xbf16>
    %c0_1 = arith.constant 0 : index
    %c0_2 = arith.constant 0 : index
    %1 = vector.load %arg2[%c0_1, %c0_2] : memref<72x16xbf16, #tpu.memory_space<vmem>>, vector<72x16xbf16>
    %cst = arith.constant dense<0.000000e+00> : vector<256x16xf32>
    %2 = tpu.matmul %0, %1, %cst {dimension_numbers = #tpu.dot_dimension_numbers<[1], [0], [0], [1], [0, 0, 1, 1], [], []>} : vector<256x72xbf16>, vector<72x16xbf16>, vector<256x16xf32> -> vector<256x16xf32>
    %c0_3 = arith.constant 0 : index
    %c0_4 = arith.constant 0 : index
    %3 = vector.load %arg3[%c0_3, %c0_4] : memref<1x16xf32, #tpu.memory_space<vmem>>, vector<1x16xf32>
    %4 = vector.broadcast %3 : vector<1x16xf32> to vector<256x16xf32>
    %5 = arith.addf %2, %4 : vector<256x16xf32>
    %cst_5 = arith.constant 0.000000e+00 : f32
    %6 = vector.broadcast %cst_5 : f32 to vector<256x16xf32>
    %7 = arith.maximumf %5, %6 : vector<256x16xf32>
    %c0_6 = arith.constant 0 : index
    %c0_7 = arith.constant 0 : index
    %8 = vector.load %arg4[%c0_6, %c0_7] : memref<256x16xf32, #tpu.memory_space<vmem>>, vector<256x16xf32>
    tpu.vector_store %arg4[%c0_6, %c0_7], %7 {strides = array<i32>} : memref<256x16xf32, #tpu.memory_space<vmem>>, vector<256x16xf32>,
    return
  }
  func.func @transform_0(%arg0: i32) -> (i32, i32) {
    %c0_i32 = arith.constant 0 : i32
    %c0_i32_0 = arith.constant 0 : i32
    return %arg0, %c0_i32 : i32, i32
  }
  func.func @transform_1(%arg0: i32) -> (i32, i32) {
    %c0_i32 = arith.constant 0 : i32
    %c0_i32_0 = arith.constant 0 : i32
    %c0_i32_1 = arith.constant 0 : i32
    return %c0_i32, %c0_i32_0 : i32, i32
  }
  func.func @transform_2(%arg0: i32) -> (i32, i32) {
    %c0_i32 = arith.constant 0 : i32
    %c0_i32_0 = arith.constant 0 : i32
    %c0_i32_1 = arith.constant 0 : i32
    return %c0_i32, %c0_i32_0 : i32, i32
  }
  func.func @transform_3(%arg0: i32) -> (i32, i32) {
    %c0_i32 = arith.constant 0 : i32
    %c0_i32_0 = arith.constant 0 : i32
    return %arg0, %c0_i32 : i32, i32
  }
}

module attributes {stable_mosaic.version = 11 : i64} {
  func.func @_maxpool_kernel(%arg0: memref<9x1664xf32, #tpu.memory_space<vmem>>, %arg1: memref<1x1664xf32, #tpu.memory_space<vmem>>) attributes {dimension_semantics = [], scalar_prefetch = 0 : i64, scratch_operands = 0 : i64, tpu.core_type = #tpu.core_type<tc>} {
    %c0 = arith.constant 0 : index
    %c0_0 = arith.constant 0 : index
    %0 = vector.load %arg0[%c0, %c0_0] : memref<9x1664xf32, #tpu.memory_space<vmem>>, vector<1x1664xf32>
    %c1 = arith.constant 1 : index
    %c0_1 = arith.constant 0 : index
    %1 = vector.load %arg0[%c1, %c0_1] : memref<9x1664xf32, #tpu.memory_space<vmem>>, vector<1x1664xf32>
    %2 = arith.maximumf %0, %1 : vector<1x1664xf32>
    %c2 = arith.constant 2 : index
    %c0_2 = arith.constant 0 : index
    %3 = vector.load %arg0[%c2, %c0_2] : memref<9x1664xf32, #tpu.memory_space<vmem>>, vector<1x1664xf32>
    %4 = arith.maximumf %2, %3 : vector<1x1664xf32>
    %c3 = arith.constant 3 : index
    %c0_3 = arith.constant 0 : index
    %5 = vector.load %arg0[%c3, %c0_3] : memref<9x1664xf32, #tpu.memory_space<vmem>>, vector<1x1664xf32>
    %6 = arith.maximumf %4, %5 : vector<1x1664xf32>
    %c4 = arith.constant 4 : index
    %c0_4 = arith.constant 0 : index
    %7 = vector.load %arg0[%c4, %c0_4] : memref<9x1664xf32, #tpu.memory_space<vmem>>, vector<1x1664xf32>
    %8 = arith.maximumf %6, %7 : vector<1x1664xf32>
    %c5 = arith.constant 5 : index
    %c0_5 = arith.constant 0 : index
    %9 = vector.load %arg0[%c5, %c0_5] : memref<9x1664xf32, #tpu.memory_space<vmem>>, vector<1x1664xf32>
    %10 = arith.maximumf %8, %9 : vector<1x1664xf32>
    %c6 = arith.constant 6 : index
    %c0_6 = arith.constant 0 : index
    %11 = vector.load %arg0[%c6, %c0_6] : memref<9x1664xf32, #tpu.memory_space<vmem>>, vector<1x1664xf32>
    %12 = arith.maximumf %10, %11 : vector<1x1664xf32>
    %c7 = arith.constant 7 : index
    %c0_7 = arith.constant 0 : index
    %13 = vector.load %arg0[%c7, %c0_7] : memref<9x1664xf32, #tpu.memory_space<vmem>>, vector<1x1664xf32>
    %14 = arith.maximumf %12, %13 : vector<1x1664xf32>
    %c8 = arith.constant 8 : index
    %c0_8 = arith.constant 0 : index
    %15 = vector.load %arg0[%c8, %c0_8] : memref<9x1664xf32, #tpu.memory_space<vmem>>, vector<1x1664xf32>
    %16 = arith.maximumf %14, %15 : vector<1x1664xf32>
    %c0_9 = arith.constant 0 : index
    %c0_10 = arith.constant 0 : index
    %17 = vector.load %arg1[%c0_9, %c0_10] : memref<1x1664xf32, #tpu.memory_space<vmem>>, vector<1x1664xf32>
    tpu.vector_store %arg1[%c0_9, %c0_10], %16 {strides = array<i32>} : memref<1x1664xf32, #tpu.memory_space<vmem>>, vector<1x1664xf32>,
    return
  }
}

module attributes {stable_mosaic.version = 11 : i64} {
  func.func @_matmul_bn_relu_kernel(%arg0: i32, %arg1: memref<112x16xbf16, #tpu.memory_space<vmem>>, %arg2: memref<16x20xbf16, #tpu.memory_space<vmem>>, %arg3: memref<1x20xf32, #tpu.memory_space<vmem>>, %arg4: memref<112x20xf32, #tpu.memory_space<vmem>>) attributes {dimension_semantics = [#tpu.dimension_semantics<parallel>], iteration_bounds = array<i64: 1>, scalar_prefetch = 0 : i64, scratch_operands = 0 : i64, tpu.core_type = #tpu.core_type<tc>, window_params = [{transform_indices = @transform_0, window_bounds = array<i64: 112, 16>}, {pipeline_mode = #tpu.pipeline_mode<synchronous>, transform_indices = @transform_1, window_bounds = array<i64: 16, 20>}, {pipeline_mode = #tpu.pipeline_mode<synchronous>, transform_indices = @transform_2, window_bounds = array<i64: 1, 20>}, {transform_indices = @transform_3, window_bounds = array<i64: 112, 20>}]} {
    %c0 = arith.constant 0 : index
    %c0_0 = arith.constant 0 : index
    %0 = vector.load %arg1[%c0, %c0_0] : memref<112x16xbf16, #tpu.memory_space<vmem>>, vector<112x16xbf16>
    %c0_1 = arith.constant 0 : index
    %c0_2 = arith.constant 0 : index
    %1 = vector.load %arg2[%c0_1, %c0_2] : memref<16x20xbf16, #tpu.memory_space<vmem>>, vector<16x20xbf16>
    %cst = arith.constant dense<0.000000e+00> : vector<112x20xf32>
    %2 = tpu.matmul %0, %1, %cst {dimension_numbers = #tpu.dot_dimension_numbers<[1], [0], [0], [1], [0, 0, 1, 1], [], []>} : vector<112x16xbf16>, vector<16x20xbf16>, vector<112x20xf32> -> vector<112x20xf32>
    %c0_3 = arith.constant 0 : index
    %c0_4 = arith.constant 0 : index
    %3 = vector.load %arg3[%c0_3, %c0_4] : memref<1x20xf32, #tpu.memory_space<vmem>>, vector<1x20xf32>
    %4 = vector.broadcast %3 : vector<1x20xf32> to vector<112x20xf32>
    %5 = arith.addf %2, %4 : vector<112x20xf32>
    %cst_5 = arith.constant 0.000000e+00 : f32
    %6 = vector.broadcast %cst_5 : f32 to vector<112x20xf32>
    %7 = arith.maximumf %5, %6 : vector<112x20xf32>
    %c0_6 = arith.constant 0 : index
    %c0_7 = arith.constant 0 : index
    %8 = vector.load %arg4[%c0_6, %c0_7] : memref<112x20xf32, #tpu.memory_space<vmem>>, vector<112x20xf32>
    tpu.vector_store %arg4[%c0_6, %c0_7], %7 {strides = array<i32>} : memref<112x20xf32, #tpu.memory_space<vmem>>, vector<112x20xf32>,
    return
  }
  func.func @transform_0(%arg0: i32) -> (i32, i32) {
    %c0_i32 = arith.constant 0 : i32
    %c0_i32_0 = arith.constant 0 : i32
    return %arg0, %c0_i32 : i32, i32
  }
  func.func @transform_1(%arg0: i32) -> (i32, i32) {
    %c0_i32 = arith.constant 0 : i32
    %c0_i32_0 = arith.constant 0 : i32
    %c0_i32_1 = arith.constant 0 : i32
    return %c0_i32, %c0_i32_0 : i32, i32
  }
  func.func @transform_2(%arg0: i32) -> (i32, i32) {
    %c0_i32 = arith.constant 0 : i32
    %c0_i32_0 = arith.constant 0 : i32
    %c0_i32_1 = arith.constant 0 : i32
    return %c0_i32, %c0_i32_0 : i32, i32
  }
  func.func @transform_3(%arg0: i32) -> (i32, i32) {
    %c0_i32 = arith.constant 0 : i32
    %c0_i32_0 = arith.constant 0 : i32
    return %arg0, %c0_i32 : i32, i32
  }
}

module attributes {stable_mosaic.version = 11 : i64} {
  func.func @_matmul_bn_relu_kernel(%arg0: i32, %arg1: memref<64x180xbf16, #tpu.memory_space<vmem>>, %arg2: memref<180x24xbf16, #tpu.memory_space<vmem>>, %arg3: memref<1x24xf32, #tpu.memory_space<vmem>>, %arg4: memref<64x24xf32, #tpu.memory_space<vmem>>) attributes {dimension_semantics = [#tpu.dimension_semantics<parallel>], iteration_bounds = array<i64: 1>, scalar_prefetch = 0 : i64, scratch_operands = 0 : i64, tpu.core_type = #tpu.core_type<tc>, window_params = [{transform_indices = @transform_0, window_bounds = array<i64: 64, 180>}, {pipeline_mode = #tpu.pipeline_mode<synchronous>, transform_indices = @transform_1, window_bounds = array<i64: 180, 24>}, {pipeline_mode = #tpu.pipeline_mode<synchronous>, transform_indices = @transform_2, window_bounds = array<i64: 1, 24>}, {transform_indices = @transform_3, window_bounds = array<i64: 64, 24>}]} {
    %c0 = arith.constant 0 : index
    %c0_0 = arith.constant 0 : index
    %0 = vector.load %arg1[%c0, %c0_0] : memref<64x180xbf16, #tpu.memory_space<vmem>>, vector<64x180xbf16>
    %c0_1 = arith.constant 0 : index
    %c0_2 = arith.constant 0 : index
    %1 = vector.load %arg2[%c0_1, %c0_2] : memref<180x24xbf16, #tpu.memory_space<vmem>>, vector<180x24xbf16>
    %cst = arith.constant dense<0.000000e+00> : vector<64x24xf32>
    %2 = tpu.matmul %0, %1, %cst {dimension_numbers = #tpu.dot_dimension_numbers<[1], [0], [0], [1], [0, 0, 1, 1], [], []>} : vector<64x180xbf16>, vector<180x24xbf16>, vector<64x24xf32> -> vector<64x24xf32>
    %c0_3 = arith.constant 0 : index
    %c0_4 = arith.constant 0 : index
    %3 = vector.load %arg3[%c0_3, %c0_4] : memref<1x24xf32, #tpu.memory_space<vmem>>, vector<1x24xf32>
    %4 = vector.broadcast %3 : vector<1x24xf32> to vector<64x24xf32>
    %5 = arith.addf %2, %4 : vector<64x24xf32>
    %cst_5 = arith.constant 0.000000e+00 : f32
    %6 = vector.broadcast %cst_5 : f32 to vector<64x24xf32>
    %7 = arith.maximumf %5, %6 : vector<64x24xf32>
    %c0_6 = arith.constant 0 : index
    %c0_7 = arith.constant 0 : index
    %8 = vector.load %arg4[%c0_6, %c0_7] : memref<64x24xf32, #tpu.memory_space<vmem>>, vector<64x24xf32>
    tpu.vector_store %arg4[%c0_6, %c0_7], %7 {strides = array<i32>} : memref<64x24xf32, #tpu.memory_space<vmem>>, vector<64x24xf32>,
    return
  }
  func.func @transform_0(%arg0: i32) -> (i32, i32) {
    %c0_i32 = arith.constant 0 : i32
    %c0_i32_0 = arith.constant 0 : i32
    return %arg0, %c0_i32 : i32, i32
  }
  func.func @transform_1(%arg0: i32) -> (i32, i32) {
    %c0_i32 = arith.constant 0 : i32
    %c0_i32_0 = arith.constant 0 : i32
    %c0_i32_1 = arith.constant 0 : i32
    return %c0_i32, %c0_i32_0 : i32, i32
  }
  func.func @transform_2(%arg0: i32) -> (i32, i32) {
    %c0_i32 = arith.constant 0 : i32
    %c0_i32_0 = arith.constant 0 : i32
    %c0_i32_1 = arith.constant 0 : i32
    return %c0_i32, %c0_i32_0 : i32, i32
  }
  func.func @transform_3(%arg0: i32) -> (i32, i32) {
    %c0_i32 = arith.constant 0 : i32
    %c0_i32_0 = arith.constant 0 : i32
    return %arg0, %c0_i32 : i32, i32
  }
}

module attributes {stable_mosaic.version = 11 : i64} {
  func.func @_matmul_bn_relu_kernel(%arg0: i32, %arg1: memref<16x216xbf16, #tpu.memory_space<vmem>>, %arg2: memref<216x32xbf16, #tpu.memory_space<vmem>>, %arg3: memref<1x32xf32, #tpu.memory_space<vmem>>, %arg4: memref<16x32xf32, #tpu.memory_space<vmem>>) attributes {dimension_semantics = [#tpu.dimension_semantics<parallel>], iteration_bounds = array<i64: 1>, scalar_prefetch = 0 : i64, scratch_operands = 0 : i64, tpu.core_type = #tpu.core_type<tc>, window_params = [{transform_indices = @transform_0, window_bounds = array<i64: 16, 216>}, {pipeline_mode = #tpu.pipeline_mode<synchronous>, transform_indices = @transform_1, window_bounds = array<i64: 216, 32>}, {pipeline_mode = #tpu.pipeline_mode<synchronous>, transform_indices = @transform_2, window_bounds = array<i64: 1, 32>}, {transform_indices = @transform_3, window_bounds = array<i64: 16, 32>}]} {
    %c0 = arith.constant 0 : index
    %c0_0 = arith.constant 0 : index
    %0 = vector.load %arg1[%c0, %c0_0] : memref<16x216xbf16, #tpu.memory_space<vmem>>, vector<16x216xbf16>
    %c0_1 = arith.constant 0 : index
    %c0_2 = arith.constant 0 : index
    %1 = vector.load %arg2[%c0_1, %c0_2] : memref<216x32xbf16, #tpu.memory_space<vmem>>, vector<216x32xbf16>
    %cst = arith.constant dense<0.000000e+00> : vector<16x32xf32>
    %2 = tpu.matmul %0, %1, %cst {dimension_numbers = #tpu.dot_dimension_numbers<[1], [0], [0], [1], [0, 0, 1, 1], [], []>} : vector<16x216xbf16>, vector<216x32xbf16>, vector<16x32xf32> -> vector<16x32xf32>
    %c0_3 = arith.constant 0 : index
    %c0_4 = arith.constant 0 : index
    %3 = vector.load %arg3[%c0_3, %c0_4] : memref<1x32xf32, #tpu.memory_space<vmem>>, vector<1x32xf32>
    %4 = vector.broadcast %3 : vector<1x32xf32> to vector<16x32xf32>
    %5 = arith.addf %2, %4 : vector<16x32xf32>
    %cst_5 = arith.constant 0.000000e+00 : f32
    %6 = vector.broadcast %cst_5 : f32 to vector<16x32xf32>
    %7 = arith.maximumf %5, %6 : vector<16x32xf32>
    %c0_6 = arith.constant 0 : index
    %c0_7 = arith.constant 0 : index
    %8 = vector.load %arg4[%c0_6, %c0_7] : memref<16x32xf32, #tpu.memory_space<vmem>>, vector<16x32xf32>
    tpu.vector_store %arg4[%c0_6, %c0_7], %7 {strides = array<i32>} : memref<16x32xf32, #tpu.memory_space<vmem>>, vector<16x32xf32>,
    return
  }
  func.func @transform_0(%arg0: i32) -> (i32, i32) {
    %c0_i32 = arith.constant 0 : i32
    %c0_i32_0 = arith.constant 0 : i32
    return %arg0, %c0_i32 : i32, i32
  }
  func.func @transform_1(%arg0: i32) -> (i32, i32) {
    %c0_i32 = arith.constant 0 : i32
    %c0_i32_0 = arith.constant 0 : i32
    %c0_i32_1 = arith.constant 0 : i32
    return %c0_i32, %c0_i32_0 : i32, i32
  }
  func.func @transform_2(%arg0: i32) -> (i32, i32) {
    %c0_i32 = arith.constant 0 : i32
    %c0_i32_0 = arith.constant 0 : i32
    %c0_i32_1 = arith.constant 0 : i32
    return %c0_i32, %c0_i32_0 : i32, i32
  }
  func.func @transform_3(%arg0: i32) -> (i32, i32) {
    %c0_i32 = arith.constant 0 : i32
    %c0_i32_0 = arith.constant 0 : i32
    return %arg0, %c0_i32 : i32, i32
  }
}

module attributes {stable_mosaic.version = 11 : i64} {
  func.func @_matmul_bn_relu_kernel(%arg0: i32, %arg1: memref<16x32xbf16, #tpu.memory_space<vmem>>, %arg2: memref<32x24xbf16, #tpu.memory_space<vmem>>, %arg3: memref<1x24xf32, #tpu.memory_space<vmem>>, %arg4: memref<16x24xf32, #tpu.memory_space<vmem>>) attributes {dimension_semantics = [#tpu.dimension_semantics<parallel>], iteration_bounds = array<i64: 1>, scalar_prefetch = 0 : i64, scratch_operands = 0 : i64, tpu.core_type = #tpu.core_type<tc>, window_params = [{transform_indices = @transform_0, window_bounds = array<i64: 16, 32>}, {pipeline_mode = #tpu.pipeline_mode<synchronous>, transform_indices = @transform_1, window_bounds = array<i64: 32, 24>}, {pipeline_mode = #tpu.pipeline_mode<synchronous>, transform_indices = @transform_2, window_bounds = array<i64: 1, 24>}, {transform_indices = @transform_3, window_bounds = array<i64: 16, 24>}]} {
    %c0 = arith.constant 0 : index
    %c0_0 = arith.constant 0 : index
    %0 = vector.load %arg1[%c0, %c0_0] : memref<16x32xbf16, #tpu.memory_space<vmem>>, vector<16x32xbf16>
    %c0_1 = arith.constant 0 : index
    %c0_2 = arith.constant 0 : index
    %1 = vector.load %arg2[%c0_1, %c0_2] : memref<32x24xbf16, #tpu.memory_space<vmem>>, vector<32x24xbf16>
    %cst = arith.constant dense<0.000000e+00> : vector<16x24xf32>
    %2 = tpu.matmul %0, %1, %cst {dimension_numbers = #tpu.dot_dimension_numbers<[1], [0], [0], [1], [0, 0, 1, 1], [], []>} : vector<16x32xbf16>, vector<32x24xbf16>, vector<16x24xf32> -> vector<16x24xf32>
    %c0_3 = arith.constant 0 : index
    %c0_4 = arith.constant 0 : index
    %3 = vector.load %arg3[%c0_3, %c0_4] : memref<1x24xf32, #tpu.memory_space<vmem>>, vector<1x24xf32>
    %4 = vector.broadcast %3 : vector<1x24xf32> to vector<16x24xf32>
    %5 = arith.addf %2, %4 : vector<16x24xf32>
    %cst_5 = arith.constant 0.000000e+00 : f32
    %6 = vector.broadcast %cst_5 : f32 to vector<16x24xf32>
    %7 = arith.maximumf %5, %6 : vector<16x24xf32>
    %c0_6 = arith.constant 0 : index
    %c0_7 = arith.constant 0 : index
    %8 = vector.load %arg4[%c0_6, %c0_7] : memref<16x24xf32, #tpu.memory_space<vmem>>, vector<16x24xf32>
    tpu.vector_store %arg4[%c0_6, %c0_7], %7 {strides = array<i32>} : memref<16x24xf32, #tpu.memory_space<vmem>>, vector<16x24xf32>,
    return
  }
  func.func @transform_0(%arg0: i32) -> (i32, i32) {
    %c0_i32 = arith.constant 0 : i32
    %c0_i32_0 = arith.constant 0 : i32
    return %arg0, %c0_i32 : i32, i32
  }
  func.func @transform_1(%arg0: i32) -> (i32, i32) {
    %c0_i32 = arith.constant 0 : i32
    %c0_i32_0 = arith.constant 0 : i32
    %c0_i32_1 = arith.constant 0 : i32
    return %c0_i32, %c0_i32_0 : i32, i32
  }
  func.func @transform_2(%arg0: i32) -> (i32, i32) {
    %c0_i32 = arith.constant 0 : i32
    %c0_i32_0 = arith.constant 0 : i32
    %c0_i32_1 = arith.constant 0 : i32
    return %c0_i32, %c0_i32_0 : i32, i32
  }
  func.func @transform_3(%arg0: i32) -> (i32, i32) {
    %c0_i32 = arith.constant 0 : i32
    %c0_i32_0 = arith.constant 0 : i32
    return %arg0, %c0_i32 : i32, i32
  }
}

module attributes {stable_mosaic.version = 11 : i64} {
  func.func @_matmul_residual_relu_kernel(%arg0: i32, %arg1: memref<16x24xbf16, #tpu.memory_space<vmem>>, %arg2: memref<24x32xbf16, #tpu.memory_space<vmem>>, %arg3: memref<1x32xf32, #tpu.memory_space<vmem>>, %arg4: memref<16x32xf32, #tpu.memory_space<vmem>>, %arg5: memref<16x32xf32, #tpu.memory_space<vmem>>) attributes {dimension_semantics = [#tpu.dimension_semantics<parallel>], iteration_bounds = array<i64: 1>, scalar_prefetch = 0 : i64, scratch_operands = 0 : i64, tpu.core_type = #tpu.core_type<tc>, window_params = [{transform_indices = @transform_0, window_bounds = array<i64: 16, 24>}, {pipeline_mode = #tpu.pipeline_mode<synchronous>, transform_indices = @transform_1, window_bounds = array<i64: 24, 32>}, {pipeline_mode = #tpu.pipeline_mode<synchronous>, transform_indices = @transform_2, window_bounds = array<i64: 1, 32>}, {transform_indices = @transform_3, window_bounds = array<i64: 16, 32>}, {transform_indices = @transform_4, window_bounds = array<i64: 16, 32>}]} {
    %c0 = arith.constant 0 : index
    %c0_0 = arith.constant 0 : index
    %0 = vector.load %arg1[%c0, %c0_0] : memref<16x24xbf16, #tpu.memory_space<vmem>>, vector<16x24xbf16>
    %c0_1 = arith.constant 0 : index
    %c0_2 = arith.constant 0 : index
    %1 = vector.load %arg2[%c0_1, %c0_2] : memref<24x32xbf16, #tpu.memory_space<vmem>>, vector<24x32xbf16>
    %cst = arith.constant dense<0.000000e+00> : vector<16x32xf32>
    %2 = tpu.matmul %0, %1, %cst {dimension_numbers = #tpu.dot_dimension_numbers<[1], [0], [0], [1], [0, 0, 1, 1], [], []>} : vector<16x24xbf16>, vector<24x32xbf16>, vector<16x32xf32> -> vector<16x32xf32>
    %c0_3 = arith.constant 0 : index
    %c0_4 = arith.constant 0 : index
    %3 = vector.load %arg3[%c0_3, %c0_4] : memref<1x32xf32, #tpu.memory_space<vmem>>, vector<1x32xf32>
    %4 = vector.broadcast %3 : vector<1x32xf32> to vector<16x32xf32>
    %5 = arith.addf %2, %4 : vector<16x32xf32>
    %c0_5 = arith.constant 0 : index
    %c0_6 = arith.constant 0 : index
    %6 = vector.load %arg4[%c0_5, %c0_6] : memref<16x32xf32, #tpu.memory_space<vmem>>, vector<16x32xf32>
    %cst_7 = arith.constant 1.700000e-01 : f32
    %7 = vector.broadcast %cst_7 : f32 to vector<16x32xf32>
    %8 = arith.mulf %7, %5 : vector<16x32xf32>
    %9 = arith.addf %6, %8 : vector<16x32xf32>
    %cst_8 = arith.constant 0.000000e+00 : f32
    %10 = vector.broadcast %cst_8 : f32 to vector<16x32xf32>
    %11 = arith.maximumf %9, %10 : vector<16x32xf32>
    %c0_9 = arith.constant 0 : index
    %c0_10 = arith.constant 0 : index
    %12 = vector.load %arg5[%c0_9, %c0_10] : memref<16x32xf32, #tpu.memory_space<vmem>>, vector<16x32xf32>
    tpu.vector_store %arg5[%c0_9, %c0_10], %11 {strides = array<i32>} : memref<16x32xf32, #tpu.memory_space<vmem>>, vector<16x32xf32>,
    return
  }
  func.func @transform_0(%arg0: i32) -> (i32, i32) {
    %c0_i32 = arith.constant 0 : i32
    %c0_i32_0 = arith.constant 0 : i32
    return %arg0, %c0_i32 : i32, i32
  }
  func.func @transform_1(%arg0: i32) -> (i32, i32) {
    %c0_i32 = arith.constant 0 : i32
    %c0_i32_0 = arith.constant 0 : i32
    %c0_i32_1 = arith.constant 0 : i32
    return %c0_i32, %c0_i32_0 : i32, i32
  }
  func.func @transform_2(%arg0: i32) -> (i32, i32) {
    %c0_i32 = arith.constant 0 : i32
    %c0_i32_0 = arith.constant 0 : i32
    %c0_i32_1 = arith.constant 0 : i32
    return %c0_i32, %c0_i32_0 : i32, i32
  }
  func.func @transform_3(%arg0: i32) -> (i32, i32) {
    %c0_i32 = arith.constant 0 : i32
    %c0_i32_0 = arith.constant 0 : i32
    return %arg0, %c0_i32 : i32, i32
  }
  func.func @transform_4(%arg0: i32) -> (i32, i32) {
    %c0_i32 = arith.constant 0 : i32
    %c0_i32_0 = arith.constant 0 : i32
    return %arg0, %c0_i32 : i32, i32
  }
}

module attributes {stable_mosaic.version = 11 : i64} {
  func.func @_gap_head_kernel(%arg0: memref<2x4x32xf32, #tpu.memory_space<vmem>>, %arg1: memref<32x24xf32, #tpu.memory_space<vmem>>, %arg2: memref<1x24xf32, #tpu.memory_space<vmem>>, %arg3: memref<1x24xf32, #tpu.memory_space<vmem>>, %arg4: memref<1x24xf32, #tpu.memory_space<vmem>>, %arg5: memref<1x24xf32, #tpu.memory_space<vmem>>, %arg6: memref<2x24xf32, #tpu.memory_space<vmem>>) attributes {dimension_semantics = [], scalar_prefetch = 0 : i64, scratch_operands = 0 : i64, tpu.core_type = #tpu.core_type<tc>} {
    %c0 = arith.constant 0 : index
    %c0_0 = arith.constant 0 : index
    %c0_1 = arith.constant 0 : index
    %0 = vector.load %arg0[%c0, %c0_0, %c0_1] : memref<2x4x32xf32, #tpu.memory_space<vmem>>, vector<2x1x32xf32>
    %1 = vector.shape_cast %0 : vector<2x1x32xf32> to vector<2x32xf32>
    %c0_2 = arith.constant 0 : index
    %c1 = arith.constant 1 : index
    %c0_3 = arith.constant 0 : index
    %2 = vector.load %arg0[%c0_2, %c1, %c0_3] : memref<2x4x32xf32, #tpu.memory_space<vmem>>, vector<2x1x32xf32>
    %3 = vector.shape_cast %2 : vector<2x1x32xf32> to vector<2x32xf32>
    %4 = arith.addf %1, %3 : vector<2x32xf32>
    %c0_4 = arith.constant 0 : index
    %c2 = arith.constant 2 : index
    %c0_5 = arith.constant 0 : index
    %5 = vector.load %arg0[%c0_4, %c2, %c0_5] : memref<2x4x32xf32, #tpu.memory_space<vmem>>, vector<2x1x32xf32>
    %6 = vector.shape_cast %5 : vector<2x1x32xf32> to vector<2x32xf32>
    %7 = arith.addf %4, %6 : vector<2x32xf32>
    %c0_6 = arith.constant 0 : index
    %c3 = arith.constant 3 : index
    %c0_7 = arith.constant 0 : index
    %8 = vector.load %arg0[%c0_6, %c3, %c0_7] : memref<2x4x32xf32, #tpu.memory_space<vmem>>, vector<2x1x32xf32>
    %9 = vector.shape_cast %8 : vector<2x1x32xf32> to vector<2x32xf32>
    %10 = arith.addf %7, %9 : vector<2x32xf32>
    %cst = arith.constant 2.500000e-01 : f32
    %11 = vector.broadcast %cst : f32 to vector<2x32xf32>
    %12 = arith.mulf %10, %11 : vector<2x32xf32>
    %c0_8 = arith.constant 0 : index
    %c0_9 = arith.constant 0 : index
    %13 = vector.load %arg1[%c0_8, %c0_9] : memref<32x24xf32, #tpu.memory_space<vmem>>, vector<32x24xf32>
    %cst_10 = arith.constant dense<0.000000e+00> : vector<2x24xf32>
    %14 = tpu.matmul %12, %13, %cst_10 {dimension_numbers = #tpu.dot_dimension_numbers<[1], [0], [0], [1], [0, 0, 1, 1], [], []>} : vector<2x32xf32>, vector<32x24xf32>, vector<2x24xf32> -> vector<2x24xf32>
    %c0_11 = arith.constant 0 : index
    %c0_12 = arith.constant 0 : index
    %15 = vector.load %arg2[%c0_11, %c0_12] : memref<1x24xf32, #tpu.memory_space<vmem>>, vector<1x24xf32>
    %c0_13 = arith.constant 0 : index
    %c0_14 = arith.constant 0 : index
    %16 = vector.load %arg5[%c0_13, %c0_14] : memref<1x24xf32, #tpu.memory_space<vmem>>, vector<1x24xf32>
    %cst_15 = arith.constant 1.000000e-03 : f32
    %17 = vector.broadcast %cst_15 : f32 to vector<1x24xf32>
    %18 = arith.addf %16, %17 : vector<1x24xf32>
    %19 = math.rsqrt %18 : vector<1x24xf32>
    %20 = arith.mulf %15, %19 : vector<1x24xf32>
    %c0_16 = arith.constant 0 : index
    %c0_17 = arith.constant 0 : index
    %21 = vector.load %arg4[%c0_16, %c0_17] : memref<1x24xf32, #tpu.memory_space<vmem>>, vector<1x24xf32>
    %22 = vector.broadcast %21 : vector<1x24xf32> to vector<2x24xf32>
    %23 = arith.subf %14, %22 : vector<2x24xf32>
    %24 = vector.broadcast %20 : vector<1x24xf32> to vector<2x24xf32>
    %25 = arith.mulf %23, %24 : vector<2x24xf32>
    %c0_18 = arith.constant 0 : index
    %c0_19 = arith.constant 0 : index
    %26 = vector.load %arg3[%c0_18, %c0_19] : memref<1x24xf32, #tpu.memory_space<vmem>>, vector<1x24xf32>
    %27 = vector.broadcast %26 : vector<1x24xf32> to vector<2x24xf32>
    %28 = arith.addf %25, %27 : vector<2x24xf32>
    %29 = arith.mulf %28, %28 : vector<2x24xf32>
    %cst_20 = arith.constant dense<0.000000e+00> : vector<2xf32>
    %30 = vector.multi_reduction <add>, %29, %cst_20 [1] : vector<2x24xf32> to vector<2xf32>
    %31 = vector.shape_cast %30 : vector<2xf32> to vector<2x1xf32>
    %32 = math.sqrt %31 : vector<2x1xf32>
    %cst_21 = arith.constant 9.99999996E-13 : f32
    %33 = vector.broadcast %cst_21 : f32 to vector<2x1xf32>
    %34 = arith.maximumf %32, %33 : vector<2x1xf32>
    %35 = vector.broadcast %34 : vector<2x1xf32> to vector<2x24xf32>
    %36 = arith.divf %28, %35 : vector<2x24xf32>
    %c0_22 = arith.constant 0 : index
    %c0_23 = arith.constant 0 : index
    %37 = vector.load %arg6[%c0_22, %c0_23] : memref<2x24xf32, #tpu.memory_space<vmem>>, vector<2x24xf32>
    tpu.vector_store %arg6[%c0_22, %c0_23], %36 {strides = array<i32>} : memref<2x24xf32, #tpu.memory_space<vmem>>, vector<2x24xf32>,
    return
  }
}

module attributes {stable_mosaic.version = 11 : i64} {
  func.func @_matmul_bn_relu_kernel(%arg0: i32, %arg1: memref<16x72xbf16, #tpu.memory_space<vmem>>, %arg2: memref<72x8xbf16, #tpu.memory_space<vmem>>, %arg3: memref<1x8xf32, #tpu.memory_space<vmem>>, %arg4: memref<16x8xf32, #tpu.memory_space<vmem>>) attributes {dimension_semantics = [#tpu.dimension_semantics<parallel>], iteration_bounds = array<i64: 1>, scalar_prefetch = 0 : i64, scratch_operands = 0 : i64, tpu.core_type = #tpu.core_type<tc>, window_params = [{transform_indices = @transform_0, window_bounds = array<i64: 16, 72>}, {pipeline_mode = #tpu.pipeline_mode<synchronous>, transform_indices = @transform_1, window_bounds = array<i64: 72, 8>}, {pipeline_mode = #tpu.pipeline_mode<synchronous>, transform_indices = @transform_2, window_bounds = array<i64: 1, 8>}, {transform_indices = @transform_3, window_bounds = array<i64: 16, 8>}]} {
    %c0 = arith.constant 0 : index
    %c0_0 = arith.constant 0 : index
    %0 = vector.load %arg1[%c0, %c0_0] : memref<16x72xbf16, #tpu.memory_space<vmem>>, vector<16x72xbf16>
    %c0_1 = arith.constant 0 : index
    %c0_2 = arith.constant 0 : index
    %1 = vector.load %arg2[%c0_1, %c0_2] : memref<72x8xbf16, #tpu.memory_space<vmem>>, vector<72x8xbf16>
    %cst = arith.constant dense<0.000000e+00> : vector<16x8xf32>
    %2 = tpu.matmul %0, %1, %cst {dimension_numbers = #tpu.dot_dimension_numbers<[1], [0], [0], [1], [0, 0, 1, 1], [], []>} : vector<16x72xbf16>, vector<72x8xbf16>, vector<16x8xf32> -> vector<16x8xf32>
    %c0_3 = arith.constant 0 : index
    %c0_4 = arith.constant 0 : index
    %3 = vector.load %arg3[%c0_3, %c0_4] : memref<1x8xf32, #tpu.memory_space<vmem>>, vector<1x8xf32>
    %4 = vector.broadcast %3 : vector<1x8xf32> to vector<16x8xf32>
    %5 = arith.addf %2, %4 : vector<16x8xf32>
    %cst_5 = arith.constant 0.000000e+00 : f32
    %6 = vector.broadcast %cst_5 : f32 to vector<16x8xf32>
    %7 = arith.maximumf %5, %6 : vector<16x8xf32>
    %c0_6 = arith.constant 0 : index
    %c0_7 = arith.constant 0 : index
    %8 = vector.load %arg4[%c0_6, %c0_7] : memref<16x8xf32, #tpu.memory_space<vmem>>, vector<16x8xf32>
    tpu.vector_store %arg4[%c0_6, %c0_7], %7 {strides = array<i32>} : memref<16x8xf32, #tpu.memory_space<vmem>>, vector<16x8xf32>,
    return
  }
  func.func @transform_0(%arg0: i32) -> (i32, i32) {
    %c0_i32 = arith.constant 0 : i32
    %c0_i32_0 = arith.constant 0 : i32
    return %arg0, %c0_i32 : i32, i32
  }
  func.func @transform_1(%arg0: i32) -> (i32, i32) {
    %c0_i32 = arith.constant 0 : i32
    %c0_i32_0 = arith.constant 0 : i32
    %c0_i32_1 = arith.constant 0 : i32
    return %c0_i32, %c0_i32_0 : i32, i32
  }
  func.func @transform_2(%arg0: i32) -> (i32, i32) {
    %c0_i32 = arith.constant 0 : i32
    %c0_i32_0 = arith.constant 0 : i32
    %c0_i32_1 = arith.constant 0 : i32
    return %c0_i32, %c0_i32_0 : i32, i32
  }
  func.func @transform_3(%arg0: i32) -> (i32, i32) {
    %c0_i32 = arith.constant 0 : i32
    %c0_i32_0 = arith.constant 0 : i32
    return %arg0, %c0_i32 : i32, i32
  }
}

</mosaic_0001>

<llo_original>
// kernel: facenet_embedder_forward.13
$region0: #{facenet_embedder_forward.13}
  #allocation0 [shape = 'u32[]', space=smem, size = 0x4, offset = 0x4, fixed_abs, tag = 'smem constant byte address 0x4 - core index']
  #allocation1 [shape = 'u32[144,128]{1,0:T(1,128)}', space=vmem, size = 0x12000, scoped, tag = 'internal scratch']
  %s0 = inlined_call_operand.vmem [shape: bf16[768,27], index: 0, kind: input, shape index: {}]
  %s1 = inlined_call_operand.vmem [shape: bf16[27,8], index: 1, kind: input, shape index: {}]
  %s2 = inlined_call_operand.vmem [shape: f32[1,8], index: 2, kind: input, shape index: {}]
  %s3 = inlined_call_operand.vmem [shape: f32[768,8], index: 3, kind: output, shape index: {}]
  %s4 = sld [smem:[#allocation0]]
  $region45: #{facenet_embedder_forward.13} parent=0
    _
  %s6 = ssub.s32 1, %s4
  %s7 = scalar_select 0, %s6, %s4
  loop: start=0, step=1, limit=5
  $region2: #{facenet_embedder_forward.13} parent=0 // loop_pre_header
    _
  $region3: #{facenet_embedder_forward.13} parent=0 // loop_header
    %s9 = sphi 0, %s13
    %p10 = scmp.ge.s32.totalorder %s9, 5
    %s19 = sphi 0, %s21
    %s22 = sphi 0, %s19
    %s23 = sphi 0, %s22
    %s39 = sphi 0, %s23
    %s43 = sphi 0, %s43
    %s45 = sphi 0, %s43
    %s46 = sphi 0, %s45
    %s60 = sphi 0, %s46
    %s64 = sphi 0, %s64
    %s66 = sphi 0, %s64
    %s67 = sphi 0, %s66
    %s81 = sphi 0, %s67
    %s87 = sphi 0, %s89
    %s90 = sphi 0, %s87
    %s91 = sphi 0, %s90
    %s107 = sphi 0, %s91
  $region4: #{facenet_embedder_forward.13} parent=0 // loop_header_branch
    %12 = sbr.rel (%p10) target = $region8
  $region5: #{facenet_embedder_forward.13} parent=0 // loop_body
    %s14 = ssub.s32 %s9, 1
    %s15 = ssub.s32 %s9, 2
    %s16 = sadd.s32 %s9, 1
    %s17 = ssub.s32 %s9, %s16
    %p18 = scmp.eq.s32.totalorder %s17, 0
    %s20 = sadd.s32 %s19, 1
    %s21 = scalar_select %p18, %s19, %s20
    %p24 = pneg %p18
    %p25 = scmp.eq.s32.totalorder %s9, 2
    %p26 = por %p24, %p25
    %p27 = scmp.ne.s32.totalorder %s19, %s22
    %p28 = scmp.eq.s32.totalorder %s9, 0
    %p29 = por %p27, %p28
    %p30 = scmp.ne.s32.totalorder %s19, %s22
    %p31 = scmp.eq.s32.totalorder %s14, 2
    %p32 = por %p30, %p31
    %p33 = scmp.ne.s32.totalorder %s22, %s23
    %p34 = scmp.eq.s32.totalorder %s14, 0
    %p35 = por %p33, %p34
    %p36 = scmp.ne.s32.totalorder %s22, %s23
    %p37 = scmp.eq.s32.totalorder %s15, 2
    %p38 = por %p36, %p37
    %p40 = scmp.ne.s32.totalorder %s23, %s39
    %p41 = scmp.eq.s32.totalorder %s15, 0
    %p42 = por %p40, %p41
    %s44 = sadd.s32 %s43, 1
    %p47 = scmp.eq.s32.totalorder %s9, 2
    %p48 = scmp.ne.s32.totalorder %s43, %s45
    %p49 = scmp.eq.s32.totalorder %s9, 0
    %p50 = por %p48, %p49
    %p51 = scmp.ne.s32.totalorder %s43, %s45
    %p52 = scmp.eq.s32.totalorder %s14, 2
    %p53 = por %p51, %p52
    %p54 = scmp.ne.s32.totalorder %s45, %s46
    %p55 = scmp.eq.s32.totalorder %s14, 0
    %p56 = por %p54, %p55
    %p57 = scmp.ne.s32.totalorder %s45, %s46
    %p58 = scmp.eq.s32.totalorder %s15, 2
    %p59 = por %p57, %p58
    %p61 = scmp.ne.s32.totalorder %s46, %s60
    %p62 = scmp.eq.s32.totalorder %s15, 0
    %p63 = por %p61, %p62
    %s65 = sadd.s32 %s64, 1
    %p68 = scmp.eq.s32.totalorder %s9, 2
    %p69 = scmp.ne.s32.totalorder %s64, %s66
    %p70 = scmp.eq.s32.totalorder %s9, 0
    %p71 = por %p69, %p70
    %p72 = scmp.ne.s32.totalorder %s64, %s66
    %p73 = scmp.eq.s32.totalorder %s14, 2
    %p74 = por %p72, %p73
    %p75 = scmp.ne.s32.totalorder %s66, %s67
    %p76 = scmp.eq.s32.totalorder %s14, 0
    %p77 = por %p75, %p76
    %p78 = scmp.ne.s32.totalorder %s66, %s67
    %p79 = scmp.eq.s32.totalorder %s15, 2
    %p80 = por %p78, %p79
    %p82 = scmp.ne.s32.totalorder %s67, %s81
    %p83 = scmp.eq.s32.totalorder %s15, 0
    %p84 = por %p82, %p83
    %s85 = ssub.s32 %s9, %s16
    %p86 = scmp.eq.s32.totalorder %s85, 0
    %s88 = sadd.s32 %s87, 1
    %s89 = scalar_select %p86, %s87, %s88
    %p92 = pneg %p86
    %p93 = scmp.eq.s32.totalorder %s9, 2
    %p94 = por %p92, %p93
    %p95 = scmp.ne.s32.totalorder %s87, %s90
    %p96 = scmp.eq.s32.totalorder %s9, 0
    %p97 = por %p95, %p96
    %p98 = scmp.ne.s32.totalorder %s87, %s90
    %p99 = scmp.eq.s32.totalorder %s14, 2
    %p100 = por %p98, %p99
    %p101 = scmp.ne.s32.totalorder %s90, %s91
    %p102 = scmp.eq.s32.totalorder %s14, 0
    %p103 = por %p101, %p102
    %p104 = scmp.ne.s32.totalorder %s90, %s91
    %p105 = scmp.eq.s32.totalorder %s15, 2
    %p106 = por %p104, %p105
    %p108 = scmp.ne.s32.totalorder %s91, %s107
    %p109 = scmp.eq.s32.totalorder %s15, 0
    %p110 = por %p108, %p109
    %p111 = scmp.le.s32.totalorder 1, %s9
    %p112 = scmp.lt.s32.totalorder %s9, 4
    %p113 = pnand %p111, %p112
    %p114 = pneg %p113
    // Predicated region
    $region9: #{facenet_embedder_forward.13} parent=5 // pred_check
      _
    $region10: #{facenet_embedder_forward.13} parent=5 // pred_check_branch
      %116 = sbr.rel (%p113) target = $region12
    $region11: #{facenet_embedder_forward.13} parent=5 // pred_region
      %s117 = ssub.s32 %s9, 1
      // Predicated region
      $region13: #{facenet_embedder_forward.13} parent=11 // pred_check
        %p118 = pneg %p56
      $region14: #{facenet_embedder_forward.13} parent=11 // pred_check_branch
        %120 = sbr.rel (%p118) target = $region16
      $region15: #{facenet_embedder_forward.13} parent=11 // pred_region
        _
      $region16: #{facenet_embedder_forward.13} parent=11 // pred_fallthru
        _
      // Predicated region
      $region17: #{facenet_embedder_forward.13} parent=11 // pred_check
        %p121 = pneg %p77
      $region18: #{facenet_embedder_forward.13} parent=11 // pred_check_branch
        %123 = sbr.rel (%p121) target = $region20
      $region19: #{facenet_embedder_forward.13} parent=11 // pred_region
        _
      $region20: #{facenet_embedder_forward.13} parent=11 // pred_fallthru
        _
    $region12: #{facenet_embedder_forward.13} parent=5 // pred_fallthru
      _
    %p124 = scmp.lt.s32.totalorder %s9, 3
    // Predicated region
    $region21: #{facenet_embedder_forward.13} parent=5 // pred_check
      %p125 = pneg %p124
    $region22: #{facenet_embedder_forward.13} parent=5 // pred_check_branch
      %127 = sbr.rel (%p125) target = $region24
    $region23: #{facenet_embedder_forward.13} parent=5 // pred_region
      // Predicated region
      $region25: #{facenet_embedder_forward.13} parent=23 // pred_check
        %p128 = pneg %p29
      $region26: #{facenet_embedder_forward.13} parent=23 // pred_check_branch
        %130 = sbr.rel (%p128) target = $region28
      $region27: #{facenet_embedder_forward.13} parent=23 // pred_region
        %s131 = smul.u32 32, %s9
        %p132 = scmp.lt.s32.totalorder %s131, 95
        %s133 = scalar_select %p132, %s131, 95
        %s134 = smul.addr %s133, 4
        %s135 = scalar_lea.vmem %s0, %s134
        %s136 = smul.u32 32, %s9
      $region28: #{facenet_embedder_forward.13} parent=23 // pred_fallthru
        _
    $region24: #{facenet_embedder_forward.13} parent=5 // pred_fallthru
      _
    %p137 = scmp.le.s32.totalorder 1, %s9
    %p138 = scmp.lt.s32.totalorder %s9, 4
    %p139 = pnand %p137, %p138
    %p140 = pneg %p139
    // Predicated region
    $region29: #{facenet_embedder_forward.13} parent=5 // pred_check
      _
    $region30: #{facenet_embedder_forward.13} parent=5 // pred_check_branch
      %142 = sbr.rel (%p139) target = $region32
    $region31: #{facenet_embedder_forward.13} parent=5 // pred_region
      %s143 = ssub.s32 %s9, 1
      %s144 = smul.u32 32, %s14
      %p145 = scmp.lt.s32.totalorder %s144, 95
      %s146 = scalar_select %p145, %s144, 95
      %s147 = smul.addr %s146, 4
      %s148 = scalar_lea.vmem %s0, %s147
      %p149 = pneg %p35
      %p150 = pneg %p32
      %p151 = pneg %p56
      %p152 = pneg %p53
      %p153 = pneg %p77
      %p154 = pneg %p74
      %p155 = pneg %p103
      %p156 = pneg %p100
      %s157 = smul.u32 32, %s14
      %p158 = scmp.lt.s32.totalorder %s157, 95
      %s159 = scalar_select %p158, %s157, 95
      %s160 = smul.addr %s159, 8
      %s161 = scalar_lea.vmem %s3, %s160
      %s162 = smul.u32 32, %s14
      %p163 = scmp.lt.s32.totalorder %s162, 95
      %s164 = scalar_select %p163, %s162, 95
      %s165 = smul.addr %s164, 4
      %s166 = scalar_lea.vmem %s0, %s165
      %s167 = smul.u32 32, %s14
      %s168 = smul.u32 32, %s14
      %p169 = scmp.lt.s32.totalorder %s168, 95
      %s170 = scalar_select %p169, %s168, 95
      %s171 = smul.addr %s170, 8
      %s172 = scalar_lea.vmem %s3, %s171
      %s173 = smul.u32 32, %s14
      %v175 = vld [vmem:[%s166] sm:$0xf]
      %v176 = vld [vmem:[%s166 + $0x4] sm:$0xf]
      %v177 = vld [vmem:[%s166 + $0x8] sm:$0xf]
      %v178 = vld [vmem:[%s166 + $0xc] sm:$0xf]
      %v179 = vld [vmem:[%s166 + $0x10] sm:$0xf]
      %v180 = vld [vmem:[%s166 + $0x14] sm:$0xf]
      %v181 = vld [vmem:[%s166 + $0x18] sm:$0xf]
      %v182 = vld [vmem:[%s166 + $0x1c] sm:$0xf]
      %v183 = vld [vmem:[%s166 + $0x20] sm:$0xf]
      %v184 = vld [vmem:[%s166 + $0x24] sm:$0xf]
      %v185 = vld [vmem:[%s166 + $0x28] sm:$0xf]
      %v186 = vld [vmem:[%s166 + $0x2c] sm:$0xf]
      %v187 = vld [vmem:[%s166 + $0x30] sm:$0xf]
      %v188 = vld [vmem:[%s166 + $0x34] sm:$0xf]
      %v189 = vld [vmem:[%s166 + $0x38] sm:$0xf]
      %v190 = vld [vmem:[%s166 + $0x3c] sm:$0xf]
      %v191 = vld [vmem:[%s166 + $0x40] sm:$0xf]
      %v192 = vld [vmem:[%s166 + $0x44] sm:$0xf]
      %v193 = vld [vmem:[%s166 + $0x48] sm:$0xf]
      %v194 = vld [vmem:[%s166 + $0x4c] sm:$0xf]
      %v195 = vld [vmem:[%s166 + $0x50] sm:$0xf]
      %v196 = vld [vmem:[%s166 + $0x54] sm:$0xf]
      %v197 = vld [vmem:[%s166 + $0x58] sm:$0xf]
      %v198 = vld [vmem:[%s166 + $0x5c] sm:$0xf]
      %v199 = vld [vmem:[%s166 + $0x60] sm:$0xf]
      %v200 = vld [vmem:[%s166 + $0x64] sm:$0xf]
      %v201 = vld [vmem:[%s166 + $0x68] sm:$0xf]
      %v202 = vld [vmem:[%s166 + $0x6c] sm:$0xf]
      %v203 = vld [vmem:[%s166 + $0x70] sm:$0xf]
      %v204 = vld [vmem:[%s166 + $0x74] sm:$0xf]
      %v205 = vld [vmem:[%s166 + $0x78] sm:$0xf]
      %v206 = vld [vmem:[%s166 + $0x7c] sm:$0xf]
      %v207 = vld [vmem:[%s1] sm:$0xf]
      %v208 = vld [vmem:[%s1 + $0x4] sm:$0xf]
      %v209 = vld [vmem:[%s1 + $0x8] sm:$0xf]
      %v210 = vld [vmem:[%s1 + $0xc] sm:$0x3]
      %v211 = vld [vmem:[%s2] sm:$0x1]
      %v213 = vlaneseq
      %v214 = vshrl.u32 %v213, 7
      %v215 = vsub.s32 0, %v214
      %v216 = vrot.slane %v211, %v215
      %v250 = vunpack.c.l.b16 %v175
      %v251 = vunpack.c.l.b16 %v176
      %v252 = vunpack.c.l.b16 %v177
      %v253 = vunpack.c.l.b16 %v178
      %v254 = vunpack.c.l.b16 %v179
      %v255 = vunpack.c.l.b16 %v180
      %v256 = vunpack.c.l.b16 %v181
      %v257 = vunpack.c.l.b16 %v182
      %v258 = vunpack.c.l.b16 %v183
      %v259 = vunpack.c.l.b16 %v184
      %v260 = vunpack.c.l.b16 %v185
      %v261 = vunpack.c.l.b16 %v186
      %v262 = vunpack.c.l.b16 %v187
      %v263 = vunpack.c.l.b16 %v188
      %v264 = vunpack.c.l.b16 %v189
      %v265 = vunpack.c.l.b16 %v190
      %v266 = vunpack.c.l.b16 %v191
      %v267 = vunpack.c.l.b16 %v192
      %v268 = vunpack.c.l.b16 %v193
      %v269 = vunpack.c.l.b16 %v194
      %v270 = vunpack.c.l.b16 %v195
      %v271 = vunpack.c.l.b16 %v196
      %v272 = vunpack.c.l.b16 %v197
      %v273 = vunpack.c.l.b16 %v198
      %v274 = vunpack.c.l.b16 %v199
      %v275 = vunpack.c.l.b16 %v200
      %v276 = vunpack.c.l.b16 %v201
      %v277 = vunpack.c.l.b16 %v202
      %v278 = vunpack.c.l.b16 %v203
      %v279 = vunpack.c.l.b16 %v204
      %v280 = vunpack.c.l.b16 %v205
      %v281 = vunpack.c.l.b16 %v206
      %v282 = vpack.c.b16 %v251, %v250
      %v283 = vpack.c.b16 %v253, %v252
      %v284 = vpack.c.b16 %v255, %v254
      %v285 = vpack.c.b16 %v257, %v256
      %v286 = vpack.c.b16 %v259, %v258
      %v287 = vpack.c.b16 %v261, %v260
      %v288 = vpack.c.b16 %v263, %v262
      %v289 = vpack.c.b16 %v265, %v264
      %v290 = vpack.c.b16 %v267, %v266
      %v291 = vpack.c.b16 %v269, %v268
      %v292 = vpack.c.b16 %v271, %v270
      %v293 = vpack.c.b16 %v273, %v272
      %v294 = vpack.c.b16 %v275, %v274
      %v295 = vpack.c.b16 %v277, %v276
      %v296 = vpack.c.b16 %v279, %v278
      %v297 = vpack.c.b16 %v281, %v280
      %v302 = vunpack.c.l.b16 %v207
      %v303 = vunpack.c.l.b16 %v208
      %v304 = vunpack.c.l.b16 %v209
      %v305 = vunpack.c.l.b16 %v210
      %v306 = vpack.c.b16 %v303, %v302
      %v307 = vpack.c.b16 %v305, %v304
      %vm309 = vcmask 220160
      %v311 = vsel %vm309, %v282, 0
      %v314 = vsel %vm309, %v283, 0
      %v317 = vsel %vm309, %v284, 0
      %v320 = vsel %vm309, %v285, 0
      %v323 = vsel %vm309, %v286, 0
      %v326 = vsel %vm309, %v287, 0
      %v329 = vsel %vm309, %v288, 0
      %v332 = vsel %vm309, %v289, 0
      %v335 = vsel %vm309, %v290, 0
      %v338 = vsel %vm309, %v291, 0
      %v341 = vsel %vm309, %v292, 0
      %v344 = vsel %vm309, %v293, 0
      %v347 = vsel %vm309, %v294, 0
      %v350 = vsel %vm309, %v295, 0
      %v353 = vsel %vm309, %v296, 0
      %v356 = vsel %vm309, %v297, 0
      %vm358 = vcmask 1044480
      %vm359 = vcmask 1045504
      %v360 = vsel %vm358, 4294967295, 65535
      %v361 = vsel %vm359, %v360, 0
      %v363 = vand.u32 %v307, %v361
      %365 = vmatprep.subr.bf16.mxu0 0
      %366 = vmatpush1.bf16.msra.mxu0 %v306
      %367 = vmatprep.subr.bf16.mxu0 0
      %368 = vmatpush1.bf16.msra.mxu0 %v363
      %369 = vmatprep.subr.bf16.mxu0 0
      %370 = vmatpush1.bf16.msra.mxu0 0
      %371 = vmatprep.subr.bf16.mxu0 0
      %372 = vmatpush1.bf16.msra.mxu0 0
      %373 = vmatprep.subr.bf16.mxu0 0
      %374 = vmatpush1.bf16.msra.mxu0 0
      %375 = vmatprep.subr.bf16.mxu0 0
      %376 = vmatpush1.bf16.msra.mxu0 0
      %377 = vmatprep.subr.bf16.mxu0 0
      %378 = vmatpush1.bf16.msra.mxu0 0
      %379 = vmatprep.subr.bf16.mxu0 0
      %380 = vmatpush1.bf16.msra.mxu0 0
      %381 = vmatprep.subr.bf16.mxu0 0
      %382 = vmatpush1.bf16.msra.mxu0 0
      %383 = vmatprep.subr.bf16.mxu0 0
      %384 = vmatpush1.bf16.msra.mxu0 0
      %385 = vmatprep.subr.bf16.mxu0 0
      %386 = vmatpush1.bf16.msra.mxu0 0
      %387 = vmatprep.subr.bf16.mxu0 0
      %388 = vmatpush1.bf16.msra.mxu0 0
      %389 = vmatprep.subr.bf16.mxu0 0
      %390 = vmatpush1.bf16.msra.mxu0 0
      %391 = vmatprep.subr.bf16.mxu0 0
      %392 = vmatpush1.bf16.msra.mxu0 0
      %393 = vmatprep.subr.bf16.mxu0 0
      %394 = vmatpush1.bf16.msra.mxu0 0
      %395 = vmatprep.subr.bf16.mxu0 0
      %396 = vmatpush1.bf16.msra.mxu0 0
      %397 = vmatprep.mubr.bf16.mxu0 0
      %398 = vmatmul.mubr.bf16.gmra.mrb[0].mxu0 %v311
      %v399 = vpop.f32.mrb[0].mxu0
      %v400 = vadd.f32 %v216, %v399
      %v401 = vpop.f32.mrb[0].mxu0
      %v402 = vpop.f32.mrb[0].mxu0
      %v403 = vadd.f32 %v216, %v402
      %v404 = vpop.f32.mrb[0].mxu0
      %405 = vmatprep.mubr.bf16.mxu0 0
      %406 = vmatmul.mubr.bf16.gmra.mrb[0].mxu0 %v314
      %v407 = vpop.f32.mrb[0].mxu0
      %v408 = vadd.f32 %v216, %v407
      %v409 = vpop.f32.mrb[0].mxu0
      %v410 = vpop.f32.mrb[0].mxu0
      %v411 = vadd.f32 %v216, %v410
      %v412 = vpop.f32.mrb[0].mxu0
      %413 = vmatprep.mubr.bf16.mxu0 0
      %414 = vmatmul.mubr.bf16.gmra.mrb[0].mxu0 %v317
      %v415 = vpop.f32.mrb[0].mxu0
      %v416 = vadd.f32 %v216, %v415
      %v417 = vpop.f32.mrb[0].mxu0
      %v418 = vpop.f32.mrb[0].mxu0
      %v419 = vadd.f32 %v216, %v418
      %v420 = vpop.f32.mrb[0].mxu0
      %421 = vmatprep.mubr.bf16.mxu0 0
      %422 = vmatmul.mubr.bf16.gmra.mrb[0].mxu0 %v320
      %v423 = vpop.f32.mrb[0].mxu0
      %v424 = vadd.f32 %v216, %v423
      %v425 = vpop.f32.mrb[0].mxu0
      %v426 = vpop.f32.mrb[0].mxu0
      %v427 = vadd.f32 %v216, %v426
      %v428 = vpop.f32.mrb[0].mxu0
      %429 = vmatprep.mubr.bf16.mxu0 0
      %430 = vmatmul.mubr.bf16.gmra.mrb[0].mxu0 %v323
      %v431 = vpop.f32.mrb[0].mxu0
      %v432 = vadd.f32 %v216, %v431
      %v433 = vpop.f32.mrb[0].mxu0
      %v434 = vpop.f32.mrb[0].mxu0
      %v435 = vadd.f32 %v216, %v434
      %v436 = vpop.f32.mrb[0].mxu0
      %437 = vmatprep.mubr.bf16.mxu0 0
      %438 = vmatmul.mubr.bf16.gmra.mrb[0].mxu0 %v326
      %v439 = vpop.f32.mrb[0].mxu0
      %v440 = vadd.f32 %v216, %v439
      %v441 = vpop.f32.mrb[0].mxu0
      %v442 = vpop.f32.mrb[0].mxu0
      %v443 = vadd.f32 %v216, %v442
      %v444 = vpop.f32.mrb[0].mxu0
      %445 = vmatprep.mubr.bf16.mxu0 0
      %446 = vmatmul.mubr.bf16.gmra.mrb[0].mxu0 %v329
      %v447 = vpop.f32.mrb[0].mxu0
      %v448 = vadd.f32 %v216, %v447
      %v449 = vpop.f32.mrb[0].mxu0
      %v450 = vpop.f32.mrb[0].mxu0
      %v451 = vadd.f32 %v216, %v450
      %v452 = vpop.f32.mrb[0].mxu0
      %453 = vmatprep.mubr.bf16.mxu0 0
      %454 = vmatmul.mubr.bf16.gmra.mrb[0].mxu0 %v332
      %v455 = vpop.f32.mrb[0].mxu0
      %v456 = vadd.f32 %v216, %v455
      %v457 = vpop.f32.mrb[0].mxu0
      %v458 = vpop.f32.mrb[0].mxu0
      %v459 = vadd.f32 %v216, %v458
      %v460 = vpop.f32.mrb[0].mxu0
      %461 = vmatprep.mubr.bf16.mxu0 0
      %462 = vmatmul.mubr.bf16.gmra.mrb[0].mxu0 %v335
      %v463 = vpop.f32.mrb[0].mxu0
      %v464 = vadd.f32 %v216, %v463
      %v465 = vpop.f32.mrb[0].mxu0
      %v466 = vpop.f32.mrb[0].mxu0
      %v467 = vadd.f32 %v216, %v466
      %v468 = vpop.f32.mrb[0].mxu0
      %469 = vmatprep.mubr.bf16.mxu0 0
      %470 = vmatmul.mubr.bf16.gmra.mrb[0].mxu0 %v338
      %v471 = vpop.f32.mrb[0].mxu0
      %v472 = vadd.f32 %v216, %v471
      %v473 = vpop.f32.mrb[0].mxu0
      %v474 = vpop.f32.mrb[0].mxu0
      %v475 = vadd.f32 %v216, %v474
      %v476 = vpop.f32.mrb[0].mxu0
      %477 = vmatprep.mubr.bf16.mxu0 0
      %478 = vmatmul.mubr.bf16.gmra.mrb[0].mxu0 %v341
      %v479 = vpop.f32.mrb[0].mxu0
      %v480 = vadd.f32 %v216, %v479
      %v481 = vpop.f32.mrb[0].mxu0
      %v482 = vpop.f32.mrb[0].mxu0
      %v483 = vadd.f32 %v216, %v482
      %v484 = vpop.f32.mrb[0].mxu0
      %485 = vmatprep.mubr.bf16.mxu0 0
      %486 = vmatmul.mubr.bf16.gmra.mrb[0].mxu0 %v344
      %v487 = vpop.f32.mrb[0].mxu0
      %v488 = vadd.f32 %v216, %v487
      %v489 = vpop.f32.mrb[0].mxu0
      %v490 = vpop.f32.mrb[0].mxu0
      %v491 = vadd.f32 %v216, %v490
      %v492 = vpop.f32.mrb[0].mxu0
      %493 = vmatprep.mubr.bf16.mxu0 0
      %494 = vmatmul.mubr.bf16.gmra.mrb[0].mxu0 %v347
      %v495 = vpop.f32.mrb[0].mxu0
      %v496 = vadd.f32 %v216, %v495
      %v497 = vpop.f32.mrb[0].mxu0
      %v498 = vpop.f32.mrb[0].mxu0
      %v499 = vadd.f32 %v216, %v498
      %v500 = vpop.f32.mrb[0].mxu0
      %501 = vmatprep.mubr.bf16.mxu0 0
      %502 = vmatmul.mubr.bf16.gmra.mrb[0].mxu0 %v350
      %v503 = vpop.f32.mrb[0].mxu0
      %v504 = vadd.f32 %v216, %v503
      %v505 = vpop.f32.mrb[0].mxu0
      %v506 = vpop.f32.mrb[0].mxu0
      %v507 = vadd.f32 %v216, %v506
      %v508 = vpop.f32.mrb[0].mxu0
      %509 = vmatprep.mubr.bf16.mxu0 0
      %510 = vmatmul.mubr.bf16.gmra.mrb[0].mxu0 %v353
      %v511 = vpop.f32.mrb[0].mxu0
      %v512 = vadd.f32 %v216, %v511
      %v513 = vpop.f32.mrb[0].mxu0
      %v514 = vpop.f32.mrb[0].mxu0
      %v515 = vadd.f32 %v216, %v514
      %v516 = vpop.f32.mrb[0].mxu0
      %517 = vmatprep.mubr.bf16.mxu0 0
      %518 = vmatmul.mubr.bf16.gmra.mrb[0].mxu0 %v356
      %v519 = vpop.f32.mrb[0].mxu0
      %v520 = vadd.f32 %v216, %v519
      %v521 = vpop.f32.mrb[0].mxu0
      %v522 = vpop.f32.mrb[0].mxu0
      %v523 = vadd.f32 %v216, %v522
      %v524 = vpop.f32.mrb[0].mxu0
      %525 = vdwg.mxu0
      %v526 = vmax.f32 %v400, 0.0
      %v527 = vmax.f32 %v403, 0.0
      %v528 = vmax.f32 %v408, 0.0
      %v529 = vmax.f32 %v411, 0.0
      %v530 = vmax.f32 %v416, 0.0
      %v531 = vmax.f32 %v419, 0.0
      %v532 = vmax.f32 %v424, 0.0
      %v533 = vmax.f32 %v427, 0.0
      %v534 = vmax.f32 %v432, 0.0
      %v535 = vmax.f32 %v435, 0.0
      %v536 = vmax.f32 %v440, 0.0
      %v537 = vmax.f32 %v443, 0.0
      %v538 = vmax.f32 %v448, 0.0
      %v539 = vmax.f32 %v451, 0.0
      %v540 = vmax.f32 %v456, 0.0
      %v541 = vmax.f32 %v459, 0.0
      %v542 = vmax.f32 %v464, 0.0
      %v543 = vmax.f32 %v467, 0.0
      %v544 = vmax.f32 %v472, 0.0
      %v545 = vmax.f32 %v475, 0.0
      %v546 = vmax.f32 %v480, 0.0
      %v547 = vmax.f32 %v483, 0.0
      %v548 = vmax.f32 %v488, 0.0
      %v549 = vmax.f32 %v491, 0.0
      %v550 = vmax.f32 %v496, 0.0
      %v551 = vmax.f32 %v499, 0.0
      %v552 = vmax.f32 %v504, 0.0
      %v553 = vmax.f32 %v507, 0.0
      %v554 = vmax.f32 %v512, 0.0
      %v555 = vmax.f32 %v515, 0.0
      %v556 = vmax.f32 %v520, 0.0
      %v557 = vmax.f32 %v523, 0.0
      %vm558 = vcmask 64512
      %559 = vst.msk [vmem:[%s172] sm:$0xff] %vm558, %v526
      %560 = vst.msk [vmem:[%s172 + $0x8] sm:$0xff] %vm558, %v527
      %561 = vst.msk [vmem:[%s172 + $0x10] sm:$0xff] %vm558, %v528
      %562 = vst.msk [vmem:[%s172 + $0x18] sm:$0xff] %vm558, %v529
      %563 = vst.msk [vmem:[%s172 + $0x20] sm:$0xff] %vm558, %v530
      %564 = vst.msk [vmem:[%s172 + $0x28] sm:$0xff] %vm558, %v531
      %565 = vst.msk [vmem:[%s172 + $0x30] sm:$0xff] %vm558, %v532
      %566 = vst.msk [vmem:[%s172 + $0x38] sm:$0xff] %vm558, %v533
      %567 = vst.msk [vmem:[%s172 + $0x40] sm:$0xff] %vm558, %v534
      %568 = vst.msk [vmem:[%s172 + $0x48] sm:$0xff] %vm558, %v535
      %569 = vst.msk [vmem:[%s172 + $0x50] sm:$0xff] %vm558, %v536
      %570 = vst.msk [vmem:[%s172 + $0x58] sm:$0xff] %vm558, %v537
      %571 = vst.msk [vmem:[%s172 + $0x60] sm:$0xff] %vm558, %v538
      %572 = vst.msk [vmem:[%s172 + $0x68] sm:$0xff] %vm558, %v539
      %573 = vst.msk [vmem:[%s172 + $0x70] sm:$0xff] %vm558, %v540
      %574 = vst.msk [vmem:[%s172 + $0x78] sm:$0xff] %vm558, %v541
      %575 = vst.msk [vmem:[%s172 + $0x80] sm:$0xff] %vm558, %v542
      %576 = vst.msk [vmem:[%s172 + $0x88] sm:$0xff] %vm558, %v543
      %577 = vst.msk [vmem:[%s172 + $0x90] sm:$0xff] %vm558, %v544
      %578 = vst.msk [vmem:[%s172 + $0x98] sm:$0xff] %vm558, %v545
      %579 = vst.msk [vmem:[%s172 + $0xa0] sm:$0xff] %vm558, %v546
      %580 = vst.msk [vmem:[%s172 + $0xa8] sm:$0xff] %vm558, %v547
      %581 = vst.msk [vmem:[%s172 + $0xb0] sm:$0xff] %vm558, %v548
      %582 = vst.msk [vmem:[%s172 + $0xb8] sm:$0xff] %vm558, %v549
      %583 = vst.msk [vmem:[%s172 + $0xc0] sm:$0xff] %vm558, %v550
      %584 = vst.msk [vmem:[%s172 + $0xc8] sm:$0xff] %vm558, %v551
      %585 = vst.msk [vmem:[%s172 + $0xd0] sm:$0xff] %vm558, %v552
      %586 = vst.msk [vmem:[%s172 + $0xd8] sm:$0xff] %vm558, %v553
      %587 = vst.msk [vmem:[%s172 + $0xe0] sm:$0xff] %vm558, %v554
      %588 = vst.msk [vmem:[%s172 + $0xe8] sm:$0xff] %vm558, %v555
      %589 = vst.msk [vmem:[%s172 + $0xf0] sm:$0xff] %vm558, %v556
      %590 = vst.msk [vmem:[%s172 + $0xf8] sm:$0xff] %vm558, %v557
      %s591 = smul.u32 32, %s14
      %p592 = scmp.lt.s32.totalorder %s591, 95
      %s593 = scalar_select %p592, %s591, 95
      %s594 = smul.addr %s593, 8
      %s595 = scalar_lea.vmem %s3, %s594
      // Predicated region
      $region33: #{facenet_embedder_forward.13} parent=31 // pred_check
        %p596 = pneg %p100
      $region34: #{facenet_embedder_forward.13} parent=31 // pred_check_branch
        %598 = sbr.rel (%p596) target = $region36
      $region35: #{facenet_embedder_forward.13} parent=31 // pred_region
        %s599 = smul.u32 32, %s14
      $region36: #{facenet_embedder_forward.13} parent=31 // pred_fallthru
        _
    $region32: #{facenet_embedder_forward.13} parent=5 // pred_fallthru
      _
    %p600 = scmp.le.s32.totalorder 2, %s9
    // Predicated region
    $region37: #{facenet_embedder_forward.13} parent=5 // pred_check
      %p601 = pneg %p600
    $region38: #{facenet_embedder_forward.13} parent=5 // pred_check_branch
      %603 = sbr.rel (%p601) target = $region40
    $region39: #{facenet_embedder_forward.13} parent=5 // pred_region
      %s604 = ssub.s32 %s9, 2
      // Predicated region
      $region41: #{facenet_embedder_forward.13} parent=39 // pred_check
        %p605 = pneg %p106
      $region42: #{facenet_embedder_forward.13} parent=39 // pred_check_branch
        %607 = sbr.rel (%p605) target = $region44
      $region43: #{facenet_embedder_forward.13} parent=39 // pred_region
        %s608 = smul.u32 32, %s15
        %p609 = scmp.lt.s32.totalorder %s608, 95
        %s610 = scalar_select %p609, %s608, 95
        %s611 = smul.addr %s610, 8
        %s612 = scalar_lea.vmem %s3, %s611
      $region44: #{facenet_embedder_forward.13} parent=39 // pred_fallthru
        _
    $region40: #{facenet_embedder_forward.13} parent=5 // pred_fallthru
      _
  $region6: #{facenet_embedder_forward.13} parent=0 // loop_footer
    %s13 = sadd.s32 1, %s9
  $region7: #{facenet_embedder_forward.13} parent=0 // loop_footer_branch
    %8 = sbr.rel target = $region3
  $region8: #{facenet_embedder_forward.13} parent=0 // loop_exit
    _

// kernel: facenet_embedder_forward.14
$region0: #{facenet_embedder_forward.14}
  #allocation0 [shape = 'u32[]', space=smem, size = 0x4, offset = 0x4, fixed_abs, tag = 'smem constant byte address 0x4 - core index']
  #allocation1 [shape = 'u32[144,128]{1,0:T(1,128)}', space=vmem, size = 0x12000, scoped, tag = 'internal scratch']
  %s0 = inlined_call_operand.vmem [shape: bf16[512,72], index: 0, kind: input, shape index: {}]
  %s1 = inlined_call_operand.vmem [shape: bf16[72,8], index: 1, kind: input, shape index: {}]
  %s2 = inlined_call_operand.vmem [shape: f32[1,8], index: 2, kind: input, shape index: {}]
  %s3 = inlined_call_operand.vmem [shape: f32[512,8], index: 3, kind: output, shape index: {}]
  %s4 = sld [smem:[#allocation0]]
  $region45: #{facenet_embedder_forward.14} parent=0
    _
  %s6 = ssub.s32 1, %s4
  %s7 = scalar_select 0, %s6, %s4
  loop: start=0, step=1, limit=4
  $region2: #{facenet_embedder_forward.14} parent=0 // loop_pre_header
    _
  $region3: #{facenet_embedder_forward.14} parent=0 // loop_header
    %s9 = sphi 0, %s13
    %p10 = scmp.ge.s32.totalorder %s9, 4
    %s19 = sphi 0, %s21
    %s22 = sphi 0, %s19
    %s23 = sphi 0, %s22
    %s39 = sphi 0, %s23
    %s43 = sphi 0, %s43
    %s45 = sphi 0, %s43
    %s46 = sphi 0, %s45
    %s60 = sphi 0, %s46
    %s64 = sphi 0, %s64
    %s66 = sphi 0, %s64
    %s67 = sphi 0, %s66
    %s81 = sphi 0, %s67
    %s87 = sphi 0, %s89
    %s90 = sphi 0, %s87
    %s91 = sphi 0, %s90
    %s107 = sphi 0, %s91
  $region4: #{facenet_embedder_forward.14} parent=0 // loop_header_branch
    %12 = sbr.rel (%p10) target = $region8
  $region5: #{facenet_embedder_forward.14} parent=0 // loop_body
    %s14 = ssub.s32 %s9, 1
    %s15 = ssub.s32 %s9, 2
    %s16 = sadd.s32 %s9, 1
    %s17 = ssub.s32 %s9, %s16
    %p18 = scmp.eq.s32.totalorder %s17, 0
    %s20 = sadd.s32 %s19, 1
    %s21 = scalar_select %p18, %s19, %s20
    %p24 = pneg %p18
    %p25 = scmp.eq.s32.totalorder %s9, 1
    %p26 = por %p24, %p25
    %p27 = scmp.ne.s32.totalorder %s19, %s22
    %p28 = scmp.eq.s32.totalorder %s9, 0
    %p29 = por %p27, %p28
    %p30 = scmp.ne.s32.totalorder %s19, %s22
    %p31 = scmp.eq.s32.totalorder %s14, 1
    %p32 = por %p30, %p31
    %p33 = scmp.ne.s32.totalorder %s22, %s23
    %p34 = scmp.eq.s32.totalorder %s14, 0
    %p35 = por %p33, %p34
    %p36 = scmp.ne.s32.totalorder %s22, %s23
    %p37 = scmp.eq.s32.totalorder %s15, 1
    %p38 = por %p36, %p37
    %p40 = scmp.ne.s32.totalorder %s23, %s39
    %p41 = scmp.eq.s32.totalorder %s15, 0
    %p42 = por %p40, %p41
    %s44 = sadd.s32 %s43, 1
    %p47 = scmp.eq.s32.totalorder %s9, 1
    %p48 = scmp.ne.s32.totalorder %s43, %s45
    %p49 = scmp.eq.s32.totalorder %s9, 0
    %p50 = por %p48, %p49
    %p51 = scmp.ne.s32.totalorder %s43, %s45
    %p52 = scmp.eq.s32.totalorder %s14, 1
    %p53 = por %p51, %p52
    %p54 = scmp.ne.s32.totalorder %s45, %s46
    %p55 = scmp.eq.s32.totalorder %s14, 0
    %p56 = por %p54, %p55
    %p57 = scmp.ne.s32.totalorder %s45, %s46
    %p58 = scmp.eq.s32.totalorder %s15, 1
    %p59 = por %p57, %p58
    %p61 = scmp.ne.s32.totalorder %s46, %s60
    %p62 = scmp.eq.s32.totalorder %s15, 0
    %p63 = por %p61, %p62
    %s65 = sadd.s32 %s64, 1
    %p68 = scmp.eq.s32.totalorder %s9, 1
    %p69 = scmp.ne.s32.totalorder %s64, %s66
    %p70 = scmp.eq.s32.totalorder %s9, 0
    %p71 = por %p69, %p70
    %p72 = scmp.ne.s32.totalorder %s64, %s66
    %p73 = scmp.eq.s32.totalorder %s14, 1
    %p74 = por %p72, %p73
    %p75 = scmp.ne.s32.totalorder %s66, %s67
    %p76 = scmp.eq.s32.totalorder %s14, 0
    %p77 = por %p75, %p76
    %p78 = scmp.ne.s32.totalorder %s66, %s67
    %p79 = scmp.eq.s32.totalorder %s15, 1
    %p80 = por %p78, %p79
    %p82 = scmp.ne.s32.totalorder %s67, %s81
    %p83 = scmp.eq.s32.totalorder %s15, 0
    %p84 = por %p82, %p83
    %s85 = ssub.s32 %s9, %s16
    %p86 = scmp.eq.s32.totalorder %s85, 0
    %s88 = sadd.s32 %s87, 1
    %s89 = scalar_select %p86, %s87, %s88
    %p92 = pneg %p86
    %p93 = scmp.eq.s32.totalorder %s9, 1
    %p94 = por %p92, %p93
    %p95 = scmp.ne.s32.totalorder %s87, %s90
    %p96 = scmp.eq.s32.totalorder %s9, 0
    %p97 = por %p95, %p96
    %p98 = scmp.ne.s32.totalorder %s87, %s90
    %p99 = scmp.eq.s32.totalorder %s14, 1
    %p100 = por %p98, %p99
    %p101 = scmp.ne.s32.totalorder %s90, %s91
    %p102 = scmp.eq.s32.totalorder %s14, 0
    %p103 = por %p101, %p102
    %p104 = scmp.ne.s32.totalorder %s90, %s91
    %p105 = scmp.eq.s32.totalorder %s15, 1
    %p106 = por %p104, %p105
    %p108 = scmp.ne.s32.totalorder %s91, %s107
    %p109 = scmp.eq.s32.totalorder %s15, 0
    %p110 = por %p108, %p109
    %p111 = scmp.le.s32.totalorder 1, %s9
    %p112 = scmp.lt.s32.totalorder %s9, 3
    %p113 = pnand %p111, %p112
    %p114 = pneg %p113
    // Predicated region
    $region9: #{facenet_embedder_forward.14} parent=5 // pred_check
      _
    $region10: #{facenet_embedder_forward.14} parent=5 // pred_check_branch
      %116 = sbr.rel (%p113) target = $region12
    $region11: #{facenet_embedder_forward.14} parent=5 // pred_region
      %s117 = ssub.s32 %s9, 1
      // Predicated region
      $region13: #{facenet_embedder_forward.14} parent=11 // pred_check
        %p118 = pneg %p56
      $region14: #{facenet_embedder_forward.14} parent=11 // pred_check_branch
        %120 = sbr.rel (%p118) target = $region16
      $region15: #{facenet_embedder_forward.14} parent=11 // pred_region
        _
      $region16: #{facenet_embedder_forward.14} parent=11 // pred_fallthru
        _
      // Predicated region
      $region17: #{facenet_embedder_forward.14} parent=11 // pred_check
        %p121 = pneg %p77
      $region18: #{facenet_embedder_forward.14} parent=11 // pred_check_branch
        %123 = sbr.rel (%p121) target = $region20
      $region19: #{facenet_embedder_forward.14} parent=11 // pred_region
        _
      $region20: #{facenet_embedder_forward.14} parent=11 // pred_fallthru
        _
    $region12: #{facenet_embedder_forward.14} parent=5 // pred_fallthru
      _
    %p124 = scmp.lt.s32.totalorder %s9, 2
    // Predicated region
    $region21: #{facenet_embedder_forward.14} parent=5 // pred_check
      %p125 = pneg %p124
    $region22: #{facenet_embedder_forward.14} parent=5 // pred_check_branch
      %127 = sbr.rel (%p125) target = $region24
    $region23: #{facenet_embedder_forward.14} parent=5 // pred_region
      // Predicated region
      $region25: #{facenet_embedder_forward.14} parent=23 // pred_check
        %p128 = pneg %p29
      $region26: #{facenet_embedder_forward.14} parent=23 // pred_check_branch
        %130 = sbr.rel (%p128) target = $region28
      $region27: #{facenet_embedder_forward.14} parent=23 // pred_region
        %s131 = smul.u32 32, %s9
        %p132 = scmp.lt.s32.totalorder %s131, 63
        %s133 = scalar_select %p132, %s131, 63
        %s134 = smul.addr %s133, 4
        %s135 = scalar_lea.vmem %s0, %s134
        %s136 = smul.u32 32, %s9
      $region28: #{facenet_embedder_forward.14} parent=23 // pred_fallthru
        _
    $region24: #{facenet_embedder_forward.14} parent=5 // pred_fallthru
      _
    %p137 = scmp.le.s32.totalorder 1, %s9
    %p138 = scmp.lt.s32.totalorder %s9, 3
    %p139 = pnand %p137, %p138
    %p140 = pneg %p139
    // Predicated region
    $region29: #{facenet_embedder_forward.14} parent=5 // pred_check
      _
    $region30: #{facenet_embedder_forward.14} parent=5 // pred_check_branch
      %142 = sbr.rel (%p139) target = $region32
    $region31: #{facenet_embedder_forward.14} parent=5 // pred_region
      %s143 = ssub.s32 %s9, 1
      %s144 = smul.u32 32, %s14
      %p145 = scmp.lt.s32.totalorder %s144, 63
      %s146 = scalar_select %p145, %s144, 63
      %s147 = smul.addr %s146, 4
      %s148 = scalar_lea.vmem %s0, %s147
      %p149 = pneg %p35
      %p150 = pneg %p32
      %p151 = pneg %p56
      %p152 = pneg %p53
      %p153 = pneg %p77
      %p154 = pneg %p74
      %p155 = pneg %p103
      %p156 = pneg %p100
      %s157 = smul.u32 32, %s14
      %p158 = scmp.lt.s32.totalorder %s157, 63
      %s159 = scalar_select %p158, %s157, 63
      %s160 = smul.addr %s159, 8
      %s161 = scalar_lea.vmem %s3, %s160
      %s162 = smul.u32 32, %s14
      %p163 = scmp.lt.s32.totalorder %s162, 63
      %s164 = scalar_select %p163, %s162, 63
      %s165 = smul.addr %s164, 4
      %s166 = scalar_lea.vmem %s0, %s165
      %s167 = smul.u32 32, %s14
      %s168 = smul.u32 32, %s14
      %p169 = scmp.lt.s32.totalorder %s168, 63
      %s170 = scalar_select %p169, %s168, 63
      %s171 = smul.addr %s170, 8
      %s172 = scalar_lea.vmem %s3, %s171
      %s173 = smul.u32 32, %s14
      %v175 = vld [vmem:[%s166] sm:$0xf]
      %v176 = vld [vmem:[%s166 + $0x4] sm:$0xf]
      %v177 = vld [vmem:[%s166 + $0x8] sm:$0xf]
      %v178 = vld [vmem:[%s166 + $0xc] sm:$0xf]
      %v179 = vld [vmem:[%s166 + $0x10] sm:$0xf]
      %v180 = vld [vmem:[%s166 + $0x14] sm:$0xf]
      %v181 = vld [vmem:[%s166 + $0x18] sm:$0xf]
      %v182 = vld [vmem:[%s166 + $0x1c] sm:$0xf]
      %v183 = vld [vmem:[%s166 + $0x20] sm:$0xf]
      %v184 = vld [vmem:[%s166 + $0x24] sm:$0xf]
      %v185 = vld [vmem:[%s166 + $0x28] sm:$0xf]
      %v186 = vld [vmem:[%s166 + $0x2c] sm:$0xf]
      %v187 = vld [vmem:[%s166 + $0x30] sm:$0xf]
      %v188 = vld [vmem:[%s166 + $0x34] sm:$0xf]
      %v189 = vld [vmem:[%s166 + $0x38] sm:$0xf]
      %v190 = vld [vmem:[%s166 + $0x3c] sm:$0xf]
      %v191 = vld [vmem:[%s166 + $0x40] sm:$0xf]
      %v192 = vld [vmem:[%s166 + $0x44] sm:$0xf]
      %v193 = vld [vmem:[%s166 + $0x48] sm:$0xf]
      %v194 = vld [vmem:[%s166 + $0x4c] sm:$0xf]
      %v195 = vld [vmem:[%s166 + $0x50] sm:$0xf]
      %v196 = vld [vmem:[%s166 + $0x54] sm:$0xf]
      %v197 = vld [vmem:[%s166 + $0x58] sm:$0xf]
      %v198 = vld [vmem:[%s166 + $0x5c] sm:$0xf]
      %v199 = vld [vmem:[%s166 + $0x60] sm:$0xf]
      %v200 = vld [vmem:[%s166 + $0x64] sm:$0xf]
      %v201 = vld [vmem:[%s166 + $0x68] sm:$0xf]
      %v202 = vld [vmem:[%s166 + $0x6c] sm:$0xf]
      %v203 = vld [vmem:[%s166 + $0x70] sm:$0xf]
      %v204 = vld [vmem:[%s166 + $0x74] sm:$0xf]
      %v205 = vld [vmem:[%s166 + $0x78] sm:$0xf]
      %v206 = vld [vmem:[%s166 + $0x7c] sm:$0xf]
      %v207 = vld [vmem:[%s1] sm:$0xf]
      %v208 = vld [vmem:[%s1 + $0x4] sm:$0xf]
      %v209 = vld [vmem:[%s1 + $0x8] sm:$0xf]
      %v210 = vld [vmem:[%s1 + $0xc] sm:$0xf]
      %v211 = vld [vmem:[%s1 + $0x10] sm:$0xf]
      %v212 = vld [vmem:[%s1 + $0x14] sm:$0xf]
      %v213 = vld [vmem:[%s1 + $0x18] sm:$0xf]
      %v214 = vld [vmem:[%s1 + $0x1c] sm:$0xf]
      %v215 = vld [vmem:[%s1 + $0x20] sm:$0xf]
      %v216 = vld [vmem:[%s2] sm:$0x1]
      %v218 = vlaneseq
      %v219 = vshrl.u32 %v218, 7
      %v220 = vsub.s32 0, %v219
      %v221 = vrot.slane %v216, %v220
      %v255 = vunpack.c.l.b16 %v175
      %v256 = vunpack.c.l.b16 %v176
      %v257 = vunpack.c.l.b16 %v177
      %v258 = vunpack.c.l.b16 %v178
      %v259 = vunpack.c.l.b16 %v179
      %v260 = vunpack.c.l.b16 %v180
      %v261 = vunpack.c.l.b16 %v181
      %v262 = vunpack.c.l.b16 %v182
      %v263 = vunpack.c.l.b16 %v183
      %v264 = vunpack.c.l.b16 %v184
      %v265 = vunpack.c.l.b16 %v185
      %v266 = vunpack.c.l.b16 %v186
      %v267 = vunpack.c.l.b16 %v187
      %v268 = vunpack.c.l.b16 %v188
      %v269 = vunpack.c.l.b16 %v189
      %v270 = vunpack.c.l.b16 %v190
      %v271 = vunpack.c.l.b16 %v191
      %v272 = vunpack.c.l.b16 %v192
      %v273 = vunpack.c.l.b16 %v193
      %v274 = vunpack.c.l.b16 %v194
      %v275 = vunpack.c.l.b16 %v195
      %v276 = vunpack.c.l.b16 %v196
      %v277 = vunpack.c.l.b16 %v197
      %v278 = vunpack.c.l.b16 %v198
      %v279 = vunpack.c.l.b16 %v199
      %v280 = vunpack.c.l.b16 %v200
      %v281 = vunpack.c.l.b16 %v201
      %v282 = vunpack.c.l.b16 %v202
      %v283 = vunpack.c.l.b16 %v203
      %v284 = vunpack.c.l.b16 %v204
      %v285 = vunpack.c.l.b16 %v205
      %v286 = vunpack.c.l.b16 %v206
      %v287 = vpack.c.b16 %v256, %v255
      %v288 = vpack.c.b16 %v258, %v257
      %v289 = vpack.c.b16 %v260, %v259
      %v290 = vpack.c.b16 %v262, %v261
      %v291 = vpack.c.b16 %v264, %v263
      %v292 = vpack.c.b16 %v266, %v265
      %v293 = vpack.c.b16 %v268, %v267
      %v294 = vpack.c.b16 %v270, %v269
      %v295 = vpack.c.b16 %v272, %v271
      %v296 = vpack.c.b16 %v274, %v273
      %v297 = vpack.c.b16 %v276, %v275
      %v298 = vpack.c.b16 %v278, %v277
      %v299 = vpack.c.b16 %v280, %v279
      %v300 = vpack.c.b16 %v282, %v281
      %v301 = vpack.c.b16 %v284, %v283
      %v302 = vpack.c.b16 %v286, %v285
      %v312 = vunpack.c.l.b16 %v207
      %v313 = vunpack.c.l.b16 %v208
      %v314 = vunpack.c.l.b16 %v209
      %v315 = vunpack.c.l.b16 %v210
      %v316 = vunpack.c.l.b16 %v211
      %v317 = vunpack.c.l.b16 %v212
      %v318 = vunpack.c.l.b16 %v213
      %v319 = vunpack.c.l.b16 %v214
      %v320 = vunpack.c.l.b16 %v215
      %v321 = vpack.c.b16 %v313, %v312
      %v322 = vpack.c.b16 %v315, %v314
      %v323 = vpack.c.b16 %v317, %v316
      %v324 = vpack.c.b16 %v319, %v318
      %v325 = vpack.c.b16 %v320, %v320
      %vm330 = vcmask 588800
      %v332 = vsel %vm330, %v287, 0
      %v335 = vsel %vm330, %v288, 0
      %v338 = vsel %vm330, %v289, 0
      %v341 = vsel %vm330, %v290, 0
      %v344 = vsel %vm330, %v291, 0
      %v347 = vsel %vm330, %v292, 0
      %v350 = vsel %vm330, %v293, 0
      %v353 = vsel %vm330, %v294, 0
      %v356 = vsel %vm330, %v295, 0
      %v359 = vsel %vm330, %v296, 0
      %v362 = vsel %vm330, %v297, 0
      %v365 = vsel %vm330, %v298, 0
      %v368 = vsel %vm330, %v299, 0
      %v371 = vsel %vm330, %v300, 0
      %v374 = vsel %vm330, %v301, 0
      %v377 = vsel %vm330, %v302, 0
      %vm379 = vcmask 1043456
      %v381 = vsel %vm379, %v325, 0
      %383 = vmatprep.subr.bf16.mxu0 0
      %384 = vmatpush1.bf16.msra.mxu0 %v321
      %385 = vmatprep.subr.bf16.mxu0 0
      %386 = vmatpush1.bf16.msra.mxu0 %v322
      %387 = vmatprep.subr.bf16.mxu0 0
      %388 = vmatpush1.bf16.msra.mxu0 %v323
      %389 = vmatprep.subr.bf16.mxu0 0
      %390 = vmatpush1.bf16.msra.mxu0 %v324
      %391 = vmatprep.subr.bf16.mxu0 0
      %392 = vmatpush1.bf16.msra.mxu0 %v381
      %393 = vmatprep.subr.bf16.mxu0 0
      %394 = vmatpush1.bf16.msra.mxu0 0
      %395 = vmatprep.subr.bf16.mxu0 0
      %396 = vmatpush1.bf16.msra.mxu0 0
      %397 = vmatprep.subr.bf16.mxu0 0
      %398 = vmatpush1.bf16.msra.mxu0 0
      %399 = vmatprep.subr.bf16.mxu0 0
      %400 = vmatpush1.bf16.msra.mxu0 0
      %401 = vmatprep.subr.bf16.mxu0 0
      %402 = vmatpush1.bf16.msra.mxu0 0
      %403 = vmatprep.subr.bf16.mxu0 0
      %404 = vmatpush1.bf16.msra.mxu0 0
      %405 = vmatprep.subr.bf16.mxu0 0
      %406 = vmatpush1.bf16.msra.mxu0 0
      %407 = vmatprep.subr.bf16.mxu0 0
      %408 = vmatpush1.bf16.msra.mxu0 0
      %409 = vmatprep.subr.bf16.mxu0 0
      %410 = vmatpush1.bf16.msra.mxu0 0
      %411 = vmatprep.subr.bf16.mxu0 0
      %412 = vmatpush1.bf16.msra.mxu0 0
      %413 = vmatprep.subr.bf16.mxu0 0
      %414 = vmatpush1.bf16.msra.mxu0 0
      %415 = vmatprep.mubr.bf16.mxu0 0
      %416 = vmatmul.mubr.bf16.gmra.mrb[0].mxu0 %v332
      %v417 = vpop.f32.mrb[0].mxu0
      %v418 = vadd.f32 %v221, %v417
      %v419 = vpop.f32.mrb[0].mxu0
      %v420 = vpop.f32.mrb[0].mxu0
      %v421 = vadd.f32 %v221, %v420
      %v422 = vpop.f32.mrb[0].mxu0
      %423 = vmatprep.mubr.bf16.mxu0 0
      %424 = vmatmul.mubr.bf16.gmra.mrb[0].mxu0 %v335
      %v425 = vpop.f32.mrb[0].mxu0
      %v426 = vadd.f32 %v221, %v425
      %v427 = vpop.f32.mrb[0].mxu0
      %v428 = vpop.f32.mrb[0].mxu0
      %v429 = vadd.f32 %v221, %v428
      %v430 = vpop.f32.mrb[0].mxu0
      %431 = vmatprep.mubr.bf16.mxu0 0
      %432 = vmatmul.mubr.bf16.gmra.mrb[0].mxu0 %v338
      %v433 = vpop.f32.mrb[0].mxu0
      %v434 = vadd.f32 %v221, %v433
      %v435 = vpop.f32.mrb[0].mxu0
      %v436 = vpop.f32.mrb[0].mxu0
      %v437 = vadd.f32 %v221, %v436
      %v438 = vpop.f32.mrb[0].mxu0
      %439 = vmatprep.mubr.bf16.mxu0 0
      %440 = vmatmul.mubr.bf16.gmra.mrb[0].mxu0 %v341
      %v441 = vpop.f32.mrb[0].mxu0
      %v442 = vadd.f32 %v221, %v441
      %v443 = vpop.f32.mrb[0].mxu0
      %v444 = vpop.f32.mrb[0].mxu0
      %v445 = vadd.f32 %v221, %v444
      %v446 = vpop.f32.mrb[0].mxu0
      %447 = vmatprep.mubr.bf16.mxu0 0
      %448 = vmatmul.mubr.bf16.gmra.mrb[0].mxu0 %v344
      %v449 = vpop.f32.mrb[0].mxu0
      %v450 = vadd.f32 %v221, %v449
      %v451 = vpop.f32.mrb[0].mxu0
      %v452 = vpop.f32.mrb[0].mxu0
      %v453 = vadd.f32 %v221, %v452
      %v454 = vpop.f32.mrb[0].mxu0
      %455 = vmatprep.mubr.bf16.mxu0 0
      %456 = vmatmul.mubr.bf16.gmra.mrb[0].mxu0 %v347
      %v457 = vpop.f32.mrb[0].mxu0
      %v458 = vadd.f32 %v221, %v457
      %v459 = vpop.f32.mrb[0].mxu0
      %v460 = vpop.f32.mrb[0].mxu0
      %v461 = vadd.f32 %v221, %v460
      %v462 = vpop.f32.mrb[0].mxu0
      %463 = vmatprep.mubr.bf16.mxu0 0
      %464 = vmatmul.mubr.bf16.gmra.mrb[0].mxu0 %v350
      %v465 = vpop.f32.mrb[0].mxu0
      %v466 = vadd.f32 %v221, %v465
      %v467 = vpop.f32.mrb[0].mxu0
      %v468 = vpop.f32.mrb[0].mxu0
      %v469 = vadd.f32 %v221, %v468
      %v470 = vpop.f32.mrb[0].mxu0
      %471 = vmatprep.mubr.bf16.mxu0 0
      %472 = vmatmul.mubr.bf16.gmra.mrb[0].mxu0 %v353
      %v473 = vpop.f32.mrb[0].mxu0
      %v474 = vadd.f32 %v221, %v473
      %v475 = vpop.f32.mrb[0].mxu0
      %v476 = vpop.f32.mrb[0].mxu0
      %v477 = vadd.f32 %v221, %v476
      %v478 = vpop.f32.mrb[0].mxu0
      %479 = vmatprep.mubr.bf16.mxu0 0
      %480 = vmatmul.mubr.bf16.gmra.mrb[0].mxu0 %v356
      %v481 = vpop.f32.mrb[0].mxu0
      %v482 = vadd.f32 %v221, %v481
      %v483 = vpop.f32.mrb[0].mxu0
      %v484 = vpop.f32.mrb[0].mxu0
      %v485 = vadd.f32 %v221, %v484
      %v486 = vpop.f32.mrb[0].mxu0
      %487 = vmatprep.mubr.bf16.mxu0 0
      %488 = vmatmul.mubr.bf16.gmra.mrb[0].mxu0 %v359
      %v489 = vpop.f32.mrb[0].mxu0
      %v490 = vadd.f32 %v221, %v489
      %v491 = vpop.f32.mrb[0].mxu0
      %v492 = vpop.f32.mrb[0].mxu0
      %v493 = vadd.f32 %v221, %v492
      %v494 = vpop.f32.mrb[0].mxu0
      %495 = vmatprep.mubr.bf16.mxu0 0
      %496 = vmatmul.mubr.bf16.gmra.mrb[0].mxu0 %v362
      %v497 = vpop.f32.mrb[0].mxu0
      %v498 = vadd.f32 %v221, %v497
      %v499 = vpop.f32.mrb[0].mxu0
      %v500 = vpop.f32.mrb[0].mxu0
      %v501 = vadd.f32 %v221, %v500
      %v502 = vpop.f32.mrb[0].mxu0
      %503 = vmatprep.mubr.bf16.mxu0 0
      %504 = vmatmul.mubr.bf16.gmra.mrb[0].mxu0 %v365
      %v505 = vpop.f32.mrb[0].mxu0
      %v506 = vadd.f32 %v221, %v505
      %v507 = vpop.f32.mrb[0].mxu0
      %v508 = vpop.f32.mrb[0].mxu0
      %v509 = vadd.f32 %v221, %v508
      %v510 = vpop.f32.mrb[0].mxu0
      %511 = vmatprep.mubr.bf16.mxu0 0
      %512 = vmatmul.mubr.bf16.gmra.mrb[0].mxu0 %v368
      %v513 = vpop.f32.mrb[0].mxu0
      %v514 = vadd.f32 %v221, %v513
      %v515 = vpop.f32.mrb[0].mxu0
      %v516 = vpop.f32.mrb[0].mxu0
      %v517 = vadd.f32 %v221, %v516
      %v518 = vpop.f32.mrb[0].mxu0
      %519 = vmatprep.mubr.bf16.mxu0 0
      %520 = vmatmul.mubr.bf16.gmra.mrb[0].mxu0 %v371
      %v521 = vpop.f32.mrb[0].mxu0
      %v522 = vadd.f32 %v221, %v521
      %v523 = vpop.f32.mrb[0].mxu0
      %v524 = vpop.f32.mrb[0].mxu0
      %v525 = vadd.f32 %v221, %v524
      %v526 = vpop.f32.mrb[0].mxu0
      %527 = vmatprep.mubr.bf16.mxu0 0
      %528 = vmatmul.mubr.bf16.gmra.mrb[0].mxu0 %v374
      %v529 = vpop.f32.mrb[0].mxu0
      %v530 = vadd.f32 %v221, %v529
      %v531 = vpop.f32.mrb[0].mxu0
      %v532 = vpop.f32.mrb[0].mxu0
      %v533 = vadd.f32 %v221, %v532
      %v534 = vpop.f32.mrb[0].mxu0
      %535 = vmatprep.mubr.bf16.mxu0 0
      %536 = vmatmul.mubr.bf16.gmra.mrb[0].mxu0 %v377
      %v537 = vpop.f32.mrb[0].mxu0
      %v538 = vadd.f32 %v221, %v537
      %v539 = vpop.f32.mrb[0].mxu0
      %v540 = vpop.f32.mrb[0].mxu0
      %v541 = vadd.f32 %v221, %v540
      %v542 = vpop.f32.mrb[0].mxu0
      %543 = vdwg.mxu0
      %v544 = vmax.f32 %v418, 0.0
      %v545 = vmax.f32 %v421, 0.0
      %v546 = vmax.f32 %v426, 0.0
      %v547 = vmax.f32 %v429, 0.0
      %v548 = vmax.f32 %v434, 0.0
      %v549 = vmax.f32 %v437, 0.0
      %v550 = vmax.f32 %v442, 0.0
      %v551 = vmax.f32 %v445, 0.0
      %v552 = vmax.f32 %v450, 0.0
      %v553 = vmax.f32 %v453, 0.0
      %v554 = vmax.f32 %v458, 0.0
      %v555 = vmax.f32 %v461, 0.0
      %v556 = vmax.f32 %v466, 0.0
      %v557 = vmax.f32 %v469, 0.0
      %v558 = vmax.f32 %v474, 0.0
      %v559 = vmax.f32 %v477, 0.0
      %v560 = vmax.f32 %v482, 0.0
      %v561 = vmax.f32 %v485, 0.0
      %v562 = vmax.f32 %v490, 0.0
      %v563 = vmax.f32 %v493, 0.0
      %v564 = vmax.f32 %v498, 0.0
      %v565 = vmax.f32 %v501, 0.0
      %v566 = vmax.f32 %v506, 0.0
      %v567 = vmax.f32 %v509, 0.0
      %v568 = vmax.f32 %v514, 0.0
      %v569 = vmax.f32 %v517, 0.0
      %v570 = vmax.f32 %v522, 0.0
      %v571 = vmax.f32 %v525, 0.0
      %v572 = vmax.f32 %v530, 0.0
      %v573 = vmax.f32 %v533, 0.0
      %v574 = vmax.f32 %v538, 0.0
      %v575 = vmax.f32 %v541, 0.0
      %vm576 = vcmask 64512
      %577 = vst.msk [vmem:[%s172] sm:$0xff] %vm576, %v544
      %578 = vst.msk [vmem:[%s172 + $0x8] sm:$0xff] %vm576, %v545
      %579 = vst.msk [vmem:[%s172 + $0x10] sm:$0xff] %vm576, %v546
      %580 = vst.msk [vmem:[%s172 + $0x18] sm:$0xff] %vm576, %v547
      %581 = vst.msk [vmem:[%s172 + $0x20] sm:$0xff] %vm576, %v548
      %582 = vst.msk [vmem:[%s172 + $0x28] sm:$0xff] %vm576, %v549
      %583 = vst.msk [vmem:[%s172 + $0x30] sm:$0xff] %vm576, %v550
      %584 = vst.msk [vmem:[%s172 + $0x38] sm:$0xff] %vm576, %v551
      %585 = vst.msk [vmem:[%s172 + $0x40] sm:$0xff] %vm576, %v552
      %586 = vst.msk [vmem:[%s172 + $0x48] sm:$0xff] %vm576, %v553
      %587 = vst.msk [vmem:[%s172 + $0x50] sm:$0xff] %vm576, %v554
      %588 = vst.msk [vmem:[%s172 + $0x58] sm:$0xff] %vm576, %v555
      %589 = vst.msk [vmem:[%s172 + $0x60] sm:$0xff] %vm576, %v556
      %590 = vst.msk [vmem:[%s172 + $0x68] sm:$0xff] %vm576, %v557
      %591 = vst.msk [vmem:[%s172 + $0x70] sm:$0xff] %vm576, %v558
      %592 = vst.msk [vmem:[%s172 + $0x78] sm:$0xff] %vm576, %v559
      %593 = vst.msk [vmem:[%s172 + $0x80] sm:$0xff] %vm576, %v560
      %594 = vst.msk [vmem:[%s172 + $0x88] sm:$0xff] %vm576, %v561
      %595 = vst.msk [vmem:[%s172 + $0x90] sm:$0xff] %vm576, %v562
      %596 = vst.msk [vmem:[%s172 + $0x98] sm:$0xff] %vm576, %v563
      %597 = vst.msk [vmem:[%s172 + $0xa0] sm:$0xff] %vm576, %v564
      %598 = vst.msk [vmem:[%s172 + $0xa8] sm:$0xff] %vm576, %v565
      %599 = vst.msk [vmem:[%s172 + $0xb0] sm:$0xff] %vm576, %v566
      %600 = vst.msk [vmem:[%s172 + $0xb8] sm:$0xff] %vm576, %v567
      %601 = vst.msk [vmem:[%s172 + $0xc0] sm:$0xff] %vm576, %v568
      %602 = vst.msk [vmem:[%s172 + $0xc8] sm:$0xff] %vm576, %v569
      %603 = vst.msk [vmem:[%s172 + $0xd0] sm:$0xff] %vm576, %v570
      %604 = vst.msk [vmem:[%s172 + $0xd8] sm:$0xff] %vm576, %v571
      %605 = vst.msk [vmem:[%s172 + $0xe0] sm:$0xff] %vm576, %v572
      %606 = vst.msk [vmem:[%s172 + $0xe8] sm:$0xff] %vm576, %v573
      %607 = vst.msk [vmem:[%s172 + $0xf0] sm:$0xff] %vm576, %v574
      %608 = vst.msk [vmem:[%s172 + $0xf8] sm:$0xff] %vm576, %v575
      %s609 = smul.u32 32, %s14
      %p610 = scmp.lt.s32.totalorder %s609, 63
      %s611 = scalar_select %p610, %s609, 63
      %s612 = smul.addr %s611, 8
      %s613 = scalar_lea.vmem %s3, %s612
      // Predicated region
      $region33: #{facenet_embedder_forward.14} parent=31 // pred_check
        %p614 = pneg %p100
      $region34: #{facenet_embedder_forward.14} parent=31 // pred_check_branch
        %616 = sbr.rel (%p614) target = $region36
      $region35: #{facenet_embedder_forward.14} parent=31 // pred_region
        %s617 = smul.u32 32, %s14
      $region36: #{facenet_embedder_forward.14} parent=31 // pred_fallthru
        _
    $region32: #{facenet_embedder_forward.14} parent=5 // pred_fallthru
      _
    %p618 = scmp.le.s32.totalorder 2, %s9
    // Predicated region
    $region37: #{facenet_embedder_forward.14} parent=5 // pred_check
      %p619 = pneg %p618
    $region38: #{facenet_embedder_forward.14} parent=5 // pred_check_branch
      %621 = sbr.rel (%p619) target = $region40
    $region39: #{facenet_embedder_forward.14} parent=5 // pred_region
      %s622 = ssub.s32 %s9, 2
      // Predicated region
      $region41: #{facenet_embedder_forward.14} parent=39 // pred_check
        %p623 = pneg %p106
      $region42: #{facenet_embedder_forward.14} parent=39 // pred_check_branch
        %625 = sbr.rel (%p623) target = $region44
      $region43: #{facenet_embedder_forward.14} parent=39 // pred_region
        %s626 = smul.u32 32, %s15
        %p627 = scmp.lt.s32.totalorder %s626, 63
        %s628 = scalar_select %p627, %s626, 63
        %s629 = smul.addr %s628, 8
        %s630 = scalar_lea.vmem %s3, %s629
      $region44: #{facenet_embedder_forward.14} parent=39 // pred_fallthru
        _
    $region40: #{facenet_embedder_forward.14} parent=5 // pred_fallthru
      _
  $region6: #{facenet_embedder_forward.14} parent=0 // loop_footer
    %s13 = sadd.s32 1, %s9
  $region7: #{facenet_embedder_forward.14} parent=0 // loop_footer_branch
    %8 = sbr.rel target = $region3
  $region8: #{facenet_embedder_forward.14} parent=0 // loop_exit
    _

// kernel: facenet_embedder_forward.15
$region0: #{facenet_embedder_forward.15}
  #allocation0 [shape = 'u32[]', space=smem, size = 0x4, offset = 0x4, fixed_abs, tag = 'smem constant byte address 0x4 - core index']
  #allocation1 [shape = 'u32[144,128]{1,0:T(1,128)}', space=vmem, size = 0x12000, scoped, tag = 'internal scratch']
  %s0 = inlined_call_operand.vmem [shape: bf16[512,72], index: 0, kind: input, shape index: {}]
  %s1 = inlined_call_operand.vmem [shape: bf16[72,16], index: 1, kind: input, shape index: {}]
  %s2 = inlined_call_operand.vmem [shape: f32[1,16], index: 2, kind: input, shape index: {}]
  %s3 = inlined_call_operand.vmem [shape: f32[512,16], index: 3, kind: output, shape index: {}]
  %s4 = sld [smem:[#allocation0]]
  $region45: #{facenet_embedder_forward.15} parent=0
    _
  %s6 = ssub.s32 1, %s4
  %s7 = scalar_select 0, %s6, %s4
  loop: start=0, step=1, limit=4
  $region2: #{facenet_embedder_forward.15} parent=0 // loop_pre_header
    _
  $region3: #{facenet_embedder_forward.15} parent=0 // loop_header
    %s9 = sphi 0, %s13
    %p10 = scmp.ge.s32.totalorder %s9, 4
    %s19 = sphi 0, %s21
    %s22 = sphi 0, %s19
    %s23 = sphi 0, %s22
    %s39 = sphi 0, %s23
    %s43 = sphi 0, %s43
    %s45 = sphi 0, %s43
    %s46 = sphi 0, %s45
    %s60 = sphi 0, %s46
    %s64 = sphi 0, %s64
    %s66 = sphi 0, %s64
    %s67 = sphi 0, %s66
    %s81 = sphi 0, %s67
    %s87 = sphi 0, %s89
    %s90 = sphi 0, %s87
    %s91 = sphi 0, %s90
    %s107 = sphi 0, %s91
  $region4: #{facenet_embedder_forward.15} parent=0 // loop_header_branch
    %12 = sbr.rel (%p10) target = $region8
  $region5: #{facenet_embedder_forward.15} parent=0 // loop_body
    %s14 = ssub.s32 %s9, 1
    %s15 = ssub.s32 %s9, 2
    %s16 = sadd.s32 %s9, 1
    %s17 = ssub.s32 %s9, %s16
    %p18 = scmp.eq.s32.totalorder %s17, 0
    %s20 = sadd.s32 %s19, 1
    %s21 = scalar_select %p18, %s19, %s20
    %p24 = pneg %p18
    %p25 = scmp.eq.s32.totalorder %s9, 1
    %p26 = por %p24, %p25
    %p27 = scmp.ne.s32.totalorder %s19, %s22
    %p28 = scmp.eq.s32.totalorder %s9, 0
    %p29 = por %p27, %p28
    %p30 = scmp.ne.s32.totalorder %s19, %s22
    %p31 = scmp.eq.s32.totalorder %s14, 1
    %p32 = por %p30, %p31
    %p33 = scmp.ne.s32.totalorder %s22, %s23
    %p34 = scmp.eq.s32.totalorder %s14, 0
    %p35 = por %p33, %p34
    %p36 = scmp.ne.s32.totalorder %s22, %s23
    %p37 = scmp.eq.s32.totalorder %s15, 1
    %p38 = por %p36, %p37
    %p40 = scmp.ne.s32.totalorder %s23, %s39
    %p41 = scmp.eq.s32.totalorder %s15, 0
    %p42 = por %p40, %p41
    %s44 = sadd.s32 %s43, 1
    %p47 = scmp.eq.s32.totalorder %s9, 1
    %p48 = scmp.ne.s32.totalorder %s43, %s45
    %p49 = scmp.eq.s32.totalorder %s9, 0
    %p50 = por %p48, %p49
    %p51 = scmp.ne.s32.totalorder %s43, %s45
    %p52 = scmp.eq.s32.totalorder %s14, 1
    %p53 = por %p51, %p52
    %p54 = scmp.ne.s32.totalorder %s45, %s46
    %p55 = scmp.eq.s32.totalorder %s14, 0
    %p56 = por %p54, %p55
    %p57 = scmp.ne.s32.totalorder %s45, %s46
    %p58 = scmp.eq.s32.totalorder %s15, 1
    %p59 = por %p57, %p58
    %p61 = scmp.ne.s32.totalorder %s46, %s60
    %p62 = scmp.eq.s32.totalorder %s15, 0
    %p63 = por %p61, %p62
    %s65 = sadd.s32 %s64, 1
    %p68 = scmp.eq.s32.totalorder %s9, 1
    %p69 = scmp.ne.s32.totalorder %s64, %s66
    %p70 = scmp.eq.s32.totalorder %s9, 0
    %p71 = por %p69, %p70
    %p72 = scmp.ne.s32.totalorder %s64, %s66
    %p73 = scmp.eq.s32.totalorder %s14, 1
    %p74 = por %p72, %p73
    %p75 = scmp.ne.s32.totalorder %s66, %s67
    %p76 = scmp.eq.s32.totalorder %s14, 0
    %p77 = por %p75, %p76
    %p78 = scmp.ne.s32.totalorder %s66, %s67
    %p79 = scmp.eq.s32.totalorder %s15, 1
    %p80 = por %p78, %p79
    %p82 = scmp.ne.s32.totalorder %s67, %s81
    %p83 = scmp.eq.s32.totalorder %s15, 0
    %p84 = por %p82, %p83
    %s85 = ssub.s32 %s9, %s16
    %p86 = scmp.eq.s32.totalorder %s85, 0
    %s88 = sadd.s32 %s87, 1
    %s89 = scalar_select %p86, %s87, %s88
    %p92 = pneg %p86
    %p93 = scmp.eq.s32.totalorder %s9, 1
    %p94 = por %p92, %p93
    %p95 = scmp.ne.s32.totalorder %s87, %s90
    %p96 = scmp.eq.s32.totalorder %s9, 0
    %p97 = por %p95, %p96
    %p98 = scmp.ne.s32.totalorder %s87, %s90
    %p99 = scmp.eq.s32.totalorder %s14, 1
    %p100 = por %p98, %p99
    %p101 = scmp.ne.s32.totalorder %s90, %s91
    %p102 = scmp.eq.s32.totalorder %s14, 0
    %p103 = por %p101, %p102
    %p104 = scmp.ne.s32.totalorder %s90, %s91
    %p105 = scmp.eq.s32.totalorder %s15, 1
    %p106 = por %p104, %p105
    %p108 = scmp.ne.s32.totalorder %s91, %s107
    %p109 = scmp.eq.s32.totalorder %s15, 0
    %p110 = por %p108, %p109
    %p111 = scmp.le.s32.totalorder 1, %s9
    %p112 = scmp.lt.s32.totalorder %s9, 3
    %p113 = pnand %p111, %p112
    %p114 = pneg %p113
    // Predicated region
    $region9: #{facenet_embedder_forward.15} parent=5 // pred_check
      _
    $region10: #{facenet_embedder_forward.15} parent=5 // pred_check_branch
      %116 = sbr.rel (%p113) target = $region12
    $region11: #{facenet_embedder_forward.15} parent=5 // pred_region
      %s117 = ssub.s32 %s9, 1
      // Predicated region
      $region13: #{facenet_embedder_forward.15} parent=11 // pred_check
        %p118 = pneg %p56
      $region14: #{facenet_embedder_forward.15} parent=11 // pred_check_branch
        %120 = sbr.rel (%p118) target = $region16
      $region15: #{facenet_embedder_forward.15} parent=11 // pred_region
        _
      $region16: #{facenet_embedder_forward.15} parent=11 // pred_fallthru
        _
      // Predicated region
      $region17: #{facenet_embedder_forward.15} parent=11 // pred_check
        %p121 = pneg %p77
      $region18: #{facenet_embedder_forward.15} parent=11 // pred_check_branch
        %123 = sbr.rel (%p121) target = $region20
      $region19: #{facenet_embedder_forward.15} parent=11 // pred_region
        _
      $region20: #{facenet_embedder_forward.15} parent=11 // pred_fallthru
        _
    $region12: #{facenet_embedder_forward.15} parent=5 // pred_fallthru
      _
    %p124 = scmp.lt.s32.totalorder %s9, 2
    // Predicated region
    $region21: #{facenet_embedder_forward.15} parent=5 // pred_check
      %p125 = pneg %p124
    $region22: #{facenet_embedder_forward.15} parent=5 // pred_check_branch
      %127 = sbr.rel (%p125) target = $region24
    $region23: #{facenet_embedder_forward.15} parent=5 // pred_region
      // Predicated region
      $region25: #{facenet_embedder_forward.15} parent=23 // pred_check
        %p128 = pneg %p29
      $region26: #{facenet_embedder_forward.15} parent=23 // pred_check_branch
        %130 = sbr.rel (%p128) target = $region28
      $region27: #{facenet_embedder_forward.15} parent=23 // pred_region
        %s131 = smul.u32 32, %s9
        %p132 = scmp.lt.s32.totalorder %s131, 63
        %s133 = scalar_select %p132, %s131, 63
        %s134 = smul.addr %s133, 4
        %s135 = scalar_lea.vmem %s0, %s134
        %s136 = smul.u32 32, %s9
      $region28: #{facenet_embedder_forward.15} parent=23 // pred_fallthru
        _
    $region24: #{facenet_embedder_forward.15} parent=5 // pred_fallthru
      _
    %p137 = scmp.le.s32.totalorder 1, %s9
    %p138 = scmp.lt.s32.totalorder %s9, 3
    %p139 = pnand %p137, %p138
    %p140 = pneg %p139
    // Predicated region
    $region29: #{facenet_embedder_forward.15} parent=5 // pred_check
      _
    $region30: #{facenet_embedder_forward.15} parent=5 // pred_check_branch
      %142 = sbr.rel (%p139) target = $region32
    $region31: #{facenet_embedder_forward.15} parent=5 // pred_region
      %s143 = ssub.s32 %s9, 1
      %s144 = smul.u32 32, %s14
      %p145 = scmp.lt.s32.totalorder %s144, 63
      %s146 = scalar_select %p145, %s144, 63
      %s147 = smul.addr %s146, 4
      %s148 = scalar_lea.vmem %s0, %s147
      %p149 = pneg %p35
      %p150 = pneg %p32
      %p151 = pneg %p56
      %p152 = pneg %p53
      %p153 = pneg %p77
      %p154 = pneg %p74
      %p155 = pneg %p103
      %p156 = pneg %p100
      %s157 = smul.u32 32, %s14
      %p158 = scmp.lt.s32.totalorder %s157, 63
      %s159 = scalar_select %p158, %s157, 63
      %s160 = smul.addr %s159, 8
      %s161 = scalar_lea.vmem %s3, %s160
      %s162 = smul.u32 32, %s14
      %p163 = scmp.lt.s32.totalorder %s162, 63
      %s164 = scalar_select %p163, %s162, 63
      %s165 = smul.addr %s164, 4
      %s166 = scalar_lea.vmem %s0, %s165
      %s167 = smul.u32 32, %s14
      %s168 = smul.u32 32, %s14
      %p169 = scmp.lt.s32.totalorder %s168, 63
      %s170 = scalar_select %p169, %s168, 63
      %s171 = smul.addr %s170, 8
      %s172 = scalar_lea.vmem %s3, %s171
      %s173 = smul.u32 32, %s14
      %v175 = vld [vmem:[%s166] sm:$0xf]
      %v176 = vld [vmem:[%s166 + $0x4] sm:$0xf]
      %v177 = vld [vmem:[%s166 + $0x8] sm:$0xf]
      %v178 = vld [vmem:[%s166 + $0xc] sm:$0xf]
      %v179 = vld [vmem:[%s166 + $0x10] sm:$0xf]
      %v180 = vld [vmem:[%s166 + $0x14] sm:$0xf]
      %v181 = vld [vmem:[%s166 + $0x18] sm:$0xf]
      %v182 = vld [vmem:[%s166 + $0x1c] sm:$0xf]
      %v183 = vld [vmem:[%s166 + $0x20] sm:$0xf]
      %v184 = vld [vmem:[%s166 + $0x24] sm:$0xf]
      %v185 = vld [vmem:[%s166 + $0x28] sm:$0xf]
      %v186 = vld [vmem:[%s166 + $0x2c] sm:$0xf]
      %v187 = vld [vmem:[%s166 + $0x30] sm:$0xf]
      %v188 = vld [vmem:[%s166 + $0x34] sm:$0xf]
      %v189 = vld [vmem:[%s166 + $0x38] sm:$0xf]
      %v190 = vld [vmem:[%s166 + $0x3c] sm:$0xf]
      %v191 = vld [vmem:[%s166 + $0x40] sm:$0xf]
      %v192 = vld [vmem:[%s166 + $0x44] sm:$0xf]
      %v193 = vld [vmem:[%s166 + $0x48] sm:$0xf]
      %v194 = vld [vmem:[%s166 + $0x4c] sm:$0xf]
      %v195 = vld [vmem:[%s166 + $0x50] sm:$0xf]
      %v196 = vld [vmem:[%s166 + $0x54] sm:$0xf]
      %v197 = vld [vmem:[%s166 + $0x58] sm:$0xf]
      %v198 = vld [vmem:[%s166 + $0x5c] sm:$0xf]
      %v199 = vld [vmem:[%s166 + $0x60] sm:$0xf]
      %v200 = vld [vmem:[%s166 + $0x64] sm:$0xf]
      %v201 = vld [vmem:[%s166 + $0x68] sm:$0xf]
      %v202 = vld [vmem:[%s166 + $0x6c] sm:$0xf]
      %v203 = vld [vmem:[%s166 + $0x70] sm:$0xf]
      %v204 = vld [vmem:[%s166 + $0x74] sm:$0xf]
      %v205 = vld [vmem:[%s166 + $0x78] sm:$0xf]
      %v206 = vld [vmem:[%s166 + $0x7c] sm:$0xf]
      %v207 = vld [vmem:[%s1] sm:$0xf]
      %v208 = vld [vmem:[%s1 + $0x4] sm:$0xf]
      %v209 = vld [vmem:[%s1 + $0x8] sm:$0xf]
      %v210 = vld [vmem:[%s1 + $0xc] sm:$0xf]
      %v211 = vld [vmem:[%s1 + $0x10] sm:$0xf]
      %v212 = vld [vmem:[%s1 + $0x14] sm:$0xf]
      %v213 = vld [vmem:[%s1 + $0x18] sm:$0xf]
      %v214 = vld [vmem:[%s1 + $0x1c] sm:$0xf]
      %v215 = vld [vmem:[%s1 + $0x20] sm:$0xf]
      %v216 = vld [vmem:[%s2] sm:$0x1]
      %v218 = vlaneseq
      %v219 = vshrl.u32 %v218, 7
      %v220 = vsub.s32 0, %v219
      %v221 = vrot.slane %v216, %v220
      %v255 = vunpack.c.l.b16 %v175
      %v256 = vunpack.c.l.b16 %v176
      %v257 = vunpack.c.l.b16 %v177
      %v258 = vunpack.c.l.b16 %v178
      %v259 = vunpack.c.l.b16 %v179
      %v260 = vunpack.c.l.b16 %v180
      %v261 = vunpack.c.l.b16 %v181
      %v262 = vunpack.c.l.b16 %v182
      %v263 = vunpack.c.l.b16 %v183
      %v264 = vunpack.c.l.b16 %v184
      %v265 = vunpack.c.l.b16 %v185
      %v266 = vunpack.c.l.b16 %v186
      %v267 = vunpack.c.l.b16 %v187
      %v268 = vunpack.c.l.b16 %v188
      %v269 = vunpack.c.l.b16 %v189
      %v270 = vunpack.c.l.b16 %v190
      %v271 = vunpack.c.l.b16 %v191
      %v272 = vunpack.c.l.b16 %v192
      %v273 = vunpack.c.l.b16 %v193
      %v274 = vunpack.c.l.b16 %v194
      %v275 = vunpack.c.l.b16 %v195
      %v276 = vunpack.c.l.b16 %v196
      %v277 = vunpack.c.l.b16 %v197
      %v278 = vunpack.c.l.b16 %v198
      %v279 = vunpack.c.l.b16 %v199
      %v280 = vunpack.c.l.b16 %v200
      %v281 = vunpack.c.l.b16 %v201
      %v282 = vunpack.c.l.b16 %v202
      %v283 = vunpack.c.l.b16 %v203
      %v284 = vunpack.c.l.b16 %v204
      %v285 = vunpack.c.l.b16 %v205
      %v286 = vunpack.c.l.b16 %v206
      %v287 = vpack.c.b16 %v256, %v255
      %v288 = vpack.c.b16 %v258, %v257
      %v289 = vpack.c.b16 %v260, %v259
      %v290 = vpack.c.b16 %v262, %v261
      %v291 = vpack.c.b16 %v264, %v263
      %v292 = vpack.c.b16 %v266, %v265
      %v293 = vpack.c.b16 %v268, %v267
      %v294 = vpack.c.b16 %v270, %v269
      %v295 = vpack.c.b16 %v272, %v271
      %v296 = vpack.c.b16 %v274, %v273
      %v297 = vpack.c.b16 %v276, %v275
      %v298 = vpack.c.b16 %v278, %v277
      %v299 = vpack.c.b16 %v280, %v279
      %v300 = vpack.c.b16 %v282, %v281
      %v301 = vpack.c.b16 %v284, %v283
      %v302 = vpack.c.b16 %v286, %v285
      %v312 = vunpack.c.l.b16 %v207
      %v313 = vunpack.c.l.b16 %v208
      %v314 = vunpack.c.l.b16 %v209
      %v315 = vunpack.c.l.b16 %v210
      %v316 = vunpack.c.l.b16 %v211
      %v317 = vunpack.c.l.b16 %v212
      %v318 = vunpack.c.l.b16 %v213
      %v319 = vunpack.c.l.b16 %v214
      %v320 = vunpack.c.l.b16 %v215
      %v321 = vpack.c.b16 %v313, %v312
      %v322 = vpack.c.b16 %v315, %v314
      %v323 = vpack.c.b16 %v317, %v316
      %v324 = vpack.c.b16 %v319, %v318
      %v325 = vpack.c.b16 %v320, %v320
      %vm330 = vcmask 588800
      %v332 = vsel %vm330, %v287, 0
      %v335 = vsel %vm330, %v288, 0
      %v338 = vsel %vm330, %v289, 0
      %v341 = vsel %vm330, %v290, 0
      %v344 = vsel %vm330, %v291, 0
      %v347 = vsel %vm330, %v292, 0
      %v350 = vsel %vm330, %v293, 0
      %v353 = vsel %vm330, %v294, 0
      %v356 = vsel %vm330, %v295, 0
      %v359 = vsel %vm330, %v296, 0
      %v362 = vsel %vm330, %v297, 0
      %v365 = vsel %vm330, %v298, 0
      %v368 = vsel %vm330, %v299, 0
      %v371 = vsel %vm330, %v300, 0
      %v374 = vsel %vm330, %v301, 0
      %v377 = vsel %vm330, %v302, 0
      %vm379 = vcmask 1043456
      %v381 = vsel %vm379, %v325, 0
      %383 = vmatprep.subr.bf16.mxu0 0
      %384 = vmatpush1.bf16.msra.mxu0 %v321
      %385 = vmatprep.subr.bf16.mxu0 0
      %386 = vmatpush1.bf16.msra.mxu0 %v322
      %387 = vmatprep.subr.bf16.mxu0 0
      %388 = vmatpush1.bf16.msra.mxu0 %v323
      %389 = vmatprep.subr.bf16.mxu0 0
      %390 = vmatpush1.bf16.msra.mxu0 %v324
      %391 = vmatprep.subr.bf16.mxu0 0
      %392 = vmatpush1.bf16.msra.mxu0 %v381
      %393 = vmatprep.subr.bf16.mxu0 0
      %394 = vmatpush1.bf16.msra.mxu0 0
      %395 = vmatprep.subr.bf16.mxu0 0
      %396 = vmatpush1.bf16.msra.mxu0 0
      %397 = vmatprep.subr.bf16.mxu0 0
      %398 = vmatpush1.bf16.msra.mxu0 0
      %399 = vmatprep.subr.bf16.mxu0 0
      %400 = vmatpush1.bf16.msra.mxu0 0
      %401 = vmatprep.subr.bf16.mxu0 0
      %402 = vmatpush1.bf16.msra.mxu0 0
      %403 = vmatprep.subr.bf16.mxu0 0
      %404 = vmatpush1.bf16.msra.mxu0 0
      %405 = vmatprep.subr.bf16.mxu0 0
      %406 = vmatpush1.bf16.msra.mxu0 0
      %407 = vmatprep.subr.bf16.mxu0 0
      %408 = vmatpush1.bf16.msra.mxu0 0
      %409 = vmatprep.subr.bf16.mxu0 0
      %410 = vmatpush1.bf16.msra.mxu0 0
      %411 = vmatprep.subr.bf16.mxu0 0
      %412 = vmatpush1.bf16.msra.mxu0 0
      %413 = vmatprep.subr.bf16.mxu0 0
      %414 = vmatpush1.bf16.msra.mxu0 0
      %415 = vmatprep.mubr.bf16.mxu0 0
      %416 = vmatmul.mubr.bf16.gmra.mrb[0].mxu0 %v332
      %v417 = vpop.f32.mrb[0].mxu0
      %v418 = vadd.f32 %v221, %v417
      %v419 = vpop.f32.mrb[0].mxu0
      %v420 = vpop.f32.mrb[0].mxu0
      %v421 = vadd.f32 %v221, %v420
      %v422 = vpop.f32.mrb[0].mxu0
      %423 = vmatprep.mubr.bf16.mxu0 0
      %424 = vmatmul.mubr.bf16.gmra.mrb[0].mxu0 %v335
      %v425 = vpop.f32.mrb[0].mxu0
      %v426 = vadd.f32 %v221, %v425
      %v427 = vpop.f32.mrb[0].mxu0
      %v428 = vpop.f32.mrb[0].mxu0
      %v429 = vadd.f32 %v221, %v428
      %v430 = vpop.f32.mrb[0].mxu0
      %431 = vmatprep.mubr.bf16.mxu0 0
      %432 = vmatmul.mubr.bf16.gmra.mrb[0].mxu0 %v338
      %v433 = vpop.f32.mrb[0].mxu0
      %v434 = vadd.f32 %v221, %v433
      %v435 = vpop.f32.mrb[0].mxu0
      %v436 = vpop.f32.mrb[0].mxu0
      %v437 = vadd.f32 %v221, %v436
      %v438 = vpop.f32.mrb[0].mxu0
      %439 = vmatprep.mubr.bf16.mxu0 0
      %440 = vmatmul.mubr.bf16.gmra.mrb[0].mxu0 %v341
      %v441 = vpop.f32.mrb[0].mxu0
      %v442 = vadd.f32 %v221, %v441
      %v443 = vpop.f32.mrb[0].mxu0
      %v444 = vpop.f32.mrb[0].mxu0
      %v445 = vadd.f32 %v221, %v444
      %v446 = vpop.f32.mrb[0].mxu0
      %447 = vmatprep.mubr.bf16.mxu0 0
      %448 = vmatmul.mubr.bf16.gmra.mrb[0].mxu0 %v344
      %v449 = vpop.f32.mrb[0].mxu0
      %v450 = vadd.f32 %v221, %v449
      %v451 = vpop.f32.mrb[0].mxu0
      %v452 = vpop.f32.mrb[0].mxu0
      %v453 = vadd.f32 %v221, %v452
      %v454 = vpop.f32.mrb[0].mxu0
      %455 = vmatprep.mubr.bf16.mxu0 0
      %456 = vmatmul.mubr.bf16.gmra.mrb[0].mxu0 %v347
      %v457 = vpop.f32.mrb[0].mxu0
      %v458 = vadd.f32 %v221, %v457
      %v459 = vpop.f32.mrb[0].mxu0
      %v460 = vpop.f32.mrb[0].mxu0
      %v461 = vadd.f32 %v221, %v460
      %v462 = vpop.f32.mrb[0].mxu0
      %463 = vmatprep.mubr.bf16.mxu0 0
      %464 = vmatmul.mubr.bf16.gmra.mrb[0].mxu0 %v350
      %v465 = vpop.f32.mrb[0].mxu0
      %v466 = vadd.f32 %v221, %v465
      %v467 = vpop.f32.mrb[0].mxu0
      %v468 = vpop.f32.mrb[0].mxu0
      %v469 = vadd.f32 %v221, %v468
      %v470 = vpop.f32.mrb[0].mxu0
      %471 = vmatprep.mubr.bf16.mxu0 0
      %472 = vmatmul.mubr.bf16.gmra.mrb[0].mxu0 %v353
      %v473 = vpop.f32.mrb[0].mxu0
      %v474 = vadd.f32 %v221, %v473
      %v475 = vpop.f32.mrb[0].mxu0
      %v476 = vpop.f32.mrb[0].mxu0
      %v477 = vadd.f32 %v221, %v476
      %v478 = vpop.f32.mrb[0].mxu0
      %479 = vmatprep.mubr.bf16.mxu0 0
      %480 = vmatmul.mubr.bf16.gmra.mrb[0].mxu0 %v356
      %v481 = vpop.f32.mrb[0].mxu0
      %v482 = vadd.f32 %v221, %v481
      %v483 = vpop.f32.mrb[0].mxu0
      %v484 = vpop.f32.mrb[0].mxu0
      %v485 = vadd.f32 %v221, %v484
      %v486 = vpop.f32.mrb[0].mxu0
      %487 = vmatprep.mubr.bf16.mxu0 0
      %488 = vmatmul.mubr.bf16.gmra.mrb[0].mxu0 %v359
      %v489 = vpop.f32.mrb[0].mxu0
      %v490 = vadd.f32 %v221, %v489
      %v491 = vpop.f32.mrb[0].mxu0
      %v492 = vpop.f32.mrb[0].mxu0
      %v493 = vadd.f32 %v221, %v492
      %v494 = vpop.f32.mrb[0].mxu0
      %495 = vmatprep.mubr.bf16.mxu0 0
      %496 = vmatmul.mubr.bf16.gmra.mrb[0].mxu0 %v362
      %v497 = vpop.f32.mrb[0].mxu0
      %v498 = vadd.f32 %v221, %v497
      %v499 = vpop.f32.mrb[0].mxu0
      %v500 = vpop.f32.mrb[0].mxu0
      %v501 = vadd.f32 %v221, %v500
      %v502 = vpop.f32.mrb[0].mxu0
      %503 = vmatprep.mubr.bf16.mxu0 0
      %504 = vmatmul.mubr.bf16.gmra.mrb[0].mxu0 %v365
      %v505 = vpop.f32.mrb[0].mxu0
      %v506 = vadd.f32 %v221, %v505
      %v507 = vpop.f32.mrb[0].mxu0
      %v508 = vpop.f32.mrb[0].mxu0
      %v509 = vadd.f32 %v221, %v508
      %v510 = vpop.f32.mrb[0].mxu0
      %511 = vmatprep.mubr.bf16.mxu0 0
      %512 = vmatmul.mubr.bf16.gmra.mrb[0].mxu0 %v368
      %v513 = vpop.f32.mrb[0].mxu0
      %v514 = vadd.f32 %v221, %v513
      %v515 = vpop.f32.mrb[0].mxu0
      %v516 = vpop.f32.mrb[0].mxu0
      %v517 = vadd.f32 %v221, %v516
      %v518 = vpop.f32.mrb[0].mxu0
      %519 = vmatprep.mubr.bf16.mxu0 0
      %520 = vmatmul.mubr.bf16.gmra.mrb[0].mxu0 %v371
      %v521 = vpop.f32.mrb[0].mxu0
      %v522 = vadd.f32 %v221, %v521
      %v523 = vpop.f32.mrb[0].mxu0
      %v524 = vpop.f32.mrb[0].mxu0
      %v525 = vadd.f32 %v221, %v524
      %v526 = vpop.f32.mrb[0].mxu0
      %527 = vmatprep.mubr.bf16.mxu0 0
      %528 = vmatmul.mubr.bf16.gmra.mrb[0].mxu0 %v374
      %v529 = vpop.f32.mrb[0].mxu0
      %v530 = vadd.f32 %v221, %v529
      %v531 = vpop.f32.mrb[0].mxu0
      %v532 = vpop.f32.mrb[0].mxu0
      %v533 = vadd.f32 %v221, %v532
      %v534 = vpop.f32.mrb[0].mxu0
      %535 = vmatprep.mubr.bf16.mxu0 0
      %536 = vmatmul.mubr.bf16.gmra.mrb[0].mxu0 %v377
      %v537 = vpop.f32.mrb[0].mxu0
      %v538 = vadd.f32 %v221, %v537
      %v539 = vpop.f32.mrb[0].mxu0
      %v540 = vpop.f32.mrb[0].mxu0
      %v541 = vadd.f32 %v221, %v540
      %v542 = vpop.f32.mrb[0].mxu0
      %543 = vdwg.mxu0
      %v544 = vmax.f32 %v418, 0.0
      %v545 = vmax.f32 %v421, 0.0
      %v546 = vmax.f32 %v426, 0.0
      %v547 = vmax.f32 %v429, 0.0
      %v548 = vmax.f32 %v434, 0.0
      %v549 = vmax.f32 %v437, 0.0
      %v550 = vmax.f32 %v442, 0.0
      %v551 = vmax.f32 %v445, 0.0
      %v552 = vmax.f32 %v450, 0.0
      %v553 = vmax.f32 %v453, 0.0
      %v554 = vmax.f32 %v458, 0.0
      %v555 = vmax.f32 %v461, 0.0
      %v556 = vmax.f32 %v466, 0.0
      %v557 = vmax.f32 %v469, 0.0
      %v558 = vmax.f32 %v474, 0.0
      %v559 = vmax.f32 %v477, 0.0
      %v560 = vmax.f32 %v482, 0.0
      %v561 = vmax.f32 %v485, 0.0
      %v562 = vmax.f32 %v490, 0.0
      %v563 = vmax.f32 %v493, 0.0
      %v564 = vmax.f32 %v498, 0.0
      %v565 = vmax.f32 %v501, 0.0
      %v566 = vmax.f32 %v506, 0.0
      %v567 = vmax.f32 %v509, 0.0
      %v568 = vmax.f32 %v514, 0.0
      %v569 = vmax.f32 %v517, 0.0
      %v570 = vmax.f32 %v522, 0.0
      %v571 = vmax.f32 %v525, 0.0
      %v572 = vmax.f32 %v530, 0.0
      %v573 = vmax.f32 %v533, 0.0
      %v574 = vmax.f32 %v538, 0.0
      %v575 = vmax.f32 %v541, 0.0
      %vm576 = vcmask 130048
      %577 = vst.msk [vmem:[%s172] sm:$0xff] %vm576, %v544
      %578 = vst.msk [vmem:[%s172 + $0x8] sm:$0xff] %vm576, %v545
      %579 = vst.msk [vmem:[%s172 + $0x10] sm:$0xff] %vm576, %v546
      %580 = vst.msk [vmem:[%s172 + $0x18] sm:$0xff] %vm576, %v547
      %581 = vst.msk [vmem:[%s172 + $0x20] sm:$0xff] %vm576, %v548
      %582 = vst.msk [vmem:[%s172 + $0x28] sm:$0xff] %vm576, %v549
      %583 = vst.msk [vmem:[%s172 + $0x30] sm:$0xff] %vm576, %v550
      %584 = vst.msk [vmem:[%s172 + $0x38] sm:$0xff] %vm576, %v551
      %585 = vst.msk [vmem:[%s172 + $0x40] sm:$0xff] %vm576, %v552
      %586 = vst.msk [vmem:[%s172 + $0x48] sm:$0xff] %vm576, %v553
      %587 = vst.msk [vmem:[%s172 + $0x50] sm:$0xff] %vm576, %v554
      %588 = vst.msk [vmem:[%s172 + $0x58] sm:$0xff] %vm576, %v555
      %589 = vst.msk [vmem:[%s172 + $0x60] sm:$0xff] %vm576, %v556
      %590 = vst.msk [vmem:[%s172 + $0x68] sm:$0xff] %vm576, %v557
      %591 = vst.msk [vmem:[%s172 + $0x70] sm:$0xff] %vm576, %v558
      %592 = vst.msk [vmem:[%s172 + $0x78] sm:$0xff] %vm576, %v559
      %593 = vst.msk [vmem:[%s172 + $0x80] sm:$0xff] %vm576, %v560
      %594 = vst.msk [vmem:[%s172 + $0x88] sm:$0xff] %vm576, %v561
      %595 = vst.msk [vmem:[%s172 + $0x90] sm:$0xff] %vm576, %v562
      %596 = vst.msk [vmem:[%s172 + $0x98] sm:$0xff] %vm576, %v563
      %597 = vst.msk [vmem:[%s172 + $0xa0] sm:$0xff] %vm576, %v564
      %598 = vst.msk [vmem:[%s172 + $0xa8] sm:$0xff] %vm576, %v565
      %599 = vst.msk [vmem:[%s172 + $0xb0] sm:$0xff] %vm576, %v566
      %600 = vst.msk [vmem:[%s172 + $0xb8] sm:$0xff] %vm576, %v567
      %601 = vst.msk [vmem:[%s172 + $0xc0] sm:$0xff] %vm576, %v568
      %602 = vst.msk [vmem:[%s172 + $0xc8] sm:$0xff] %vm576, %v569
      %603 = vst.msk [vmem:[%s172 + $0xd0] sm:$0xff] %vm576, %v570
      %604 = vst.msk [vmem:[%s172 + $0xd8] sm:$0xff] %vm576, %v571
      %605 = vst.msk [vmem:[%s172 + $0xe0] sm:$0xff] %vm576, %v572
      %606 = vst.msk [vmem:[%s172 + $0xe8] sm:$0xff] %vm576, %v573
      %607 = vst.msk [vmem:[%s172 + $0xf0] sm:$0xff] %vm576, %v574
      %608 = vst.msk [vmem:[%s172 + $0xf8] sm:$0xff] %vm576, %v575
      %s609 = smul.u32 32, %s14
      %p610 = scmp.lt.s32.totalorder %s609, 63
      %s611 = scalar_select %p610, %s609, 63
      %s612 = smul.addr %s611, 8
      %s613 = scalar_lea.vmem %s3, %s612
      // Predicated region
      $region33: #{facenet_embedder_forward.15} parent=31 // pred_check
        %p614 = pneg %p100
      $region34: #{facenet_embedder_forward.15} parent=31 // pred_check_branch
        %616 = sbr.rel (%p614) target = $region36
      $region35: #{facenet_embedder_forward.15} parent=31 // pred_region
        %s617 = smul.u32 32, %s14
      $region36: #{facenet_embedder_forward.15} parent=31 // pred_fallthru
        _
    $region32: #{facenet_embedder_forward.15} parent=5 // pred_fallthru
      _
    %p618 = scmp.le.s32.totalorder 2, %s9
    // Predicated region
    $region37: #{facenet_embedder_forward.15} parent=5 // pred_check
      %p619 = pneg %p618
    $region38: #{facenet_embedder_forward.15} parent=5 // pred_check_branch
      %621 = sbr.rel (%p619) target = $region40
    $region39: #{facenet_embedder_forward.15} parent=5 // pred_region
      %s622 = ssub.s32 %s9, 2
      // Predicated region
      $region41: #{facenet_embedder_forward.15} parent=39 // pred_check
        %p623 = pneg %p106
      $region42: #{facenet_embedder_forward.15} parent=39 // pred_check_branch
        %625 = sbr.rel (%p623) target = $region44
      $region43: #{facenet_embedder_forward.15} parent=39 // pred_region
        %s626 = smul.u32 32, %s15
        %p627 = scmp.lt.s32.totalorder %s626, 63
        %s628 = scalar_select %p627, %s626, 63
        %s629 = smul.addr %s628, 8
        %s630 = scalar_lea.vmem %s3, %s629
      $region44: #{facenet_embedder_forward.15} parent=39 // pred_fallthru
        _
    $region40: #{facenet_embedder_forward.15} parent=5 // pred_fallthru
      _
  $region6: #{facenet_embedder_forward.15} parent=0 // loop_footer
    %s13 = sadd.s32 1, %s9
  $region7: #{facenet_embedder_forward.15} parent=0 // loop_footer_branch
    %8 = sbr.rel target = $region3
  $region8: #{facenet_embedder_forward.15} parent=0 // loop_exit
    _

// kernel: squeeze.0
$region0: #{squeeze.0}
  %s0 = inlined_call_operand.vmem [shape: bf16[1568], index: 0, kind: input, shape index: {}]
  %s1 = inlined_call_operand.vmem [shape: bf16[98,16], index: 1, kind: output, shape index: {}]
  $region1: #{squeeze.0} parent=0
    #allocation0 [shape = 'u8[53248]{0}', space=vmem, size = 0xd000, scoped, tag = 'scoped mem for output reshape']
    #allocation1 [shape = 'u8[8192]{0}', space=vmem, size = 0x2000, scoped, tag = 'scoped mem for input reshape']
    %s3 = smul.u32 4, 2
    %s4 = sshllo.u32 0, %s3
    %s5 = scalar_lea.vmem %s0, 4
    %s6 = sshrl.u32 %s4, 1
    %s7 = sor.u32 %s4, %s6
    %s8 = sand.u32 %s7, 85
    %s9 = sshrl.u32 %s8, 1
    %s10 = sor.u32 %s8, %s9
    %s11 = sand.u32 51, %s10
    %s12 = sshrl.u32 %s11, 2
    %s13 = sor.u32 %s11, %s12
    %s14 = sand.u32 15, %s13
    %v15 = vld [vmem:[%s5] sm:%s14]
    %v16 = vunpack.c.l.bf16 %v15
    %v17 = vunpack.c.h.bf16 %v15
    %s18 = scalar_lea.vmem [#allocation1], 8
    %19 = vst [vmem:[%s18] sm:%s4] %v16
    %s20 = sshrl.u32 %s4, 1
    %s21 = sor.u32 %s4, %s20
    %s22 = sand.u32 %s21, 85
    %s23 = sshrl.u32 %s22, 1
    %s24 = sor.u32 %s22, %s23
    %s25 = sand.u32 51, %s24
    %s26 = sshrl.u32 %s25, 2
    %s27 = sor.u32 %s25, %s26
    %s28 = sand.u32 15, %s27
    %v29 = vld [vmem:[%s0] sm:%s28]
    %v30 = vunpack.c.l.bf16 %v29
    %v31 = vunpack.c.h.bf16 %v29
    %32 = vst [vmem:[#allocation1] sm:%s4] %v30
    %v33 = vld [vmem:[#allocation1] sm:$0xff]
    %vm34 = vcmask 130048
    %35 = vst.msk [vmem:[#allocation0] ss:$8 sm:$0xf] %vm34, %v33
    %36 = vst.msk [vmem:[#allocation0] ss:$8 sm:$0xf0] %vm34, %v33
    %s37 = scalar_lea.vmem [#allocation1], 8
    %v38 = vld [vmem:[%s37] sm:$0x1f]
    %vm39 = vcmask 130048
    %s40 = scalar_lea.vmem [#allocation0], 64
    %41 = vst.msk [vmem:[%s40] ss:$8 sm:$0xf] %vm39, %v38
    %s42 = scalar_lea.vmem [#allocation0], 92
    %43 = vst.msk [vmem:[%s42] sm:$0x10] %vm39, %v38
    %v44 = vld [vmem:[#allocation1] sm:$0xff]
    %45 = vrot.lane.b32.xlu0 %v44, 112
    %v46 = vpop.permute.xlu0 %45
    %vm47 = vcmask 130048
    %s48 = scalar_lea.vmem [#allocation0], 1
    %49 = vst.msk [vmem:[%s48] ss:$8 sm:$0xf] %vm47, %v46
    %s50 = scalar_lea.vmem [#allocation0], 1
    %51 = vst.msk [vmem:[%s50] ss:$8 sm:$0xf0] %vm47, %v46
    %s52 = scalar_lea.vmem [#allocation1], 8
    %v53 = vld [vmem:[%s52] sm:$0x1f]
    %54 = vrot.lane.b32.xlu0 %v53, 112
    %v55 = vpop.permute.xlu0 %54
    %vm56 = vcmask 130048
    %s57 = scalar_lea.vmem [#allocation0], 65
    %58 = vst.msk [vmem:[%s57] ss:$8 sm:$0xf] %vm56, %v55
    %s59 = scalar_lea.vmem [#allocation0], 93
    %60 = vst.msk [vmem:[%s59] sm:$0x10] %vm56, %v55
    %v61 = vld [vmem:[#allocation1] sm:$0xff]
    %62 = vrot.lane.b32.xlu0 %v61, 96
    %v63 = vpop.permute.xlu0 %62
    %vm64 = vcmask 130048
    %s65 = scalar_lea.vmem [#allocation0], 2
    %66 = vst.msk [vmem:[%s65] ss:$8 sm:$0xf] %vm64, %v63
    %s67 = scalar_lea.vmem [#allocation0], 2
    %68 = vst.msk [vmem:[%s67] ss:$8 sm:$0xf0] %vm64, %v63
    %s69 = scalar_lea.vmem [#allocation1], 8
    %v70 = vld [vmem:[%s69] sm:$0xf]
    %71 = vrot.lane.b32.xlu0 %v70, 96
    %v72 = vpop.permute.xlu0 %71
    %vm73 = vcmask 130048
    %s74 = scalar_lea.vmem [#allocation0], 66
    %75 = vst.msk [vmem:[%s74] ss:$8 sm:$0xf] %vm73, %v72
    %v76 = vld [vmem:[#allocation1] sm:$0xff]
    %77 = vrot.lane.b32.xlu0 %v76, 80
    %v78 = vpop.permute.xlu0 %77
    %vm79 = vcmask 130048
    %s80 = scalar_lea.vmem [#allocation0], 3
    %81 = vst.msk [vmem:[%s80] ss:$8 sm:$0xf] %vm79, %v78
    %s82 = scalar_lea.vmem [#allocation0], 3
    %83 = vst.msk [vmem:[%s82] ss:$8 sm:$0xf0] %vm79, %v78
    %s84 = scalar_lea.vmem [#allocation1], 8
    %v85 = vld [vmem:[%s84] sm:$0xf]
    %86 = vrot.lane.b32.xlu0 %v85, 80
    %v87 = vpop.permute.xlu0 %86
    %vm88 = vcmask 130048
    %s89 = scalar_lea.vmem [#allocation0], 67
    %90 = vst.msk [vmem:[%s89] ss:$8 sm:$0xf] %vm88, %v87
    %v91 = vld [vmem:[#allocation1] sm:$0xff]
    %92 = vrot.lane.b32.xlu0 %v91, 64
    %v93 = vpop.permute.xlu0 %92
    %vm94 = vcmask 130048
    %s95 = scalar_lea.vmem [#allocation0], 4
    %96 = vst.msk [vmem:[%s95] ss:$8 sm:$0xf] %vm94, %v93
    %s97 = scalar_lea.vmem [#allocation0], 4
    %98 = vst.msk [vmem:[%s97] ss:$8 sm:$0xf0] %vm94, %v93
    %s99 = scalar_lea.vmem [#allocation1], 8
    %v100 = vld [vmem:[%s99] sm:$0xf]
    %101 = vrot.lane.b32.xlu0 %v100, 64
    %v102 = vpop.permute.xlu0 %101
    %vm103 = vcmask 130048
    %s104 = scalar_lea.vmem [#allocation0], 68
    %105 = vst.msk [vmem:[%s104] ss:$8 sm:$0xf] %vm103, %v102
    %v106 = vld [vmem:[#allocation1] sm:$0xff]
    %107 = vrot.lane.b32.xlu0 %v106, 48
    %v108 = vpop.permute.xlu0 %107
    %vm109 = vcmask 130048
    %s110 = scalar_lea.vmem [#allocation0], 5
    %111 = vst.msk [vmem:[%s110] ss:$8 sm:$0xf] %vm109, %v108
    %s112 = scalar_lea.vmem [#allocation0], 5
    %113 = vst.msk [vmem:[%s112] ss:$8 sm:$0xf0] %vm109, %v108
    %s114 = scalar_lea.vmem [#allocation1], 8
    %v115 = vld [vmem:[%s114] sm:$0xf]
    %116 = vrot.lane.b32.xlu0 %v115, 48
    %v117 = vpop.permute.xlu0 %116
    %vm118 = vcmask 130048
    %s119 = scalar_lea.vmem [#allocation0], 69
    %120 = vst.msk [vmem:[%s119] ss:$8 sm:$0xf] %vm118, %v117
    %v121 = vld [vmem:[#allocation1] sm:$0xff]
    %122 = vrot.lane.b32.xlu0 %v121, 32
    %v123 = vpop.permute.xlu0 %122
    %vm124 = vcmask 130048
    %s125 = scalar_lea.vmem [#allocation0], 6
    %126 = vst.msk [vmem:[%s125] ss:$8 sm:$0xf] %vm124, %v123
    %s127 = scalar_lea.vmem [#allocation0], 6
    %128 = vst.msk [vmem:[%s127] ss:$8 sm:$0xf0] %vm124, %v123
    %s129 = scalar_lea.vmem [#allocation1], 8
    %v130 = vld [vmem:[%s129] sm:$0xf]
    %131 = vrot.lane.b32.xlu0 %v130, 32
    %v132 = vpop.permute.xlu0 %131
    %vm133 = vcmask 130048
    %s134 = scalar_lea.vmem [#allocation0], 70
    %135 = vst.msk [vmem:[%s134] ss:$8 sm:$0xf] %vm133, %v132
    %v136 = vld [vmem:[#allocation1] sm:$0xff]
    %137 = vrot.lane.b32.xlu0 %v136, 16
    %v138 = vpop.permute.xlu0 %137
    %vm139 = vcmask 130048
    %s140 = scalar_lea.vmem [#allocation0], 7
    %141 = vst.msk [vmem:[%s140] ss:$8 sm:$0xf] %vm139, %v138
    %s142 = scalar_lea.vmem [#allocation0], 7
    %143 = vst.msk [vmem:[%s142] ss:$8 sm:$0xf0] %vm139, %v138
    %s144 = scalar_lea.vmem [#allocation1], 8
    %v145 = vld [vmem:[%s144] sm:$0xf]
    %146 = vrot.lane.b32.xlu0 %v145, 16
    %v147 = vpop.permute.xlu0 %146
    %vm148 = vcmask 130048
    %s149 = scalar_lea.vmem [#allocation0], 71
    %150 = vst.msk [vmem:[%s149] ss:$8 sm:$0xf] %vm148, %v147
    %s152 = smul.u32 4, 2
    %s153 = sshllo.u32 0, %s152
    %s154 = sshrl.u32 %s152, 1
    %v155 = vld [vmem:[#allocation0] sm:%s153]
    %v156 = vpack.c.bf16 0.0, %v155
    %s157 = sshllo.u32 0, %s154
    %158 = vst [vmem:[%s1] sm:%s157] %v156
    %s159 = scalar_lea.vmem [#allocation0], 8
    %v160 = vld [vmem:[%s159] sm:%s153]
    %v161 = vpack.c.bf16 0.0, %v160
    %s162 = sshllo.u32 0, %s154
    %s163 = scalar_lea.vmem %s1, 4
    %164 = vst [vmem:[%s163] sm:%s162] %v161
    %s165 = scalar_lea.vmem [#allocation0], 16
    %v166 = vld [vmem:[%s165] sm:%s153]
    %v167 = vpack.c.bf16 0.0, %v166
    %s168 = sshllo.u32 0, %s154
    %s169 = smul.addr 4, 2
    %s170 = scalar_lea.vmem %s1, %s169
    %171 = vst [vmem:[%s170] sm:%s168] %v167
    %s172 = scalar_lea.vmem [#allocation0], 24
    %v173 = vld [vmem:[%s172] sm:%s153]
    %v174 = vpack.c.bf16 0.0, %v173
    %s175 = sshllo.u32 0, %s154
    %s176 = smul.addr 4, 3
    %s177 = scalar_lea.vmem %s1, %s176
    %178 = vst [vmem:[%s177] sm:%s175] %v174
    %s179 = scalar_lea.vmem [#allocation0], 32
    %v180 = vld [vmem:[%s179] sm:%s153]
    %v181 = vpack.c.bf16 0.0, %v180
    %s182 = sshllo.u32 0, %s154
    %s183 = smul.addr 4, 4
    %s184 = scalar_lea.vmem %s1, %s183
    %185 = vst [vmem:[%s184] sm:%s182] %v181
    %s186 = scalar_lea.vmem [#allocation0], 40
    %v187 = vld [vmem:[%s186] sm:%s153]
    %v188 = vpack.c.bf16 0.0, %v187
    %s189 = sshllo.u32 0, %s154
    %s190 = smul.addr 4, 5
    %s191 = scalar_lea.vmem %s1, %s190
    %192 = vst [vmem:[%s191] sm:%s189] %v188
    %s193 = scalar_lea.vmem [#allocation0], 48
    %v194 = vld [vmem:[%s193] sm:%s153]
    %v195 = vpack.c.bf16 0.0, %v194
    %s196 = sshllo.u32 0, %s154
    %s197 = smul.addr 4, 6
    %s198 = scalar_lea.vmem %s1, %s197
    %199 = vst [vmem:[%s198] sm:%s196] %v195
    %s200 = scalar_lea.vmem [#allocation0], 56
    %v201 = vld [vmem:[%s200] sm:%s153]
    %v202 = vpack.c.bf16 0.0, %v201
    %s203 = sshllo.u32 0, %s154
    %s204 = smul.addr 4, 7
    %s205 = scalar_lea.vmem %s1, %s204
    %206 = vst [vmem:[%s205] sm:%s203] %v202
    %s207 = scalar_lea.vmem [#allocation0], 64
    %v208 = vld [vmem:[%s207] sm:%s153]
    %v209 = vpack.c.bf16 0.0, %v208
    %s210 = sshllo.u32 0, %s154
    %s211 = smul.addr 4, 8
    %s212 = scalar_lea.vmem %s1, %s211
    %213 = vst [vmem:[%s212] sm:%s210] %v209
    %s214 = scalar_lea.vmem [#allocation0], 72
    %v215 = vld [vmem:[%s214] sm:%s153]
    %v216 = vpack.c.bf16 0.0, %v215
    %s217 = sshllo.u32 0, %s154
    %s218 = smul.addr 4, 9
    %s219 = scalar_lea.vmem %s1, %s218
    %220 = vst [vmem:[%s219] sm:%s217] %v216
    %s221 = scalar_lea.vmem [#allocation0], 80
    %v222 = vld [vmem:[%s221] sm:%s153]
    %v223 = vpack.c.bf16 0.0, %v222
    %s224 = sshllo.u32 0, %s154
    %s225 = smul.addr 4, 10
    %s226 = scalar_lea.vmem %s1, %s225
    %227 = vst [vmem:[%s226] sm:%s224] %v223
    %s228 = scalar_lea.vmem [#allocation0], 88
    %v229 = vld [vmem:[%s228] sm:%s153]
    %v230 = vpack.c.bf16 0.0, %v229
    %s231 = sshllo.u32 0, %s154
    %s232 = smul.addr 4, 11
    %s233 = scalar_lea.vmem %s1, %s232
    %234 = vst [vmem:[%s233] sm:%s231] %v230
    %s235 = scalar_lea.vmem [#allocation0], 96
    %v236 = vld [vmem:[%s235] sm:%s153]
    %v237 = vpack.c.bf16 0.0, %v236
    %s238 = sshllo.u32 0, %s154
    %s239 = smul.addr 4, 12
    %s240 = scalar_lea.vmem %s1, %s239
    %241 = vst [vmem:[%s240] sm:%s238] %v237

// kernel: facenet_embedder_forward.16
$region0: #{facenet_embedder_forward.16}
  #allocation0 [shape = 'u32[]', space=smem, size = 0x4, offset = 0x4, fixed_abs, tag = 'smem constant byte address 0x4 - core index']
  #allocation1 [shape = 'u32[144,128]{1,0:T(1,128)}', space=vmem, size = 0x12000, scoped, tag = 'internal scratch']
  %s0 = inlined_call_operand.vmem [shape: f32[9,1664], index: 0, kind: input, shape index: {}]
  %s1 = inlined_call_operand.vmem [shape: f32[1,1664], index: 1, kind: output, shape index: {}]
  %s2 = sld [smem:[#allocation0]]
  $region14: #{facenet_embedder_forward.16} parent=0
    _
  %s4 = ssub.s32 1, %s2
  %s5 = scalar_select 0, %s4, %s2
  // Predicated region
  $region2: #{facenet_embedder_forward.16} parent=0 // pred_check
    _
  $region3: #{facenet_embedder_forward.16} parent=0 // pred_check_branch
    %7 = sbr.rel (0) target = $region5
  $region4: #{facenet_embedder_forward.16} parent=0 // pred_region
    _
  $region5: #{facenet_embedder_forward.16} parent=0 // pred_fallthru
    _
  %v8 = vld [vmem:[%s0] ss:$8 sm:$0xf]
  %v9 = vld [vmem:[%s0] ss:$8 sm:$0xf0]
  %v10 = vor.u32 %v8, %v9
  %s11 = scalar_lea.vmem %s0, 64
  %v12 = vld [vmem:[%s11] ss:$8 sm:$0xf]
  %v13 = vld [vmem:[%s11] ss:$8 sm:$0x10]
  %v14 = vor.u32 %v12, %v13
  %s15 = scalar_lea.vmem %s0, 1
  %v16 = vld [vmem:[%s15] ss:$8 sm:$0xf]
  %v17 = vld [vmem:[%s15] ss:$8 sm:$0xf0]
  %v18 = vor.u32 %v16, %v17
  %s19 = scalar_lea.vmem %s0, 65
  %v20 = vld [vmem:[%s19] ss:$8 sm:$0xf]
  %v21 = vld [vmem:[%s19] ss:$8 sm:$0x10]
  %v22 = vor.u32 %v20, %v21
  %v23 = vmax.f32 %v10, %v18
  %v24 = vmax.f32 %v14, %v22
  %s25 = scalar_lea.vmem %s0, 2
  %v26 = vld [vmem:[%s25] ss:$8 sm:$0xf]
  %v27 = vld [vmem:[%s25] ss:$8 sm:$0xf0]
  %v28 = vor.u32 %v26, %v27
  %s29 = scalar_lea.vmem %s0, 66
  %v30 = vld [vmem:[%s29] ss:$8 sm:$0xf]
  %v31 = vld [vmem:[%s29] ss:$8 sm:$0x10]
  %v32 = vor.u32 %v30, %v31
  %v33 = vmax.f32 %v23, %v28
  %v34 = vmax.f32 %v24, %v32
  %s35 = scalar_lea.vmem %s0, 3
  %v36 = vld [vmem:[%s35] ss:$8 sm:$0xf]
  %v37 = vld [vmem:[%s35] ss:$8 sm:$0xf0]
  %v38 = vor.u32 %v36, %v37
  %s39 = scalar_lea.vmem %s0, 67
  %v40 = vld [vmem:[%s39] ss:$8 sm:$0xf]
  %v41 = vld [vmem:[%s39] ss:$8 sm:$0x10]
  %v42 = vor.u32 %v40, %v41
  %v43 = vmax.f32 %v33, %v38
  %v44 = vmax.f32 %v34, %v42
  %s45 = scalar_lea.vmem %s0, 4
  %v46 = vld [vmem:[%s45] ss:$8 sm:$0xf]
  %v47 = vld [vmem:[%s45] ss:$8 sm:$0xf0]
  %v48 = vor.u32 %v46, %v47
  %s49 = scalar_lea.vmem %s0, 68
  %v50 = vld [vmem:[%s49] ss:$8 sm:$0xf]
  %v51 = vld [vmem:[%s49] ss:$8 sm:$0x10]
  %v52 = vor.u32 %v50, %v51
  %v53 = vmax.f32 %v43, %v48
  %v54 = vmax.f32 %v44, %v52
  %s55 = scalar_lea.vmem %s0, 5
  %v56 = vld [vmem:[%s55] ss:$8 sm:$0xf]
  %v57 = vld [vmem:[%s55] ss:$8 sm:$0xf0]
  %v58 = vor.u32 %v56, %v57
  %s59 = scalar_lea.vmem %s0, 69
  %v60 = vld [vmem:[%s59] ss:$8 sm:$0xf]
  %v61 = vld [vmem:[%s59] ss:$8 sm:$0x10]
  %v62 = vor.u32 %v60, %v61
  %v63 = vmax.f32 %v53, %v58
  %v64 = vmax.f32 %v54, %v62
  %s65 = scalar_lea.vmem %s0, 6
  %v66 = vld [vmem:[%s65] ss:$8 sm:$0xf]
  %v67 = vld [vmem:[%s65] ss:$8 sm:$0xf0]
  %v68 = vor.u32 %v66, %v67
  %s69 = scalar_lea.vmem %s0, 70
  %v70 = vld [vmem:[%s69] ss:$8 sm:$0xf]
  %v71 = vld [vmem:[%s69] ss:$8 sm:$0x10]
  %v72 = vor.u32 %v70, %v71
  %v73 = vmax.f32 %v63, %v68
  %v74 = vmax.f32 %v64, %v72
  %s75 = scalar_lea.vmem %s0, 7
  %v76 = vld [vmem:[%s75] ss:$8 sm:$0xf]
  %v77 = vld [vmem:[%s75] ss:$8 sm:$0xf0]
  %v78 = vor.u32 %v76, %v77
  %s79 = scalar_lea.vmem %s0, 71
  %v80 = vld [vmem:[%s79] ss:$8 sm:$0xf]
  %v81 = vld [vmem:[%s79] ss:$8 sm:$0x10]
  %v82 = vor.u32 %v80, %v81
  %v83 = vmax.f32 %v73, %v78
  %v84 = vmax.f32 %v74, %v82
  %s85 = scalar_lea.vmem %s0, 104
  %v86 = vld [vmem:[%s85] ss:$8 sm:$0xf]
  %v87 = vld [vmem:[%s85] ss:$8 sm:$0xf0]
  %v88 = vor.u32 %v86, %v87
  %s89 = scalar_lea.vmem %s0, 168
  %v90 = vld [vmem:[%s89] ss:$8 sm:$0xf]
  %v91 = vld [vmem:[%s89] ss:$8 sm:$0x10]
  %v92 = vor.u32 %v90, %v91
  %v93 = vmax.f32 %v83, %v88
  %v94 = vmax.f32 %v84, %v92
  %95 = vst [vmem:[%s1] sm:$0xff] %v93
  %v96 = vlaneseq
  %vm97 = vcmp.ge.s32.totalorder %v96, 0
  %vm98 = vcmp.lt.s32.totalorder %v96, 640
  %vm99 = vmand %vm97, %vm98
  %100 = vst.msk [vmem:[%s1 + $0x8] sm:$0x1f] %vm99, %v94
  // Predicated region
  $region6: #{facenet_embedder_forward.16} parent=0 // pred_check
    _
  $region7: #{facenet_embedder_forward.16} parent=0 // pred_check_branch
    %102 = sbr.rel (0) target = $region9
  $region8: #{facenet_embedder_forward.16} parent=0 // pred_region
    _
  $region9: #{facenet_embedder_forward.16} parent=0 // pred_fallthru
    _
  // Predicated region
  $region10: #{facenet_embedder_forward.16} parent=0 // pred_check
    _
  $region11: #{facenet_embedder_forward.16} parent=0 // pred_check_branch
    %104 = sbr.rel (0) target = $region13
  $region12: #{facenet_embedder_forward.16} parent=0 // pred_region
    _
  $region13: #{facenet_embedder_forward.16} parent=0 // pred_fallthru
    _

// kernel: facenet_embedder_forward.17
$region0: #{facenet_embedder_forward.17}
  #allocation0 [shape = 'u32[]', space=smem, size = 0x4, offset = 0x4, fixed_abs, tag = 'smem constant byte address 0x4 - core index']
  #allocation1 [shape = 'u32[144,128]{1,0:T(1,128)}', space=vmem, size = 0x12000, scoped, tag = 'internal scratch']
  %s0 = inlined_call_operand.vmem [shape: bf16[112,16], index: 0, kind: input, shape index: {}]
  %s1 = inlined_call_operand.vmem [shape: bf16[16,20], index: 1, kind: input, shape index: {}]
  %s2 = inlined_call_operand.vmem [shape: f32[1,20], index: 2, kind: input, shape index: {}]
  %s3 = inlined_call_operand.vmem [shape: f32[112,20], index: 3, kind: output, shape index: {}]
  %s4 = sld [smem:[#allocation0]]
  $region22: #{facenet_embedder_forward.17} parent=0
    _
  %s6 = ssub.s32 1, %s4
  %s7 = scalar_select 0, %s6, %s4
  // Predicated region
  $region2: #{facenet_embedder_forward.17} parent=0 // pred_check
    _
  $region3: #{facenet_embedder_forward.17} parent=0 // pred_check_branch
    %9 = sbr.rel (0) target = $region5
  $region4: #{facenet_embedder_forward.17} parent=0 // pred_region
    _
  $region5: #{facenet_embedder_forward.17} parent=0 // pred_fallthru
    _
  // Predicated region
  $region6: #{facenet_embedder_forward.17} parent=0 // pred_check
    _
  $region7: #{facenet_embedder_forward.17} parent=0 // pred_check_branch
    %11 = sbr.rel (0) target = $region9
  $region8: #{facenet_embedder_forward.17} parent=0 // pred_region
    _
  $region9: #{facenet_embedder_forward.17} parent=0 // pred_fallthru
    _
  // Predicated region
  $region10: #{facenet_embedder_forward.17} parent=0 // pred_check
    _
  $region11: #{facenet_embedder_forward.17} parent=0 // pred_check_branch
    %13 = sbr.rel (0) target = $region13
  $region12: #{facenet_embedder_forward.17} parent=0 // pred_region
    _
  $region13: #{facenet_embedder_forward.17} parent=0 // pred_fallthru
    _
  %v15 = vld [vmem:[%s0] sm:$0xf]
  %v16 = vld [vmem:[%s0 + $0x4] sm:$0xf]
  %v17 = vld [vmem:[%s0 + $0x8] sm:$0xf]
  %v18 = vld [vmem:[%s0 + $0xc] sm:$0xf]
  %v19 = vld [vmem:[%s0 + $0x10] sm:$0xf]
  %v20 = vld [vmem:[%s0 + $0x14] sm:$0xf]
  %v21 = vld [vmem:[%s0 + $0x18] sm:$0xf]
  %v22 = vld [vmem:[%s0 + $0x1c] sm:$0xf]
  %v23 = vld [vmem:[%s0 + $0x20] sm:$0xf]
  %v24 = vld [vmem:[%s0 + $0x24] sm:$0xf]
  %v25 = vld [vmem:[%s0 + $0x28] sm:$0xf]
  %v26 = vld [vmem:[%s0 + $0x2c] sm:$0xf]
  %v27 = vld [vmem:[%s0 + $0x30] sm:$0xf]
  %v28 = vld [vmem:[%s0 + $0x34] sm:$0xf]
  %v29 = vld [vmem:[%s1] sm:$0xf]
  %v30 = vld [vmem:[%s1 + $0x4] sm:$0xf]
  %v31 = vld [vmem:[%s2] sm:$0x1]
  %v33 = vlaneseq
  %v34 = vshrl.u32 %v33, 7
  %v35 = vsub.s32 0, %v34
  %v36 = vrot.slane %v31, %v35
  %v52 = vunpack.c.l.b16 %v15
  %v53 = vunpack.c.l.b16 %v16
  %v54 = vunpack.c.l.b16 %v17
  %v55 = vunpack.c.l.b16 %v18
  %v56 = vunpack.c.l.b16 %v19
  %v57 = vunpack.c.l.b16 %v20
  %v58 = vunpack.c.l.b16 %v21
  %v59 = vunpack.c.l.b16 %v22
  %v60 = vunpack.c.l.b16 %v23
  %v61 = vunpack.c.l.b16 %v24
  %v62 = vunpack.c.l.b16 %v25
  %v63 = vunpack.c.l.b16 %v26
  %v64 = vunpack.c.l.b16 %v27
  %v65 = vunpack.c.l.b16 %v28
  %v66 = vpack.c.b16 %v53, %v52
  %v67 = vpack.c.b16 %v55, %v54
  %v68 = vpack.c.b16 %v57, %v56
  %v69 = vpack.c.b16 %v59, %v58
  %v70 = vpack.c.b16 %v61, %v60
  %v71 = vpack.c.b16 %v63, %v62
  %v72 = vpack.c.b16 %v65, %v64
  %v75 = vunpack.c.l.b16 %v29
  %v76 = vunpack.c.l.b16 %v30
  %v77 = vpack.c.b16 %v76, %v75
  %vm79 = vcmask 130048
  %v81 = vsel %vm79, %v66, 0
  %v84 = vsel %vm79, %v67, 0
  %v87 = vsel %vm79, %v68, 0
  %v90 = vsel %vm79, %v69, 0
  %v93 = vsel %vm79, %v70, 0
  %v96 = vsel %vm79, %v71, 0
  %v99 = vsel %vm79, %v72, 0
  %101 = vmatprep.subr.bf16.mxu0 0
  %102 = vmatpush1.bf16.msra.mxu0 %v77
  %103 = vmatprep.subr.bf16.mxu0 0
  %104 = vmatpush1.bf16.msra.mxu0 0
  %105 = vmatprep.subr.bf16.mxu0 0
  %106 = vmatpush1.bf16.msra.mxu0 0
  %107 = vmatprep.subr.bf16.mxu0 0
  %108 = vmatpush1.bf16.msra.mxu0 0
  %109 = vmatprep.subr.bf16.mxu0 0
  %110 = vmatpush1.bf16.msra.mxu0 0
  %111 = vmatprep.subr.bf16.mxu0 0
  %112 = vmatpush1.bf16.msra.mxu0 0
  %113 = vmatprep.subr.bf16.mxu0 0
  %114 = vmatpush1.bf16.msra.mxu0 0
  %115 = vmatprep.subr.bf16.mxu0 0
  %116 = vmatpush1.bf16.msra.mxu0 0
  %117 = vmatprep.subr.bf16.mxu0 0
  %118 = vmatpush1.bf16.msra.mxu0 0
  %119 = vmatprep.subr.bf16.mxu0 0
  %120 = vmatpush1.bf16.msra.mxu0 0
  %121 = vmatprep.subr.bf16.mxu0 0
  %122 = vmatpush1.bf16.msra.mxu0 0
  %123 = vmatprep.subr.bf16.mxu0 0
  %124 = vmatpush1.bf16.msra.mxu0 0
  %125 = vmatprep.subr.bf16.mxu0 0
  %126 = vmatpush1.bf16.msra.mxu0 0
  %127 = vmatprep.subr.bf16.mxu0 0
  %128 = vmatpush1.bf16.msra.mxu0 0
  %129 = vmatprep.subr.bf16.mxu0 0
  %130 = vmatpush1.bf16.msra.mxu0 0
  %131 = vmatprep.subr.bf16.mxu0 0
  %132 = vmatpush1.bf16.msra.mxu0 0
  %133 = vmatprep.mubr.bf16.mxu0 0
  %134 = vmatmul.mubr.bf16.gmra.mrb[0].mxu0 %v81
  %v135 = vpop.f32.mrb[0].mxu0
  %v136 = vadd.f32 %v36, %v135
  %v137 = vpop.f32.mrb[0].mxu0
  %v138 = vpop.f32.mrb[0].mxu0
  %v139 = vadd.f32 %v36, %v138
  %v140 = vpop.f32.mrb[0].mxu0
  %141 = vmatprep.mubr.bf16.mxu0 0
  %142 = vmatmul.mubr.bf16.gmra.mrb[0].mxu0 %v84
  %v143 = vpop.f32.mrb[0].mxu0
  %v144 = vadd.f32 %v36, %v143
  %v145 = vpop.f32.mrb[0].mxu0
  %v146 = vpop.f32.mrb[0].mxu0
  %v147 = vadd.f32 %v36, %v146
  %v148 = vpop.f32.mrb[0].mxu0
  %149 = vmatprep.mubr.bf16.mxu0 0
  %150 = vmatmul.mubr.bf16.gmra.mrb[0].mxu0 %v87
  %v151 = vpop.f32.mrb[0].mxu0
  %v152 = vadd.f32 %v36, %v151
  %v153 = vpop.f32.mrb[0].mxu0
  %v154 = vpop.f32.mrb[0].mxu0
  %v155 = vadd.f32 %v36, %v154
  %v156 = vpop.f32.mrb[0].mxu0
  %157 = vmatprep.mubr.bf16.mxu0 0
  %158 = vmatmul.mubr.bf16.gmra.mrb[0].mxu0 %v90
  %v159 = vpop.f32.mrb[0].mxu0
  %v160 = vadd.f32 %v36, %v159
  %v161 = vpop.f32.mrb[0].mxu0
  %v162 = vpop.f32.mrb[0].mxu0
  %v163 = vadd.f32 %v36, %v162
  %v164 = vpop.f32.mrb[0].mxu0
  %165 = vmatprep.mubr.bf16.mxu0 0
  %166 = vmatmul.mubr.bf16.gmra.mrb[0].mxu0 %v93
  %v167 = vpop.f32.mrb[0].mxu0
  %v168 = vadd.f32 %v36, %v167
  %v169 = vpop.f32.mrb[0].mxu0
  %v170 = vpop.f32.mrb[0].mxu0
  %v171 = vadd.f32 %v36, %v170
  %v172 = vpop.f32.mrb[0].mxu0
  %173 = vmatprep.mubr.bf16.mxu0 0
  %174 = vmatmul.mubr.bf16.gmra.mrb[0].mxu0 %v96
  %v175 = vpop.f32.mrb[0].mxu0
  %v176 = vadd.f32 %v36, %v175
  %v177 = vpop.f32.mrb[0].mxu0
  %v178 = vpop.f32.mrb[0].mxu0
  %v179 = vadd.f32 %v36, %v178
  %v180 = vpop.f32.mrb[0].mxu0
  %181 = vmatprep.mubr.bf16.mxu0 0
  %182 = vmatmul.mubr.bf16.gmra.mrb[0].mxu0 %v99
  %v183 = vpop.f32.mrb[0].mxu0
  %v184 = vadd.f32 %v36, %v183
  %v185 = vpop.f32.mrb[0].mxu0
  %v186 = vpop.f32.mrb[0].mxu0
  %v187 = vadd.f32 %v36, %v186
  %v188 = vpop.f32.mrb[0].mxu0
  %189 = vdwg.mxu0
  %v190 = vmax.f32 %v136, 0.0
  %v191 = vmax.f32 %v139, 0.0
  %v192 = vmax.f32 %v144, 0.0
  %v193 = vmax.f32 %v147, 0.0
  %v194 = vmax.f32 %v152, 0.0
  %v195 = vmax.f32 %v155, 0.0
  %v196 = vmax.f32 %v160, 0.0
  %v197 = vmax.f32 %v163, 0.0
  %v198 = vmax.f32 %v168, 0.0
  %v199 = vmax.f32 %v171, 0.0
  %v200 = vmax.f32 %v176, 0.0
  %v201 = vmax.f32 %v179, 0.0
  %v202 = vmax.f32 %v184, 0.0
  %v203 = vmax.f32 %v187, 0.0
  %vm204 = vcmask 162816
  %205 = vst.msk [vmem:[%s3] sm:$0xff] %vm204, %v190
  %206 = vst.msk [vmem:[%s3 + $0x8] sm:$0xff] %vm204, %v191
  %207 = vst.msk [vmem:[%s3 + $0x10] sm:$0xff] %vm204, %v192
  %208 = vst.msk [vmem:[%s3 + $0x18] sm:$0xff] %vm204, %v193
  %209 = vst.msk [vmem:[%s3 + $0x20] sm:$0xff] %vm204, %v194
  %210 = vst.msk [vmem:[%s3 + $0x28] sm:$0xff] %vm204, %v195
  %211 = vst.msk [vmem:[%s3 + $0x30] sm:$0xff] %vm204, %v196
  %212 = vst.msk [vmem:[%s3 + $0x38] sm:$0xff] %vm204, %v197
  %213 = vst.msk [vmem:[%s3 + $0x40] sm:$0xff] %vm204, %v198
  %214 = vst.msk [vmem:[%s3 + $0x48] sm:$0xff] %vm204, %v199
  %215 = vst.msk [vmem:[%s3 + $0x50] sm:$0xff] %vm204, %v200
  %216 = vst.msk [vmem:[%s3 + $0x58] sm:$0xff] %vm204, %v201
  %217 = vst.msk [vmem:[%s3 + $0x60] sm:$0xff] %vm204, %v202
  %218 = vst.msk [vmem:[%s3 + $0x68] sm:$0xff] %vm204, %v203
  // Predicated region
  $region14: #{facenet_embedder_forward.17} parent=0 // pred_check
    _
  $region15: #{facenet_embedder_forward.17} parent=0 // pred_check_branch
    %220 = sbr.rel (0) target = $region17
  $region16: #{facenet_embedder_forward.17} parent=0 // pred_region
    _
  $region17: #{facenet_embedder_forward.17} parent=0 // pred_fallthru
    _
  // Predicated region
  $region18: #{facenet_embedder_forward.17} parent=0 // pred_check
    _
  $region19: #{facenet_embedder_forward.17} parent=0 // pred_check_branch
    %222 = sbr.rel (0) target = $region21
  $region20: #{facenet_embedder_forward.17} parent=0 // pred_region
    _
  $region21: #{facenet_embedder_forward.17} parent=0 // pred_fallthru
    _

// kernel: facenet_embedder_forward.18
$region0: #{facenet_embedder_forward.18}
  #allocation0 [shape = 'u32[]', space=smem, size = 0x4, offset = 0x4, fixed_abs, tag = 'smem constant byte address 0x4 - core index']
  #allocation1 [shape = 'u32[144,128]{1,0:T(1,128)}', space=vmem, size = 0x12000, scoped, tag = 'internal scratch']
  %s0 = inlined_call_operand.vmem [shape: bf16[64,180], index: 0, kind: input, shape index: {}]
  %s1 = inlined_call_operand.vmem [shape: bf16[180,24], index: 1, kind: input, shape index: {}]
  %s2 = inlined_call_operand.vmem [shape: f32[1,24], index: 2, kind: input, shape index: {}]
  %s3 = inlined_call_operand.vmem [shape: f32[64,24], index: 3, kind: output, shape index: {}]
  %s4 = sld [smem:[#allocation0]]
  $region22: #{facenet_embedder_forward.18} parent=0
    _
  %s6 = ssub.s32 1, %s4
  %s7 = scalar_select 0, %s6, %s4
  // Predicated region
  $region2: #{facenet_embedder_forward.18} parent=0 // pred_check
    _
  $region3: #{facenet_embedder_forward.18} parent=0 // pred_check_branch
    %9 = sbr.rel (0) target = $region5
  $region4: #{facenet_embedder_forward.18} parent=0 // pred_region
    _
  $region5: #{facenet_embedder_forward.18} parent=0 // pred_fallthru
    _
  // Predicated region
  $region6: #{facenet_embedder_forward.18} parent=0 // pred_check
    _
  $region7: #{facenet_embedder_forward.18} parent=0 // pred_check_branch
    %11 = sbr.rel (0) target = $region9
  $region8: #{facenet_embedder_forward.18} parent=0 // pred_region
    _
  $region9: #{facenet_embedder_forward.18} parent=0 // pred_fallthru
    _
  // Predicated region
  $region10: #{facenet_embedder_forward.18} parent=0 // pred_check
    _
  $region11: #{facenet_embedder_forward.18} parent=0 // pred_check_branch
    %13 = sbr.rel (0) target = $region13
  $region12: #{facenet_embedder_forward.18} parent=0 // pred_region
    _
  $region13: #{facenet_embedder_forward.18} parent=0 // pred_fallthru
    _
  %v15 = vld [vmem:[%s0] sm:$0xff]
  %v16 = vld [vmem:[%s0 + $0x8] sm:$0xff]
  %v17 = vld [vmem:[%s0 + $0x10] sm:$0xff]
  %v18 = vld [vmem:[%s0 + $0x18] sm:$0xff]
  %v19 = vld [vmem:[%s0 + $0x20] sm:$0xff]
  %v20 = vld [vmem:[%s0 + $0x28] sm:$0xff]
  %v21 = vld [vmem:[%s0 + $0x30] sm:$0xff]
  %v22 = vld [vmem:[%s0 + $0x38] sm:$0xff]
  %v23 = vld [vmem:[%s1] sm:$0xf]
  %v24 = vld [vmem:[%s1 + $0x4] sm:$0xf]
  %v25 = vld [vmem:[%s1 + $0x8] sm:$0xf]
  %v26 = vld [vmem:[%s1 + $0xc] sm:$0xf]
  %v27 = vld [vmem:[%s1 + $0x10] sm:$0xf]
  %v28 = vld [vmem:[%s1 + $0x14] sm:$0xf]
  %v29 = vld [vmem:[%s1 + $0x18] sm:$0xf]
  %v30 = vld [vmem:[%s1 + $0x1c] sm:$0xf]
  %v31 = vld [vmem:[%s1 + $0x20] sm:$0xf]
  %v32 = vld [vmem:[%s1 + $0x24] sm:$0xf]
  %v33 = vld [vmem:[%s1 + $0x28] sm:$0xf]
  %v34 = vld [vmem:[%s1 + $0x2c] sm:$0xf]
  %v35 = vld [vmem:[%s1 + $0x30] sm:$0xf]
  %v36 = vld [vmem:[%s1 + $0x34] sm:$0xf]
  %v37 = vld [vmem:[%s1 + $0x38] sm:$0xf]
  %v38 = vld [vmem:[%s1 + $0x3c] sm:$0xf]
  %v39 = vld [vmem:[%s1 + $0x40] sm:$0xf]
  %v40 = vld [vmem:[%s1 + $0x44] sm:$0xf]
  %v41 = vld [vmem:[%s1 + $0x48] sm:$0xf]
  %v42 = vld [vmem:[%s1 + $0x4c] sm:$0xf]
  %v43 = vld [vmem:[%s1 + $0x50] sm:$0xf]
  %v44 = vld [vmem:[%s1 + $0x54] sm:$0xf]
  %v45 = vld [vmem:[%s1 + $0x58] sm:$0x3]
  %v46 = vld [vmem:[%s2] sm:$0x1]
  %v48 = vlaneseq
  %v49 = vshrl.u32 %v48, 7
  %v50 = vsub.s32 0, %v49
  %v51 = vrot.slane %v46, %v50
  %v61 = vunpack.c.l.b16 %v15
  %v62 = vunpack.c.h.b16 %v15
  %v63 = vunpack.c.l.b16 %v16
  %v64 = vunpack.c.h.b16 %v16
  %v65 = vunpack.c.l.b16 %v17
  %v66 = vunpack.c.h.b16 %v17
  %v67 = vunpack.c.l.b16 %v18
  %v68 = vunpack.c.h.b16 %v18
  %v69 = vunpack.c.l.b16 %v19
  %v70 = vunpack.c.h.b16 %v19
  %v71 = vunpack.c.l.b16 %v20
  %v72 = vunpack.c.h.b16 %v20
  %v73 = vunpack.c.l.b16 %v21
  %v74 = vunpack.c.h.b16 %v21
  %v75 = vunpack.c.l.b16 %v22
  %v76 = vunpack.c.h.b16 %v22
  %v77 = vpack.c.b16 %v63, %v61
  %v78 = vpack.c.b16 %v64, %v62
  %v79 = vpack.c.b16 %v67, %v65
  %v80 = vpack.c.b16 %v68, %v66
  %v81 = vpack.c.b16 %v71, %v69
  %v82 = vpack.c.b16 %v72, %v70
  %v83 = vpack.c.b16 %v75, %v73
  %v84 = vpack.c.b16 %v76, %v74
  %v112 = vunpack.c.l.b16 %v23
  %v113 = vunpack.c.l.b16 %v24
  %v114 = vunpack.c.l.b16 %v25
  %v115 = vunpack.c.l.b16 %v26
  %v116 = vunpack.c.l.b16 %v27
  %v117 = vunpack.c.l.b16 %v28
  %v118 = vunpack.c.l.b16 %v29
  %v119 = vunpack.c.l.b16 %v30
  %v120 = vunpack.c.l.b16 %v31
  %v121 = vunpack.c.l.b16 %v32
  %v122 = vunpack.c.l.b16 %v33
  %v123 = vunpack.c.l.b16 %v34
  %v124 = vunpack.c.l.b16 %v35
  %v125 = vunpack.c.l.b16 %v36
  %v126 = vunpack.c.l.b16 %v37
  %v127 = vunpack.c.l.b16 %v38
  %v128 = vunpack.c.l.b16 %v39
  %v129 = vunpack.c.l.b16 %v40
  %v130 = vunpack.c.l.b16 %v41
  %v131 = vunpack.c.l.b16 %v42
  %v132 = vunpack.c.l.b16 %v43
  %v133 = vunpack.c.l.b16 %v44
  %v134 = vunpack.c.l.b16 %v45
  %v135 = vpack.c.b16 %v113, %v112
  %v136 = vpack.c.b16 %v115, %v114
  %v137 = vpack.c.b16 %v117, %v116
  %v138 = vpack.c.b16 %v119, %v118
  %v139 = vpack.c.b16 %v121, %v120
  %v140 = vpack.c.b16 %v123, %v122
  %v141 = vpack.c.b16 %v125, %v124
  %v142 = vpack.c.b16 %v127, %v126
  %v143 = vpack.c.b16 %v129, %v128
  %v144 = vpack.c.b16 %v131, %v130
  %v145 = vpack.c.b16 %v133, %v132
  %v146 = vpack.c.b16 %v134, %v134
  %vm158 = vcmask 424960
  %v160 = vsel %vm158, %v78, 0
  %v163 = vsel %vm158, %v80, 0
  %v166 = vsel %vm158, %v82, 0
  %v169 = vsel %vm158, %v84, 0
  %vm171 = vcmask 1041408
  %v173 = vsel %vm171, %v146, 0
  %175 = vmatprep.subr.bf16.mxu0 0
  %176 = vmatpush1.bf16.msra.mxu0 %v135
  %177 = vmatprep.subr.bf16.mxu0 0
  %178 = vmatpush1.bf16.msra.mxu0 %v136
  %179 = vmatprep.subr.bf16.mxu0 0
  %180 = vmatpush1.bf16.msra.mxu0 %v137
  %181 = vmatprep.subr.bf16.mxu0 0
  %182 = vmatpush1.bf16.msra.mxu0 %v138
  %183 = vmatprep.subr.bf16.mxu0 0
  %184 = vmatpush1.bf16.msra.mxu0 %v139
  %185 = vmatprep.subr.bf16.mxu0 0
  %186 = vmatpush1.bf16.msra.mxu0 %v140
  %187 = vmatprep.subr.bf16.mxu0 0
  %188 = vmatpush1.bf16.msra.mxu0 %v141
  %189 = vmatprep.subr.bf16.mxu0 0
  %190 = vmatpush1.bf16.msra.mxu0 %v142
  %191 = vmatprep.subr.bf16.mxu0 0
  %192 = vmatpush1.bf16.msra.mxu0 %v143
  %193 = vmatprep.subr.bf16.mxu0 0
  %194 = vmatpush1.bf16.msra.mxu0 %v144
  %195 = vmatprep.subr.bf16.mxu0 0
  %196 = vmatpush1.bf16.msra.mxu0 %v145
  %197 = vmatprep.subr.bf16.mxu0 0
  %198 = vmatpush1.bf16.msra.mxu0 %v173
  %199 = vmatprep.subr.bf16.mxu0 0
  %200 = vmatpush1.bf16.msra.mxu0 0
  %201 = vmatprep.subr.bf16.mxu0 0
  %202 = vmatpush1.bf16.msra.mxu0 0
  %203 = vmatprep.subr.bf16.mxu0 0
  %204 = vmatpush1.bf16.msra.mxu0 0
  %205 = vmatprep.subr.bf16.mxu0 0
  %206 = vmatpush1.bf16.msra.mxu0 0
  %207 = vmatprep.mubr.bf16.mxu0 %v160
  %208 = vmatmul.mubr.bf16.gmra.mrb[0].mxu0 %v77
  %v209 = vpop.f32.mrb[0].mxu0
  %v210 = vadd.f32 %v51, %v209
  %v211 = vpop.f32.mrb[0].mxu0
  %v212 = vpop.f32.mrb[0].mxu0
  %v213 = vadd.f32 %v51, %v212
  %v214 = vpop.f32.mrb[0].mxu0
  %215 = vmatprep.mubr.bf16.mxu0 %v163
  %216 = vmatmul.mubr.bf16.gmra.mrb[0].mxu0 %v79
  %v217 = vpop.f32.mrb[0].mxu0
  %v218 = vadd.f32 %v51, %v217
  %v219 = vpop.f32.mrb[0].mxu0
  %v220 = vpop.f32.mrb[0].mxu0
  %v221 = vadd.f32 %v51, %v220
  %v222 = vpop.f32.mrb[0].mxu0
  %223 = vmatprep.mubr.bf16.mxu0 %v166
  %224 = vmatmul.mubr.bf16.gmra.mrb[0].mxu0 %v81
  %v225 = vpop.f32.mrb[0].mxu0
  %v226 = vadd.f32 %v51, %v225
  %v227 = vpop.f32.mrb[0].mxu0
  %v228 = vpop.f32.mrb[0].mxu0
  %v229 = vadd.f32 %v51, %v228
  %v230 = vpop.f32.mrb[0].mxu0
  %231 = vmatprep.mubr.bf16.mxu0 %v169
  %232 = vmatmul.mubr.bf16.gmra.mrb[0].mxu0 %v83
  %v233 = vpop.f32.mrb[0].mxu0
  %v234 = vadd.f32 %v51, %v233
  %v235 = vpop.f32.mrb[0].mxu0
  %v236 = vpop.f32.mrb[0].mxu0
  %v237 = vadd.f32 %v51, %v236
  %v238 = vpop.f32.mrb[0].mxu0
  %239 = vdwg.mxu0
  %v240 = vmax.f32 %v210, 0.0
  %v241 = vmax.f32 %v213, 0.0
  %v242 = vmax.f32 %v218, 0.0
  %v243 = vmax.f32 %v221, 0.0
  %v244 = vmax.f32 %v226, 0.0
  %v245 = vmax.f32 %v229, 0.0
  %v246 = vmax.f32 %v234, 0.0
  %v247 = vmax.f32 %v237, 0.0
  %vm248 = vcmask 195584
  %249 = vst.msk [vmem:[%s3] sm:$0xff] %vm248, %v240
  %250 = vst.msk [vmem:[%s3 + $0x8] sm:$0xff] %vm248, %v241
  %251 = vst.msk [vmem:[%s3 + $0x10] sm:$0xff] %vm248, %v242
  %252 = vst.msk [vmem:[%s3 + $0x18] sm:$0xff] %vm248, %v243
  %253 = vst.msk [vmem:[%s3 + $0x20] sm:$0xff] %vm248, %v244
  %254 = vst.msk [vmem:[%s3 + $0x28] sm:$0xff] %vm248, %v245
  %255 = vst.msk [vmem:[%s3 + $0x30] sm:$0xff] %vm248, %v246
  %256 = vst.msk [vmem:[%s3 + $0x38] sm:$0xff] %vm248, %v247
  // Predicated region
  $region14: #{facenet_embedder_forward.18} parent=0 // pred_check
    _
  $region15: #{facenet_embedder_forward.18} parent=0 // pred_check_branch
    %258 = sbr.rel (0) target = $region17
  $region16: #{facenet_embedder_forward.18} parent=0 // pred_region
    _
  $region17: #{facenet_embedder_forward.18} parent=0 // pred_fallthru
    _
  // Predicated region
  $region18: #{facenet_embedder_forward.18} parent=0 // pred_check
    _
  $region19: #{facenet_embedder_forward.18} parent=0 // pred_check_branch
    %260 = sbr.rel (0) target = $region21
  $region20: #{facenet_embedder_forward.18} parent=0 // pred_region
    _
  $region21: #{facenet_embedder_forward.18} parent=0 // pred_fallthru
    _

// kernel: facenet_embedder_forward.20
$region0: #{facenet_embedder_forward.20}
  #allocation0 [shape = 'u32[]', space=smem, size = 0x4, offset = 0x4, fixed_abs, tag = 'smem constant byte address 0x4 - core index']
  #allocation1 [shape = 'u32[144,128]{1,0:T(1,128)}', space=vmem, size = 0x12000, scoped, tag = 'internal scratch']
  %s0 = inlined_call_operand.vmem [shape: bf16[16,32], index: 0, kind: input, shape index: {}]
  %s1 = inlined_call_operand.vmem [shape: bf16[32,24], index: 1, kind: input, shape index: {}]
  %s2 = inlined_call_operand.vmem [shape: f32[1,24], index: 2, kind: input, shape index: {}]
  %s3 = inlined_call_operand.vmem [shape: f32[16,24], index: 3, kind: output, shape index: {}]
  %s4 = sld [smem:[#allocation0]]
  $region22: #{facenet_embedder_forward.20} parent=0
    _
  %s6 = ssub.s32 1, %s4
  %s7 = scalar_select 0, %s6, %s4
  // Predicated region
  $region2: #{facenet_embedder_forward.20} parent=0 // pred_check
    _
  $region3: #{facenet_embedder_forward.20} parent=0 // pred_check_branch
    %9 = sbr.rel (0) target = $region5
  $region4: #{facenet_embedder_forward.20} parent=0 // pred_region
    _
  $region5: #{facenet_embedder_forward.20} parent=0 // pred_fallthru
    _
  // Predicated region
  $region6: #{facenet_embedder_forward.20} parent=0 // pred_check
    _
  $region7: #{facenet_embedder_forward.20} parent=0 // pred_check_branch
    %11 = sbr.rel (0) target = $region9
  $region8: #{facenet_embedder_forward.20} parent=0 // pred_region
    _
  $region9: #{facenet_embedder_forward.20} parent=0 // pred_fallthru
    _
  // Predicated region
  $region10: #{facenet_embedder_forward.20} parent=0 // pred_check
    _
  $region11: #{facenet_embedder_forward.20} parent=0 // pred_check_branch
    %13 = sbr.rel (0) target = $region13
  $region12: #{facenet_embedder_forward.20} parent=0 // pred_region
    _
  $region13: #{facenet_embedder_forward.20} parent=0 // pred_fallthru
    _
  %v15 = vld [vmem:[%s0] sm:$0xf]
  %v16 = vld [vmem:[%s0 + $0x4] sm:$0xf]
  %v17 = vld [vmem:[%s1] sm:$0xf]
  %v18 = vld [vmem:[%s1 + $0x4] sm:$0xf]
  %v19 = vld [vmem:[%s1 + $0x8] sm:$0xf]
  %v20 = vld [vmem:[%s1 + $0xc] sm:$0xf]
  %v21 = vld [vmem:[%s2] sm:$0x1]
  %v23 = vlaneseq
  %v24 = vshrl.u32 %v23, 7
  %v25 = vsub.s32 0, %v24
  %v26 = vrot.slane %v21, %v25
  %v30 = vunpack.c.l.b16 %v15
  %v31 = vunpack.c.l.b16 %v16
  %v32 = vpack.c.b16 %v31, %v30
  %v37 = vunpack.c.l.b16 %v17
  %v38 = vunpack.c.l.b16 %v18
  %v39 = vunpack.c.l.b16 %v19
  %v40 = vunpack.c.l.b16 %v20
  %v41 = vpack.c.b16 %v38, %v37
  %v42 = vpack.c.b16 %v40, %v39
  %vm45 = vcmask 261120
  %v47 = vsel %vm45, %v32, 0
  %49 = vmatprep.subr.bf16.mxu0 0
  %50 = vmatpush1.bf16.msra.mxu0 %v41
  %51 = vmatprep.subr.bf16.mxu0 0
  %52 = vmatpush1.bf16.msra.mxu0 %v42
  %53 = vmatprep.subr.bf16.mxu0 0
  %54 = vmatpush1.bf16.msra.mxu0 0
  %55 = vmatprep.subr.bf16.mxu0 0
  %56 = vmatpush1.bf16.msra.mxu0 0
  %57 = vmatprep.subr.bf16.mxu0 0
  %58 = vmatpush1.bf16.msra.mxu0 0
  %59 = vmatprep.subr.bf16.mxu0 0
  %60 = vmatpush1.bf16.msra.mxu0 0
  %61 = vmatprep.subr.bf16.mxu0 0
  %62 = vmatpush1.bf16.msra.mxu0 0
  %63 = vmatprep.subr.bf16.mxu0 0
  %64 = vmatpush1.bf16.msra.mxu0 0
  %65 = vmatprep.subr.bf16.mxu0 0
  %66 = vmatpush1.bf16.msra.mxu0 0
  %67 = vmatprep.subr.bf16.mxu0 0
  %68 = vmatpush1.bf16.msra.mxu0 0
  %69 = vmatprep.subr.bf16.mxu0 0
  %70 = vmatpush1.bf16.msra.mxu0 0
  %71 = vmatprep.subr.bf16.mxu0 0
  %72 = vmatpush1.bf16.msra.mxu0 0
  %73 = vmatprep.subr.bf16.mxu0 0
  %74 = vmatpush1.bf16.msra.mxu0 0
  %75 = vmatprep.subr.bf16.mxu0 0
  %76 = vmatpush1.bf16.msra.mxu0 0
  %77 = vmatprep.subr.bf16.mxu0 0
  %78 = vmatpush1.bf16.msra.mxu0 0
  %79 = vmatprep.subr.bf16.mxu0 0
  %80 = vmatpush1.bf16.msra.mxu0 0
  %81 = vmatprep.mubr.bf16.mxu0 0
  %82 = vmatmul.mubr.bf16.gmra.mrb[0].mxu0 %v47
  %v83 = vpop.f32.mrb[0].mxu0
  %v84 = vadd.f32 %v26, %v83
  %v85 = vpop.f32.mrb[0].mxu0
  %v86 = vpop.f32.mrb[0].mxu0
  %v87 = vadd.f32 %v26, %v86
  %v88 = vpop.f32.mrb[0].mxu0
  %89 = vdwg.mxu0
  %v90 = vmax.f32 %v84, 0.0
  %v91 = vmax.f32 %v87, 0.0
  %vm92 = vcmask 195584
  %93 = vst.msk [vmem:[%s3] sm:$0xff] %vm92, %v90
  %94 = vst.msk [vmem:[%s3 + $0x8] sm:$0xff] %vm92, %v91
  // Predicated region
  $region14: #{facenet_embedder_forward.20} parent=0 // pred_check
    _
  $region15: #{facenet_embedder_forward.20} parent=0 // pred_check_branch
    %96 = sbr.rel (0) target = $region17
  $region16: #{facenet_embedder_forward.20} parent=0 // pred_region
    _
  $region17: #{facenet_embedder_forward.20} parent=0 // pred_fallthru
    _
  // Predicated region
  $region18: #{facenet_embedder_forward.20} parent=0 // pred_check
    _
  $region19: #{facenet_embedder_forward.20} parent=0 // pred_check_branch
    %98 = sbr.rel (0) target = $region21
  $region20: #{facenet_embedder_forward.20} parent=0 // pred_region
    _
  $region21: #{facenet_embedder_forward.20} parent=0 // pred_fallthru
    _

// kernel: facenet_embedder_forward.19
$region0: #{facenet_embedder_forward.19}
  #allocation0 [shape = 'u32[]', space=smem, size = 0x4, offset = 0x4, fixed_abs, tag = 'smem constant byte address 0x4 - core index']
  #allocation1 [shape = 'u32[144,128]{1,0:T(1,128)}', space=vmem, size = 0x12000, scoped, tag = 'internal scratch']
  %s0 = inlined_call_operand.vmem [shape: bf16[16,216], index: 0, kind: input, shape index: {}]
  %s1 = inlined_call_operand.vmem [shape: bf16[216,32], index: 1, kind: input, shape index: {}]
  %s2 = inlined_call_operand.vmem [shape: f32[1,32], index: 2, kind: input, shape index: {}]
  %s3 = inlined_call_operand.vmem [shape: f32[16,32], index: 3, kind: output, shape index: {}]
  %s4 = sld [smem:[#allocation0]]
  $region22: #{facenet_embedder_forward.19} parent=0
    _
  %s6 = ssub.s32 1, %s4
  %s7 = scalar_select 0, %s6, %s4
  // Predicated region
  $region2: #{facenet_embedder_forward.19} parent=0 // pred_check
    _
  $region3: #{facenet_embedder_forward.19} parent=0 // pred_check_branch
    %9 = sbr.rel (0) target = $region5
  $region4: #{facenet_embedder_forward.19} parent=0 // pred_region
    _
  $region5: #{facenet_embedder_forward.19} parent=0 // pred_fallthru
    _
  // Predicated region
  $region6: #{facenet_embedder_forward.19} parent=0 // pred_check
    _
  $region7: #{facenet_embedder_forward.19} parent=0 // pred_check_branch
    %11 = sbr.rel (0) target = $region9
  $region8: #{facenet_embedder_forward.19} parent=0 // pred_region
    _
  $region9: #{facenet_embedder_forward.19} parent=0 // pred_fallthru
    _
  // Predicated region
  $region10: #{facenet_embedder_forward.19} parent=0 // pred_check
    _
  $region11: #{facenet_embedder_forward.19} parent=0 // pred_check_branch
    %13 = sbr.rel (0) target = $region13
  $region12: #{facenet_embedder_forward.19} parent=0 // pred_region
    _
  $region13: #{facenet_embedder_forward.19} parent=0 // pred_fallthru
    _
  %v15 = vld [vmem:[%s0] sm:$0xff]
  %v16 = vld [vmem:[%s0 + $0x8] sm:$0xff]
  %v17 = vld [vmem:[%s1] sm:$0xf]
  %v18 = vld [vmem:[%s1 + $0x4] sm:$0xf]
  %v19 = vld [vmem:[%s1 + $0x8] sm:$0xf]
  %v20 = vld [vmem:[%s1 + $0xc] sm:$0xf]
  %v21 = vld [vmem:[%s1 + $0x10] sm:$0xf]
  %v22 = vld [vmem:[%s1 + $0x14] sm:$0xf]
  %v23 = vld [vmem:[%s1 + $0x18] sm:$0xf]
  %v24 = vld [vmem:[%s1 + $0x1c] sm:$0xf]
  %v25 = vld [vmem:[%s1 + $0x20] sm:$0xf]
  %v26 = vld [vmem:[%s1 + $0x24] sm:$0xf]
  %v27 = vld [vmem:[%s1 + $0x28] sm:$0xf]
  %v28 = vld [vmem:[%s1 + $0x2c] sm:$0xf]
  %v29 = vld [vmem:[%s1 + $0x30] sm:$0xf]
  %v30 = vld [vmem:[%s1 + $0x34] sm:$0xf]
  %v31 = vld [vmem:[%s1 + $0x38] sm:$0xf]
  %v32 = vld [vmem:[%s1 + $0x3c] sm:$0xf]
  %v33 = vld [vmem:[%s1 + $0x40] sm:$0xf]
  %v34 = vld [vmem:[%s1 + $0x44] sm:$0xf]
  %v35 = vld [vmem:[%s1 + $0x48] sm:$0xf]
  %v36 = vld [vmem:[%s1 + $0x4c] sm:$0xf]
  %v37 = vld [vmem:[%s1 + $0x50] sm:$0xf]
  %v38 = vld [vmem:[%s1 + $0x54] sm:$0xf]
  %v39 = vld [vmem:[%s1 + $0x58] sm:$0xf]
  %v40 = vld [vmem:[%s1 + $0x5c] sm:$0xf]
  %v41 = vld [vmem:[%s1 + $0x60] sm:$0xf]
  %v42 = vld [vmem:[%s1 + $0x64] sm:$0xf]
  %v43 = vld [vmem:[%s1 + $0x68] sm:$0xf]
  %v44 = vld [vmem:[%s2] sm:$0x1]
  %v46 = vlaneseq
  %v47 = vshrl.u32 %v46, 7
  %v48 = vsub.s32 0, %v47
  %v49 = vrot.slane %v44, %v48
  %v53 = vunpack.c.l.b16 %v15
  %v54 = vunpack.c.h.b16 %v15
  %v55 = vunpack.c.l.b16 %v16
  %v56 = vunpack.c.h.b16 %v16
  %v57 = vpack.c.b16 %v55, %v53
  %v58 = vpack.c.b16 %v56, %v54
  %v87 = vunpack.c.l.b16 %v17
  %v88 = vunpack.c.l.b16 %v18
  %v89 = vunpack.c.l.b16 %v19
  %v90 = vunpack.c.l.b16 %v20
  %v91 = vunpack.c.l.b16 %v21
  %v92 = vunpack.c.l.b16 %v22
  %v93 = vunpack.c.l.b16 %v23
  %v94 = vunpack.c.l.b16 %v24
  %v95 = vunpack.c.l.b16 %v25
  %v96 = vunpack.c.l.b16 %v26
  %v97 = vunpack.c.l.b16 %v27
  %v98 = vunpack.c.l.b16 %v28
  %v99 = vunpack.c.l.b16 %v29
  %v100 = vunpack.c.l.b16 %v30
  %v101 = vunpack.c.l.b16 %v31
  %v102 = vunpack.c.l.b16 %v32
  %v103 = vunpack.c.l.b16 %v33
  %v104 = vunpack.c.l.b16 %v34
  %v105 = vunpack.c.l.b16 %v35
  %v106 = vunpack.c.l.b16 %v36
  %v107 = vunpack.c.l.b16 %v37
  %v108 = vunpack.c.l.b16 %v38
  %v109 = vunpack.c.l.b16 %v39
  %v110 = vunpack.c.l.b16 %v40
  %v111 = vunpack.c.l.b16 %v41
  %v112 = vunpack.c.l.b16 %v42
  %v113 = vunpack.c.l.b16 %v43
  %v114 = vpack.c.b16 %v88, %v87
  %v115 = vpack.c.b16 %v90, %v89
  %v116 = vpack.c.b16 %v92, %v91
  %v117 = vpack.c.b16 %v94, %v93
  %v118 = vpack.c.b16 %v96, %v95
  %v119 = vpack.c.b16 %v98, %v97
  %v120 = vpack.c.b16 %v100, %v99
  %v121 = vpack.c.b16 %v102, %v101
  %v122 = vpack.c.b16 %v104, %v103
  %v123 = vpack.c.b16 %v106, %v105
  %v124 = vpack.c.b16 %v108, %v107
  %v125 = vpack.c.b16 %v110, %v109
  %v126 = vpack.c.b16 %v112, %v111
  %v127 = vpack.c.b16 %v113, %v113
  %vm141 = vcmask 719872
  %v143 = vsel %vm141, %v58, 0
  %vm145 = vcmask 1043456
  %v147 = vsel %vm145, %v127, 0
  %149 = vmatprep.subr.bf16.mxu0 0
  %150 = vmatpush1.bf16.msra.mxu0 %v114
  %151 = vmatprep.subr.bf16.mxu0 0
  %152 = vmatpush1.bf16.msra.mxu0 %v115
  %153 = vmatprep.subr.bf16.mxu0 0
  %154 = vmatpush1.bf16.msra.mxu0 %v116
  %155 = vmatprep.subr.bf16.mxu0 0
  %156 = vmatpush1.bf16.msra.mxu0 %v117
  %157 = vmatprep.subr.bf16.mxu0 0
  %158 = vmatpush1.bf16.msra.mxu0 %v118
  %159 = vmatprep.subr.bf16.mxu0 0
  %160 = vmatpush1.bf16.msra.mxu0 %v119
  %161 = vmatprep.subr.bf16.mxu0 0
  %162 = vmatpush1.bf16.msra.mxu0 %v120
  %163 = vmatprep.subr.bf16.mxu0 0
  %164 = vmatpush1.bf16.msra.mxu0 %v121
  %165 = vmatprep.subr.bf16.mxu0 0
  %166 = vmatpush1.bf16.msra.mxu0 %v122
  %167 = vmatprep.subr.bf16.mxu0 0
  %168 = vmatpush1.bf16.msra.mxu0 %v123
  %169 = vmatprep.subr.bf16.mxu0 0
  %170 = vmatpush1.bf16.msra.mxu0 %v124
  %171 = vmatprep.subr.bf16.mxu0 0
  %172 = vmatpush1.bf16.msra.mxu0 %v125
  %173 = vmatprep.subr.bf16.mxu0 0
  %174 = vmatpush1.bf16.msra.mxu0 %v126
  %175 = vmatprep.subr.bf16.mxu0 0
  %176 = vmatpush1.bf16.msra.mxu0 %v147
  %177 = vmatprep.subr.bf16.mxu0 0
  %178 = vmatpush1.bf16.msra.mxu0 0
  %179 = vmatprep.subr.bf16.mxu0 0
  %180 = vmatpush1.bf16.msra.mxu0 0
  %181 = vmatprep.mubr.bf16.mxu0 %v143
  %182 = vmatmul.mubr.bf16.gmra.mrb[0].mxu0 %v57
  %v183 = vpop.f32.mrb[0].mxu0
  %v184 = vadd.f32 %v49, %v183
  %v185 = vpop.f32.mrb[0].mxu0
  %v186 = vpop.f32.mrb[0].mxu0
  %v187 = vadd.f32 %v49, %v186
  %v188 = vpop.f32.mrb[0].mxu0
  %189 = vdwg.mxu0
  %v190 = vmax.f32 %v184, 0.0
  %v191 = vmax.f32 %v187, 0.0
  %vm192 = vcmask 261120
  %193 = vst.msk [vmem:[%s3] sm:$0xff] %vm192, %v190
  %194 = vst.msk [vmem:[%s3 + $0x8] sm:$0xff] %vm192, %v191
  // Predicated region
  $region14: #{facenet_embedder_forward.19} parent=0 // pred_check
    _
  $region15: #{facenet_embedder_forward.19} parent=0 // pred_check_branch
    %196 = sbr.rel (0) target = $region17
  $region16: #{facenet_embedder_forward.19} parent=0 // pred_region
    _
  $region17: #{facenet_embedder_forward.19} parent=0 // pred_fallthru
    _
  // Predicated region
  $region18: #{facenet_embedder_forward.19} parent=0 // pred_check
    _
  $region19: #{facenet_embedder_forward.19} parent=0 // pred_check_branch
    %198 = sbr.rel (0) target = $region21
  $region20: #{facenet_embedder_forward.19} parent=0 // pred_region
    _
  $region21: #{facenet_embedder_forward.19} parent=0 // pred_fallthru
    _

// kernel: facenet_embedder_forward.24
$region0: #{facenet_embedder_forward.24}
  #allocation0 [shape = 'u32[]', space=smem, size = 0x4, offset = 0x4, fixed_abs, tag = 'smem constant byte address 0x4 - core index']
  #allocation1 [shape = 'u32[144,128]{1,0:T(1,128)}', space=vmem, size = 0x12000, scoped, tag = 'internal scratch']
  %s0 = inlined_call_operand.vmem [shape: bf16[16,24], index: 0, kind: input, shape index: {}]
  %s1 = inlined_call_operand.vmem [shape: bf16[24,32], index: 1, kind: input, shape index: {}]
  %s2 = inlined_call_operand.vmem [shape: f32[1,32], index: 2, kind: input, shape index: {}]
  %s3 = inlined_call_operand.vmem [shape: f32[16,32], index: 3, kind: input, shape index: {}]
  %s4 = inlined_call_operand.vmem [shape: f32[16,32], index: 4, kind: output, shape index: {}]
  %s5 = sld [smem:[#allocation0]]
  $region26: #{facenet_embedder_forward.24} parent=0
    _
  %s7 = ssub.s32 1, %s5
  %s8 = scalar_select 0, %s7, %s5
  // Predicated region
  $region2: #{facenet_embedder_forward.24} parent=0 // pred_check
    _
  $region3: #{facenet_embedder_forward.24} parent=0 // pred_check_branch
    %10 = sbr.rel (0) target = $region5
  $region4: #{facenet_embedder_forward.24} parent=0 // pred_region
    _
  $region5: #{facenet_embedder_forward.24} parent=0 // pred_fallthru
    _
  // Predicated region
  $region6: #{facenet_embedder_forward.24} parent=0 // pred_check
    _
  $region7: #{facenet_embedder_forward.24} parent=0 // pred_check_branch
    %12 = sbr.rel (0) target = $region9
  $region8: #{facenet_embedder_forward.24} parent=0 // pred_region
    _
  $region9: #{facenet_embedder_forward.24} parent=0 // pred_fallthru
    _
  // Predicated region
  $region10: #{facenet_embedder_forward.24} parent=0 // pred_check
    _
  $region11: #{facenet_embedder_forward.24} parent=0 // pred_check_branch
    %14 = sbr.rel (0) target = $region13
  $region12: #{facenet_embedder_forward.24} parent=0 // pred_region
    _
  $region13: #{facenet_embedder_forward.24} parent=0 // pred_fallthru
    _
  // Predicated region
  $region14: #{facenet_embedder_forward.24} parent=0 // pred_check
    _
  $region15: #{facenet_embedder_forward.24} parent=0 // pred_check_branch
    %16 = sbr.rel (0) target = $region17
  $region16: #{facenet_embedder_forward.24} parent=0 // pred_region
    _
  $region17: #{facenet_embedder_forward.24} parent=0 // pred_fallthru
    _
  %v18 = vld [vmem:[%s0] sm:$0xf]
  %v19 = vld [vmem:[%s0 + $0x4] sm:$0xf]
  %v20 = vld [vmem:[%s1] sm:$0xf]
  %v21 = vld [vmem:[%s1 + $0x4] sm:$0xf]
  %v22 = vld [vmem:[%s1 + $0x8] sm:$0xf]
  %v23 = vld [vmem:[%s2] sm:$0x1]
  %v25 = vlaneseq
  %v26 = vshrl.u32 %v25, 7
  %v27 = vsub.s32 0, %v26
  %v28 = vrot.slane %v23, %v27
  %v32 = vunpack.c.l.b16 %v18
  %v33 = vunpack.c.l.b16 %v19
  %v34 = vpack.c.b16 %v33, %v32
  %v38 = vunpack.c.l.b16 %v20
  %v39 = vunpack.c.l.b16 %v21
  %v40 = vunpack.c.l.b16 %v22
  %v41 = vpack.c.b16 %v39, %v38
  %v42 = vpack.c.b16 %v40, %v40
  %vm44 = vcmask 195584
  %v46 = vsel %vm44, %v34, 0
  %vm48 = vcmask 1043456
  %v50 = vsel %vm48, %v42, 0
  %52 = vmatprep.subr.bf16.mxu0 0
  %53 = vmatpush1.bf16.msra.mxu0 %v41
  %54 = vmatprep.subr.bf16.mxu0 0
  %55 = vmatpush1.bf16.msra.mxu0 %v50
  %56 = vmatprep.subr.bf16.mxu0 0
  %57 = vmatpush1.bf16.msra.mxu0 0
  %58 = vmatprep.subr.bf16.mxu0 0
  %59 = vmatpush1.bf16.msra.mxu0 0
  %60 = vmatprep.subr.bf16.mxu0 0
  %61 = vmatpush1.bf16.msra.mxu0 0
  %62 = vmatprep.subr.bf16.mxu0 0
  %63 = vmatpush1.bf16.msra.mxu0 0
  %64 = vmatprep.subr.bf16.mxu0 0
  %65 = vmatpush1.bf16.msra.mxu0 0
  %66 = vmatprep.subr.bf16.mxu0 0
  %67 = vmatpush1.bf16.msra.mxu0 0
  %68 = vmatprep.subr.bf16.mxu0 0
  %69 = vmatpush1.bf16.msra.mxu0 0
  %70 = vmatprep.subr.bf16.mxu0 0
  %71 = vmatpush1.bf16.msra.mxu0 0
  %72 = vmatprep.subr.bf16.mxu0 0
  %73 = vmatpush1.bf16.msra.mxu0 0
  %74 = vmatprep.subr.bf16.mxu0 0
  %75 = vmatpush1.bf16.msra.mxu0 0
  %76 = vmatprep.subr.bf16.mxu0 0
  %77 = vmatpush1.bf16.msra.mxu0 0
  %78 = vmatprep.subr.bf16.mxu0 0
  %79 = vmatpush1.bf16.msra.mxu0 0
  %80 = vmatprep.subr.bf16.mxu0 0
  %81 = vmatpush1.bf16.msra.mxu0 0
  %82 = vmatprep.subr.bf16.mxu0 0
  %83 = vmatpush1.bf16.msra.mxu0 0
  %84 = vmatprep.mubr.bf16.mxu0 0
  %85 = vmatmul.mubr.bf16.gmra.mrb[0].mxu0 %v46
  %v86 = vpop.f32.mrb[0].mxu0
  %v87 = vadd.f32 %v28, %v86
  %v88 = vpop.f32.mrb[0].mxu0
  %v89 = vpop.f32.mrb[0].mxu0
  %v90 = vadd.f32 %v28, %v89
  %v91 = vpop.f32.mrb[0].mxu0
  %92 = vdwg.mxu0
  %v93 = vld [vmem:[%s3] sm:$0xff]
  %v94 = vld [vmem:[%s3 + $0x8] sm:$0xff]
  %v95 = vmul.f32 %v87, 0.17
  %v96 = vmul.f32 %v90, 0.17
  %v97 = vadd.f32 %v93, %v95
  %v98 = vadd.f32 %v94, %v96
  %v99 = vmax.f32 %v97, 0.0
  %v100 = vmax.f32 %v98, 0.0
  %vm101 = vcmask 261120
  %102 = vst.msk [vmem:[%s4] sm:$0xff] %vm101, %v99
  %103 = vst.msk [vmem:[%s4 + $0x8] sm:$0xff] %vm101, %v100
  // Predicated region
  $region18: #{facenet_embedder_forward.24} parent=0 // pred_check
    _
  $region19: #{facenet_embedder_forward.24} parent=0 // pred_check_branch
    %105 = sbr.rel (0) target = $region21
  $region20: #{facenet_embedder_forward.24} parent=0 // pred_region
    _
  $region21: #{facenet_embedder_forward.24} parent=0 // pred_fallthru
    _
  // Predicated region
  $region22: #{facenet_embedder_forward.24} parent=0 // pred_check
    _
  $region23: #{facenet_embedder_forward.24} parent=0 // pred_check_branch
    %107 = sbr.rel (0) target = $region25
  $region24: #{facenet_embedder_forward.24} parent=0 // pred_region
    _
  $region25: #{facenet_embedder_forward.24} parent=0 // pred_fallthru
    _

// kernel: facenet_embedder_forward.21
$region0: #{facenet_embedder_forward.21}
  #allocation0 [shape = 'u32[]', space=smem, size = 0x4, offset = 0x4, fixed_abs, tag = 'smem constant byte address 0x4 - core index']
  #allocation1 [shape = 'u32[144,128]{1,0:T(1,128)}', space=vmem, size = 0x12000, scoped, tag = 'internal scratch']
  %s0 = inlined_call_operand.vmem [shape: bf16[16,72], index: 0, kind: input, shape index: {}]
  %s1 = inlined_call_operand.vmem [shape: bf16[72,8], index: 1, kind: input, shape index: {}]
  %s2 = inlined_call_operand.vmem [shape: f32[1,8], index: 2, kind: input, shape index: {}]
  %s3 = inlined_call_operand.vmem [shape: f32[16,8], index: 3, kind: output, shape index: {}]
  %s4 = sld [smem:[#allocation0]]
  $region22: #{facenet_embedder_forward.21} parent=0
    _
  %s6 = ssub.s32 1, %s4
  %s7 = scalar_select 0, %s6, %s4
  // Predicated region
  $region2: #{facenet_embedder_forward.21} parent=0 // pred_check
    _
  $region3: #{facenet_embedder_forward.21} parent=0 // pred_check_branch
    %9 = sbr.rel (0) target = $region5
  $region4: #{facenet_embedder_forward.21} parent=0 // pred_region
    _
  $region5: #{facenet_embedder_forward.21} parent=0 // pred_fallthru
    _
  // Predicated region
  $region6: #{facenet_embedder_forward.21} parent=0 // pred_check
    _
  $region7: #{facenet_embedder_forward.21} parent=0 // pred_check_branch
    %11 = sbr.rel (0) target = $region9
  $region8: #{facenet_embedder_forward.21} parent=0 // pred_region
    _
  $region9: #{facenet_embedder_forward.21} parent=0 // pred_fallthru
    _
  // Predicated region
  $region10: #{facenet_embedder_forward.21} parent=0 // pred_check
    _
  $region11: #{facenet_embedder_forward.21} parent=0 // pred_check_branch
    %13 = sbr.rel (0) target = $region13
  $region12: #{facenet_embedder_forward.21} parent=0 // pred_region
    _
  $region13: #{facenet_embedder_forward.21} parent=0 // pred_fallthru
    _
  %v15 = vld [vmem:[%s0] sm:$0xf]
  %v16 = vld [vmem:[%s0 + $0x4] sm:$0xf]
  %v17 = vld [vmem:[%s1] sm:$0xf]
  %v18 = vld [vmem:[%s1 + $0x4] sm:$0xf]
  %v19 = vld [vmem:[%s1 + $0x8] sm:$0xf]
  %v20 = vld [vmem:[%s1 + $0xc] sm:$0xf]
  %v21 = vld [vmem:[%s1 + $0x10] sm:$0xf]
  %v22 = vld [vmem:[%s1 + $0x14] sm:$0xf]
  %v23 = vld [vmem:[%s1 + $0x18] sm:$0xf]
  %v24 = vld [vmem:[%s1 + $0x1c] sm:$0xf]
  %v25 = vld [vmem:[%s1 + $0x20] sm:$0xf]
  %v26 = vld [vmem:[%s2] sm:$0x1]
  %v28 = vlaneseq
  %v29 = vshrl.u32 %v28, 7
  %v30 = vsub.s32 0, %v29
  %v31 = vrot.slane %v26, %v30
  %v35 = vunpack.c.l.b16 %v15
  %v36 = vunpack.c.l.b16 %v16
  %v37 = vpack.c.b16 %v36, %v35
  %v47 = vunpack.c.l.b16 %v17
  %v48 = vunpack.c.l.b16 %v18
  %v49 = vunpack.c.l.b16 %v19
  %v50 = vunpack.c.l.b16 %v20
  %v51 = vunpack.c.l.b16 %v21
  %v52 = vunpack.c.l.b16 %v22
  %v53 = vunpack.c.l.b16 %v23
  %v54 = vunpack.c.l.b16 %v24
  %v55 = vunpack.c.l.b16 %v25
  %v56 = vpack.c.b16 %v48, %v47
  %v57 = vpack.c.b16 %v50, %v49
  %v58 = vpack.c.b16 %v52, %v51
  %v59 = vpack.c.b16 %v54, %v53
  %v60 = vpack.c.b16 %v55, %v55
  %vm65 = vcmask 588800
  %v67 = vsel %vm65, %v37, 0
  %vm69 = vcmask 1043456
  %v71 = vsel %vm69, %v60, 0
  %73 = vmatprep.subr.bf16.mxu0 0
  %74 = vmatpush1.bf16.msra.mxu0 %v56
  %75 = vmatprep.subr.bf16.mxu0 0
  %76 = vmatpush1.bf16.msra.mxu0 %v57
  %77 = vmatprep.subr.bf16.mxu0 0
  %78 = vmatpush1.bf16.msra.mxu0 %v58
  %79 = vmatprep.subr.bf16.mxu0 0
  %80 = vmatpush1.bf16.msra.mxu0 %v59
  %81 = vmatprep.subr.bf16.mxu0 0
  %82 = vmatpush1.bf16.msra.mxu0 %v71
  %83 = vmatprep.subr.bf16.mxu0 0
  %84 = vmatpush1.bf16.msra.mxu0 0
  %85 = vmatprep.subr.bf16.mxu0 0
  %86 = vmatpush1.bf16.msra.mxu0 0
  %87 = vmatprep.subr.bf16.mxu0 0
  %88 = vmatpush1.bf16.msra.mxu0 0
  %89 = vmatprep.subr.bf16.mxu0 0
  %90 = vmatpush1.bf16.msra.mxu0 0
  %91 = vmatprep.subr.bf16.mxu0 0
  %92 = vmatpush1.bf16.msra.mxu0 0
  %93 = vmatprep.subr.bf16.mxu0 0
  %94 = vmatpush1.bf16.msra.mxu0 0
  %95 = vmatprep.subr.bf16.mxu0 0
  %96 = vmatpush1.bf16.msra.mxu0 0
  %97 = vmatprep.subr.bf16.mxu0 0
  %98 = vmatpush1.bf16.msra.mxu0 0
  %99 = vmatprep.subr.bf16.mxu0 0
  %100 = vmatpush1.bf16.msra.mxu0 0
  %101 = vmatprep.subr.bf16.mxu0 0
  %102 = vmatpush1.bf16.msra.mxu0 0
  %103 = vmatprep.subr.bf16.mxu0 0
  %104 = vmatpush1.bf16.msra.mxu0 0
  %105 = vmatprep.mubr.bf16.mxu0 0
  %106 = vmatmul.mubr.bf16.gmra.mrb[0].mxu0 %v67
  %v107 = vpop.f32.mrb[0].mxu0
  %v108 = vadd.f32 %v31, %v107
  %v109 = vpop.f32.mrb[0].mxu0
  %v110 = vpop.f32.mrb[0].mxu0
  %v111 = vadd.f32 %v31, %v110
  %v112 = vpop.f32.mrb[0].mxu0
  %113 = vdwg.mxu0
  %v114 = vmax.f32 %v108, 0.0
  %v115 = vmax.f32 %v111, 0.0
  %vm116 = vcmask 64512
  %117 = vst.msk [vmem:[%s3] sm:$0xff] %vm116, %v114
  %118 = vst.msk [vmem:[%s3 + $0x8] sm:$0xff] %vm116, %v115
  // Predicated region
  $region14: #{facenet_embedder_forward.21} parent=0 // pred_check
    _
  $region15: #{facenet_embedder_forward.21} parent=0 // pred_check_branch
    %120 = sbr.rel (0) target = $region17
  $region16: #{facenet_embedder_forward.21} parent=0 // pred_region
    _
  $region17: #{facenet_embedder_forward.21} parent=0 // pred_fallthru
    _
  // Predicated region
  $region18: #{facenet_embedder_forward.21} parent=0 // pred_check
    _
  $region19: #{facenet_embedder_forward.21} parent=0 // pred_check_branch
    %122 = sbr.rel (0) target = $region21
  $region20: #{facenet_embedder_forward.21} parent=0 // pred_region
    _
  $region21: #{facenet_embedder_forward.21} parent=0 // pred_fallthru
    _

// kernel: facenet_embedder_forward.25
$region0: #{facenet_embedder_forward.25}
  #allocation0 [shape = 'u32[]', space=smem, size = 0x4, offset = 0x4, fixed_abs, tag = 'smem constant byte address 0x4 - core index']
  #allocation1 [shape = 'u32[144,128]{1,0:T(1,128)}', space=vmem, size = 0x12000, scoped, tag = 'internal scratch']
  %s0 = inlined_call_operand.vmem [shape: f32[2,4,32], index: 0, kind: input, shape index: {}]
  %s1 = inlined_call_operand.vmem [shape: f32[32,24], index: 1, kind: input, shape index: {}]
  %s2 = inlined_call_operand.vmem [shape: f32[1,24], index: 2, kind: input, shape index: {}]
  %s3 = inlined_call_operand.vmem [shape: f32[1,24], index: 3, kind: input, shape index: {}]
  %s4 = inlined_call_operand.vmem [shape: f32[1,24], index: 4, kind: input, shape index: {}]
  %s5 = inlined_call_operand.vmem [shape: f32[1,24], index: 5, kind: input, shape index: {}]
  %s6 = inlined_call_operand.hbm [shape: f32[2,24], index: 6, kind: output, shape index: {}]
  %s7 = sld [smem:[#allocation0]]
  $region34: #{facenet_embedder_forward.25} parent=0
    _
  %s9 = ssub.s32 1, %s7
  %s10 = scalar_select 0, %s9, %s7
  $region1: #{facenet_embedder_forward.25} parent=0
    #allocation2 [shape = 'u8[1024]{0}', space=vmem, size = 0x400, scoped, tag = 'output window, operand 0, single buffered']
    #allocation3 [shape = 's32[1]{0}', space=sflag, size = 0x4, scoped, tag = 'scoped memory for facenet_embedder_forward.25']
    %11 = vsyncpa [#allocation3], 0
    // Predicated region
    $region2: #{facenet_embedder_forward.25} parent=1 // pred_check
      _
    $region3: #{facenet_embedder_forward.25} parent=1 // pred_check_branch
      %13 = sbr.rel (0) target = $region5
    $region4: #{facenet_embedder_forward.25} parent=1 // pred_region
      _
    $region5: #{facenet_embedder_forward.25} parent=1 // pred_fallthru
      _
    // Predicated region
    $region6: #{facenet_embedder_forward.25} parent=1 // pred_check
      _
    $region7: #{facenet_embedder_forward.25} parent=1 // pred_check_branch
      %15 = sbr.rel (0) target = $region9
    $region8: #{facenet_embedder_forward.25} parent=1 // pred_region
      _
    $region9: #{facenet_embedder_forward.25} parent=1 // pred_fallthru
      _
    // Predicated region
    $region10: #{facenet_embedder_forward.25} parent=1 // pred_check
      _
    $region11: #{facenet_embedder_forward.25} parent=1 // pred_check_branch
      %17 = sbr.rel (0) target = $region13
    $region12: #{facenet_embedder_forward.25} parent=1 // pred_region
      _
    $region13: #{facenet_embedder_forward.25} parent=1 // pred_fallthru
      _
    // Predicated region
    $region14: #{facenet_embedder_forward.25} parent=1 // pred_check
      _
    $region15: #{facenet_embedder_forward.25} parent=1 // pred_check_branch
      %19 = sbr.rel (0) target = $region17
    $region16: #{facenet_embedder_forward.25} parent=1 // pred_region
      _
    $region17: #{facenet_embedder_forward.25} parent=1 // pred_fallthru
      _
    // Predicated region
    $region18: #{facenet_embedder_forward.25} parent=1 // pred_check
      _
    $region19: #{facenet_embedder_forward.25} parent=1 // pred_check_branch
      %21 = sbr.rel (0) target = $region21
    $region20: #{facenet_embedder_forward.25} parent=1 // pred_region
      _
    $region21: #{facenet_embedder_forward.25} parent=1 // pred_fallthru
      _
    // Predicated region
    $region22: #{facenet_embedder_forward.25} parent=1 // pred_check
      _
    $region23: #{facenet_embedder_forward.25} parent=1 // pred_check_branch
      %23 = sbr.rel (0) target = $region25
    $region24: #{facenet_embedder_forward.25} parent=1 // pred_region
      _
    $region25: #{facenet_embedder_forward.25} parent=1 // pred_fallthru
      _
    %v24 = vld [vmem:[%s0] sm:$0x1]
    %v25 = vld [vmem:[%s0 + $0x4] sm:$0x1]
    %v26 = vld [vmem:[%s0 + $0x1] sm:$0x1]
    %v27 = vld [vmem:[%s0 + $0x5] sm:$0x1]
    %v28 = vadd.f32 %v24, %v26
    %v29 = vadd.f32 %v25, %v27
    %v30 = vld [vmem:[%s0 + $0x2] sm:$0x1]
    %v31 = vld [vmem:[%s0 + $0x6] sm:$0x1]
    %v32 = vadd.f32 %v28, %v30
    %v33 = vadd.f32 %v29, %v31
    %v34 = vld [vmem:[%s0 + $0x3] sm:$0x1]
    %v35 = vld [vmem:[%s0 + $0x7] sm:$0x1]
    %v36 = vadd.f32 %v32, %v34
    %v37 = vadd.f32 %v33, %v35
    %v38 = vmul.f32 %v36, 0.25
    %v39 = vmul.f32 %v37, 0.25
    %v40 = vld [vmem:[%s1] sm:$0xff]
    %v41 = vld [vmem:[%s1 + $0x8] sm:$0xff]
    %v42 = vld [vmem:[%s1 + $0x10] sm:$0xff]
    %v43 = vld [vmem:[%s1 + $0x18] sm:$0xff]
    %v46 = vrot.slane %v39, 7
    %vm47 = vcmask 1041409
    %v48 = vsel %vm47, %v46, %v38
    %vm49 = vcmask 261120
    %v50 = vsel %vm49, %v48, 0
    %52 = vmatprep.subr.mxu0 0.0
    %53 = vmatpush1.msra.mxu0 %v40
    %54 = vmatprep.subr.mxu0 0.0
    %55 = vmatpush1.msra.mxu0 %v41
    %56 = vmatprep.subr.mxu0 0.0
    %57 = vmatpush1.msra.mxu0 %v42
    %58 = vmatprep.subr.mxu0 0.0
    %59 = vmatpush1.msra.mxu0 %v43
    %60 = vmatprep.subr.mxu0 0.0
    %61 = vmatpush1.msra.mxu0 0.0
    %62 = vmatprep.subr.mxu0 0.0
    %63 = vmatpush1.msra.mxu0 0.0
    %64 = vmatprep.subr.mxu0 0.0
    %65 = vmatpush1.msra.mxu0 0.0
    %66 = vmatprep.subr.mxu0 0.0
    %67 = vmatpush1.msra.mxu0 0.0
    %68 = vmatprep.subr.mxu0 0.0
    %69 = vmatpush1.msra.mxu0 0.0
    %70 = vmatprep.subr.mxu0 0.0
    %71 = vmatpush1.msra.mxu0 0.0
    %72 = vmatprep.subr.mxu0 0.0
    %73 = vmatpush1.msra.mxu0 0.0
    %74 = vmatprep.subr.mxu0 0.0
    %75 = vmatpush1.msra.mxu0 0.0
    %76 = vmatprep.subr.mxu0 0.0
    %77 = vmatpush1.msra.mxu0 0.0
    %78 = vmatprep.subr.mxu0 0.0
    %79 = vmatpush1.msra.mxu0 0.0
    %80 = vmatprep.subr.mxu0 0.0
    %81 = vmatpush1.msra.mxu0 0.0
    %82 = vmatprep.subr.mxu0 0.0
    %83 = vmatpush1.msra.mxu0 0.0
    %84 = vmatprep.subr.mxu0 0.0
    %85 = vmatpush1.msra.mxu0 0.0
    %86 = vmatprep.subr.mxu0 0.0
    %87 = vmatpush1.msra.mxu0 0.0
    %88 = vmatprep.subr.mxu0 0.0
    %89 = vmatpush1.msra.mxu0 0.0
    %90 = vmatprep.subr.mxu0 0.0
    %91 = vmatpush1.msra.mxu0 0.0
    %92 = vmatprep.subr.mxu0 0.0
    %93 = vmatpush1.msra.mxu0 0.0
    %94 = vmatprep.subr.mxu0 0.0
    %95 = vmatpush1.msra.mxu0 0.0
    %96 = vmatprep.subr.mxu0 0.0
    %97 = vmatpush1.msra.mxu0 0.0
    %98 = vmatprep.subr.mxu0 0.0
    %99 = vmatpush1.msra.mxu0 0.0
    %100 = vmatprep.subr.mxu0 0.0
    %101 = vmatpush1.msra.mxu0 0.0
    %102 = vmatprep.subr.mxu0 0.0
    %103 = vmatpush1.msra.mxu0 0.0
    %104 = vmatprep.subr.mxu0 0.0
    %105 = vmatpush1.msra.mxu0 0.0
    %106 = vmatprep.subr.mxu0 0.0
    %107 = vmatpush1.msra.mxu0 0.0
    %108 = vmatprep.subr.mxu0 0.0
    %109 = vmatpush1.msra.mxu0 0.0
    %110 = vmatprep.subr.mxu0 0.0
    %111 = vmatpush1.msra.mxu0 0.0
    %112 = vmatprep.subr.mxu0 0.0
    %113 = vmatpush1.msra.mxu0 0.0
    %114 = vmatprep.subr.mxu0 0.0
    %115 = vmatpush1.msra.mxu0 0.0
    %116 = vmatprep.mubr.f32.mxu0 0.0
    %117 = vmatmul.mubr.f32.gmra.mrb[0].mxu0 %v50
    %v118 = vpop.f32.mrb[0].mxu0
    %v119 = vadd.f32 0.0, %v118
    %v120 = vpop.f32.mrb[0].mxu0
    %121 = vdwg.mxu0
    %v122 = vld [vmem:[%s2] sm:$0x1]
    %v123 = vld [vmem:[%s5] sm:$0x1]
    %v124 = vadd.f32 %v123, 0.001
    %v125 = vrsqrt.pop %v124
    %v126 = vmul.f32 %v122, %v125
    %v127 = vld [vmem:[%s4] sm:$0x1]
    %v129 = vlaneseq
    %v130 = vshrl.u32 %v129, 7
    %v131 = vsub.s32 0, %v130
    %v132 = vrot.slane %v127, %v131
    %v134 = vsub.f32 %v119, %v132
    %v136 = vlaneseq
    %v137 = vshrl.u32 %v136, 7
    %v138 = vsub.s32 0, %v137
    %v139 = vrot.slane %v126, %v138
    %v141 = vmul.f32 %v134, %v139
    %v142 = vld [vmem:[%s3] sm:$0x1]
    %v144 = vlaneseq
    %v145 = vshrl.u32 %v144, 7
    %v146 = vsub.s32 0, %v145
    %v147 = vrot.slane %v142, %v146
    %v149 = vadd.f32 %v141, %v147
    %v150 = vmul.f32 %v149, %v149
    %vm151 = vcmask 189440
    %v152 = vsel %vm151, %v150, 0.0
    %153 = vadd.xlane.f32.xlu0 %v152
    %v154 = vpop.xlane.xlu0 %153
    %v155 = vrsqrt.pop %v154
    %v156 = vmul.f32 %v154, %v155
    %vm157 = vcmp.eq.f32.partialorder %v154, inf
    %v158 = vsel %vm157, %v154, %v156
    %vm159 = vcmp.eq.f32.partialorder %v154, 0.0
    %v160 = vand.u32 %v154, 2147483648
    %v161 = vsel %vm159, %v160, %v158
    %v162 = vmax.f32 %v161, 1e-12
    %v163 = vrcp.pop %v162
    %v164 = vmul.f32 %v149, %v163
    %165 = vst.msk [vmem:[#allocation2] sm:$0x3] %vm151, %v164
    // Predicated region
    $region26: #{facenet_embedder_forward.25} parent=1 // pred_check
      _
    $region27: #{facenet_embedder_forward.25} parent=1 // pred_check_branch
      %167 = sbr.rel (0) target = $region29
    $region28: #{facenet_embedder_forward.25} parent=1 // pred_region
      %s169 = ssub.s32 32, 32
      %170 = vsyncadd [#allocation3], %s169
      %s172 = sshll.u32 [#allocation2], 4
      %s173 = int_to_ptr.vmem [resolvable:$true] %s172
      %175 = dma.vmem_to_hbm [thread:$0]  %s173, 32, %s6, [#allocation3]
    $region29: #{facenet_embedder_forward.25} parent=1 // pred_fallthru
      _
    // Predicated region
    $region30: #{facenet_embedder_forward.25} parent=1 // pred_check
      _
    $region31: #{facenet_embedder_forward.25} parent=1 // pred_check_branch
      %177 = sbr.rel (0) target = $region33
    $region32: #{facenet_embedder_forward.25} parent=1 // pred_region
      %178 = dma.done [#allocation3], 32
    $region33: #{facenet_embedder_forward.25} parent=1 // pred_fallthru
      _
    %179 = vsyncpa [#allocation3], 1

</llo_original>
